<compile_context>
chip_gen: v7x
topology: tpu7x:2x2x1
jax: 0.10.0
libtpu: 0.0.40
codegen_flags: <defaults>
</compile_context>

<pallas_src>
import functools
import numpy as np
import jax
import jax.numpy as jnp
from jax.experimental import pallas as pl
from jax.experimental.pallas import tpu as pltpu

PAD = 9      # FNO2d.padding
LEN = 1      # TODO(synk): args.len is a CLI arg in the original script; fixed to 1 so
             # the Gabor grid size (s + 9 + len - 1) equals the padded FFT grid size.


def _round_up(x, m):
    return ((x + m - 1) // m) * m


# ----------------------------- in-kernel math ------------------------------

_ERF_C = (-1.26551223, 1.00002368, 0.37409196, 0.09678418, -0.18628806,
          0.27886807, -1.13520398, 1.48851587, -0.82215223, 0.17087277)


def _erf(x):
    # float32-accurate erf (A&S erfc approximation, ~1.2e-7 abs err) from exp/mul/add/
    # where only, so it lowers in Mosaic.  Reciprocal goes to the EUP (approx) with one
    # Newton refinement; Estrin split breaks the 9-deep serial Horner chain.
    a = jnp.abs(x)
    d = 1.0 + 0.5 * a
    t = pl.reciprocal(d, approx=True)
    t = t * (2.0 - d * t)                   # one Newton step -> ~f32 accuracy
    c = _ERF_C
    t2 = t * t
    t4 = t2 * t2
    t8 = t4 * t4
    p01 = c[0] + c[1] * t
    p23 = c[2] + c[3] * t
    p45 = c[4] + c[5] * t
    p67 = c[6] + c[7] * t
    p89 = c[8] + c[9] * t
    poly = (p01 + p23 * t2) + (p45 + p67 * t2) * t4 + p89 * t8
    erfc = t * jnp.exp(-a * a + poly)
    return jnp.where(x >= 0.0, 1.0 - erfc, erfc - 1.0)


def _gelu_exact(x):
    return 0.5 * x * (1.0 + _erf(x * 0.7071067811865476))


# ----------------------------- Pallas kernels ------------------------------

def _pointwise_kernel(*refs, has_add, activation):
    # y = act(W @ x + b [+ add]); spatial tile on the lane axis (lane-dense output).
    if has_add:
        x_ref, w_ref, b_ref, add_ref, o_ref = refs
    else:
        x_ref, w_ref, b_ref, o_ref = refs
    x = x_ref[0].astype(jnp.bfloat16)                     # bf16 MXU operands,
    w = w_ref[...].astype(jnp.bfloat16)                   # f32 accumulation
    y = jnp.dot(w, x, preferred_element_type=jnp.float32)  # (Cout, T)
    y = y + b_ref[...]                                    # (Cout,1) lane-broadcast
    if has_add:
        y = y + add_ref[0]
    if activation == "gelu":
        y = _gelu_exact(y)
    o_ref[0] = y.astype(o_ref.dtype)


def pointwise_cf(x, w, b, add=None, activation=None):
    """act(W @ x + b [+ add]) per batch, channels-first.

    x: (B, Cin, N) f32, w: (Cout, Cin), b: (Cout,), add: (B, Cout, N) optional.
    Single full-axis spatial block (nb == 1) -> lane-dense stores, minimal grid steps;
    grid=(B, 1) keeps 2 parallel steps so both v7x TensorCores are fed.
    """
    B, Cin, N = x.shape
    Cout = w.shape[0]
    tile = _round_up(N, 128)                 # whole axis in one block
    nb = pl.cdiv(N, tile)                    # == 1
    has_add = add is not None

    inputs = [x, w, b.reshape(Cout, 1)]
    in_specs = [
        pl.BlockSpec((1, Cin, tile), lambda bb, i: (bb, 0, i)),
        pl.BlockSpec((Cout, Cin), lambda bb, i: (0, 0)),
        pl.BlockSpec((Cout, 1), lambda bb, i: (0, 0)),
    ]
    if has_add:
        inputs.append(add)
        in_specs.append(pl.BlockSpec((1, Cout, tile), lambda bb, i: (bb, 0, i)))

    return pl.pallas_call(
        functools.partial(_pointwise_kernel, has_add=has_add, activation=activation),
        out_shape=jax.ShapeDtypeStruct((B, Cout, N), jnp.float32),
        grid=(B, nb),
        in_specs=in_specs,
        out_specs=pl.BlockSpec((1, Cout, tile), lambda bb, i: (bb, 0, i)),
        compiler_params=pltpu.CompilerParams(
            dimension_semantics=("parallel", "parallel")),
    )(*inputs)


def _head_kernel(x_ref, w1_ref, b1_ref, w2_ref, b2_ref, o_ref):
    # Fused fc1 (gelu) + fc2: the (128, T) hidden activation never touches HBM.
    x = x_ref[0].astype(jnp.bfloat16)
    h = jnp.dot(w1_ref[...].astype(jnp.bfloat16), x,
                preferred_element_type=jnp.float32) + b1_ref[...]
    h = _gelu_exact(h)                                          # f32 elementwise
    y = jnp.dot(w2_ref[...].astype(jnp.bfloat16), h.astype(jnp.bfloat16),
                preferred_element_type=jnp.float32) + b2_ref[...]
    o_ref[0] = y.astype(o_ref.dtype)


def head_fc1_fc2(x, w1, b1, w2, b2):
    """fc2(gelu(fc1(x))) fused; x: (B, Cin, N) -> (B, 1, N)."""
    B, Cin, N = x.shape
    C1 = w1.shape[0]
    Cout = w2.shape[0]
    tile = _round_up(N, 128)
    nb = pl.cdiv(N, tile)                    # == 1
    return pl.pallas_call(
        _head_kernel,
        out_shape=jax.ShapeDtypeStruct((B, Cout, N), jnp.float32),
        grid=(B, nb),
        in_specs=[
            pl.BlockSpec((1, Cin, tile), lambda bb, i: (bb, 0, i)),
            pl.BlockSpec((C1, Cin), lambda bb, i: (0, 0)),
            pl.BlockSpec((C1, 1), lambda bb, i: (0, 0)),
            pl.BlockSpec((Cout, C1), lambda bb, i: (0, 0)),
            pl.BlockSpec((Cout, 1), lambda bb, i: (0, 0)),
        ],
        out_specs=pl.BlockSpec((1, Cout, tile), lambda bb, i: (bb, 0, i)),
        compiler_params=pltpu.CompilerParams(
            dimension_semantics=("parallel", "parallel")),
    )(x, w1, b1.reshape(C1, 1), w2, b2.reshape(Cout, 1))


def _spectral_mix_kernel(x_ref, w_ref, o_ref, *, cin):
    # Per batch element: out[o,m] = sum_c x[c,m] * w[c,o,m] (complex, 4-mult form).
    # x_ref: (1, 2, Cin, Mp), w_ref: (2, Cin, Cout, Mp), o_ref: (1, 2, Cout, Mp).
    # Modes (padded to 128) on the lane axis; Cin loop uses leading-axis *ref* slices
    # (contiguous loads), so the hot loop is pure VALU work on full vregs.
    acc_r = None
    acc_i = None
    for i in range(cin):                           # static unroll (Cin small)
        xr = x_ref[0, 0, pl.ds(i, 1), :]           # (1, Mp)
        xi = x_ref[0, 1, pl.ds(i, 1), :]
        wr = w_ref[0, i]                           # (Cout, Mp)
        wi = w_ref[1, i]
        pr = xr * wr - xi * wi
        pi = xr * wi + xi * wr
        acc_r = pr if acc_r is None else acc_r + pr
        acc_i = pi if acc_i is None else acc_i + pi
    o_ref[0, 0] = acc_r
    o_ref[0, 1] = acc_i


def spectral_mode_mix(x_ri, w_ri):
    """x_ri: (B, 2, Cin, Mp) f32, w_ri: (2, Cin, Cout, Mp) f32 -> (B, 2, Cout, Mp)."""
    B, _, Cin, Mp = x_ri.shape
    Cout = w_ri.shape[2]
    return pl.pallas_call(
        functools.partial(_spectral_mix_kernel, cin=Cin),
        out_shape=jax.ShapeDtypeStruct((B, 2, Cout, Mp), jnp.float32),
        grid=(B,),
        in_specs=[
            pl.BlockSpec((1, 2, Cin, Mp), lambda b: (b, 0, 0, 0)),
            pl.BlockSpec((2, Cin, Cout, Mp), lambda b: (0, 0, 0, 0)),
        ],
        out_specs=pl.BlockSpec((1, 2, Cout, Mp), lambda b: (b, 0, 0, 0)),
        compiler_params=pltpu.CompilerParams(dimension_semantics=("parallel",)),
    )(x_ri, w_ri)


# -------------------------------- JAX glue ----------------------------------

def gabor_weight(freq, theta, sigma, gamma, n):
    # GaborConv2d.forward (torch.meshgrid default 'ij' indexing).
    lin = jnp.linspace(-0.5, 0.5, n)
    yy, xx = jnp.meshgrid(lin, lin, indexing="ij")
    u = xx * jnp.cos(theta) + yy * jnp.sin(theta)
    v = -xx * jnp.sin(theta) + yy * jnp.cos(theta)
    sigma_y = sigma / (gamma + 1e-5)
    test1 = sigma ** 2 * (u - freq / np.pi) ** 2
    test2 = sigma_y ** 2 * v ** 2
    w = jnp.exp(-2.0 * np.pi ** 2 * (test1 + test2))
    return jnp.fft.ifftshift(w)


def prep_spectral_weights(w1, w2, gab, modes1, modes2, n_gabor, m_pad):
    """Input-independent weight prep (hoisted): gabor-modulate, pack lo|hi modes on the
    lane axis, split re/im, zero-pad to m_pad (=128) lanes."""
    g = gabor_weight(gab["freq"], gab["theta"], gab["sigma"], gab["gamma"], n_gabor)
    g1 = g[:modes1, :modes2]
    g2 = g[-modes1:, :modes2]
    Cin, Cout = w1.shape[0], w1.shape[1]
    m = modes1 * modes2
    w1e = (w1 * g1[None, None, :, :]).reshape(Cin, Cout, m)
    w2e = (w2 * g2[None, None, :, :]).reshape(Cin, Cout, m)
    wm = jnp.concatenate([w1e, w2e], axis=-1)                       # (Cin,Cout,2m) cplx
    w_ri = jnp.stack([jnp.real(wm), jnp.imag(wm)]).astype(jnp.float32)
    return jnp.pad(w_ri, ((0, 0), (0, 0), (0, 0), (0, m_pad - 2 * m)))


def spectral_conv2d_cf(x, w_ri, modes1, modes2):
    """SpectralConv2d.forward (Gabor-modulated), channels-first.
    x: (B, Cin, S, S) f32 -> (B, Cout, S, S) f32.  FFTs stay in jnp.fft."""
    B, Cin, S1, S2 = x.shape
    Cout = w_ri.shape[2]
    Mp = w_ri.shape[-1]
    m = modes1 * modes2

    x_ft = jnp.fft.rfft2(x, axes=(-2, -1))                          # (B,Cin,S1,S2//2+1)
    x_lo = x_ft[:, :, :modes1, :modes2]
    x_hi = x_ft[:, :, S1 - modes1:, :modes2]
    xm = jnp.concatenate([x_lo, x_hi], axis=2).reshape(B, Cin, 2 * m)
    x_ri = jnp.stack([jnp.real(xm), jnp.imag(xm)], axis=1).astype(jnp.float32)
    x_ri = jnp.pad(x_ri, ((0, 0), (0, 0), (0, 0), (0, Mp - 2 * m)))  # (B,2,Cin,Mp)

    o_ri = spectral_mode_mix(x_ri, w_ri)                            # (B,2,Cout,Mp)

    o_r = o_ri[:, 0, :, :2 * m].reshape(B, Cout, 2 * modes1, modes2)
    o_i = o_ri[:, 1, :, :2 * m].reshape(B, Cout, 2 * modes1, modes2)
    om = jax.lax.complex(o_r, o_i)
    out_ft = jnp.zeros((B, Cout, S1, S2 // 2 + 1), dtype=jnp.complex64)
    out_ft = out_ft.at[:, :, :modes1, :modes2].set(om[:, :, :modes1])
    out_ft = out_ft.at[:, :, S1 - modes1:, :modes2].set(om[:, :, modes1:])
    return jnp.fft.irfft2(out_ft, s=(S1, S2), axes=(-2, -1)).astype(jnp.float32)


def get_grid_cf(B, sx, sy):
    gx = jnp.broadcast_to(jnp.linspace(0.0, 1.0, sx).reshape(1, 1, sx, 1), (B, 1, sx, sy))
    gy = jnp.broadcast_to(jnp.linspace(0.0, 1.0, sy).reshape(1, 1, 1, sy), (B, 1, sx, sy))
    return jnp.concatenate([gx, gy], axis=1).astype(jnp.float32)


def fno2d_forward(params, x, modes1, modes2, width):
    B, sx, sy, _ = x.shape
    xin = jnp.transpose(x, (0, 3, 1, 2))                           # (B,1,sx,sy)
    h = jnp.concatenate([xin, get_grid_cf(B, sx, sy)], axis=1)     # (B,3,sx,sy)

    h = pointwise_cf(h.reshape(B, 3, sx * sy), params["fc0_w"], params["fc0_b"])
    h = h.reshape(B, width, sx, sy)

    # F.pad(NCHW, [0, 9, 0, 9]) == pad both spatial axes on the high side.
    h = jnp.pad(h, ((0, 0), (0, 0), (0, PAD), (0, PAD)))
    S = sx + PAD
    Nsp = S * S
    n_gabor = sx + 9 + LEN - 1
    m_pad = _round_up(2 * modes1 * modes2, 128)                    # 72 -> 128 lanes

    # Hoisted, input-independent spectral weight prep for all 4 layers.
    spec_w = [prep_spectral_weights(params[f"spec{l}_w1"], params[f"spec{l}_w2"],
                                    params[f"spec{l}_gabor"], modes1, modes2,
                                    n_gabor, m_pad)
              for l in range(4)]

    for l in range(4):
        x1 = spectral_conv2d_cf(h, spec_w[l], modes1, modes2)
        act = "gelu" if l < 3 else None                            # last layer: no gelu
        h = pointwise_cf(h.reshape(B, width, Nsp), params[f"w{l}_w"], params[f"w{l}_b"],
                         add=x1.reshape(B, width, Nsp), activation=act)
        h = h.reshape(B, width, S, S)

    h = h[:, :, :sx, :sy]                                          # crop padding
    out = head_fc1_fc2(h.reshape(B, width, sx * sy),
                       params["fc1_w"], params["fc1_b"],
                       params["fc2_w"], params["fc2_b"])           # (B,1,sx*sy)
    return jnp.transpose(out.reshape(B, 1, sx, sy), (0, 2, 3, 1))  # (B,sx,sy,1)


def init_params(key, modes1, modes2, width):
    p = {}
    keys = jax.random.split(key, 32)
    ki = iter(keys)

    def linear(kw, kb, fan_in, fan_out):
        bound = 1.0 / np.sqrt(fan_in)
        w = jax.random.uniform(kw, (fan_out, fan_in), jnp.float32, -bound, bound)
        b = jax.random.uniform(kb, (fan_out,), jnp.float32, -bound, bound)
        return w, b

    p["fc0_w"], p["fc0_b"] = linear(next(ki), next(ki), 3, width)
    scale = 1.0 / (width * width)
    for l in range(4):
        kr1, kc1, kr2, kc2 = jax.random.split(next(ki), 4)
        shp = (width, width, modes1, modes2)
        p[f"spec{l}_w1"] = (scale * (jax.random.uniform(kr1, shp)
                                     + 1j * jax.random.uniform(kc1, shp))).astype(jnp.complex64)
        p[f"spec{l}_w2"] = (scale * (jax.random.uniform(kr2, shp)
                                     + 1j * jax.random.uniform(kc2, shp))).astype(jnp.complex64)
        p[f"spec{l}_gabor"] = dict(freq=jnp.float32(1.1107), theta=jnp.float32(0.39),
                                   sigma=jnp.float32(2.82), gamma=jnp.float32(1.0))
        p[f"w{l}_w"], p[f"w{l}_b"] = linear(next(ki), next(ki), width, width)
    p["fc1_w"], p["fc1_b"] = linear(next(ki), next(ki), width, 128)
    p["fc2_w"], p["fc2_b"] = linear(next(ki), next(ki), 128, 1)
    # NOTE: SpectralConv2d.weights3 is declared but unused in the reference forward.
    return p


if __name__ == "__main__":
    B, s = 2, 16
    modes1 = modes2 = 6
    width = 16

    key = jax.random.PRNGKey(0)
    kx, kp = jax.random.split(key)
    x = jax.random.normal(kx, (B, s, s, 1), jnp.float32)
    params = init_params(kp, modes1, modes2, width)

    fwd = jax.jit(functools.partial(fno2d_forward, modes1=modes1, modes2=modes2,
                                    width=width))
    out = fwd(params, x)
    jax.block_until_ready(out)
    assert out.shape == (B, s, s, 1) and out.dtype == jnp.float32
    assert bool(jnp.all(jnp.isfinite(out)))
    print("KERNEL_OK")
</pallas_src>

<mosaic_0001>
module attributes {stable_mosaic.version = 11 : i64} {
  func.func @_pointwise_kernel(%arg0: i32, %arg1: i32, %arg2: memref<1x3x256xf32, #tpu.memory_space<vmem>>, %arg3: memref<16x3xf32, #tpu.memory_space<vmem>>, %arg4: memref<16x1xf32, #tpu.memory_space<vmem>>, %arg5: memref<1x16x256xf32, #tpu.memory_space<vmem>>) attributes {dimension_semantics = [#tpu.dimension_semantics<parallel>, #tpu.dimension_semantics<parallel>], iteration_bounds = array<i64: 2, 1>, scalar_prefetch = 0 : i64, scratch_operands = 0 : i64, tpu.core_type = #tpu.core_type<tc>, window_params = [{transform_indices = @transform_0, window_bounds = array<i64: 1, 3, 256>}, {pipeline_mode = #tpu.pipeline_mode<synchronous>, transform_indices = @transform_1, window_bounds = array<i64: 16, 3>}, {pipeline_mode = #tpu.pipeline_mode<synchronous>, transform_indices = @transform_2, window_bounds = array<i64: 16, 1>}, {transform_indices = @transform_3, window_bounds = array<i64: 1, 16, 256>}]} {
    %c0 = arith.constant 0 : index
    %c0_0 = arith.constant 0 : index
    %c0_1 = arith.constant 0 : index
    %0 = vector.load %arg2[%c0, %c0_0, %c0_1] : memref<1x3x256xf32, #tpu.memory_space<vmem>>, vector<1x3x256xf32>
    %1 = vector.shape_cast %0 : vector<1x3x256xf32> to vector<3x256xf32>
    %2 = arith.truncf %1 : vector<3x256xf32> to vector<3x256xbf16>
    %c0_2 = arith.constant 0 : index
    %c0_3 = arith.constant 0 : index
    %3 = vector.load %arg3[%c0_2, %c0_3] : memref<16x3xf32, #tpu.memory_space<vmem>>, vector<16x3xf32>
    %4 = arith.truncf %3 : vector<16x3xf32> to vector<16x3xbf16>
    %cst = arith.constant dense<0.000000e+00> : vector<16x256xf32>
    %5 = tpu.matmul %4, %2, %cst {dimension_numbers = #tpu.dot_dimension_numbers<[1], [0], [0], [1], [0, 0, 1, 1], [], []>} : vector<16x3xbf16>, vector<3x256xbf16>, vector<16x256xf32> -> vector<16x256xf32>
    %c0_4 = arith.constant 0 : index
    %c0_5 = arith.constant 0 : index
    %6 = vector.load %arg4[%c0_4, %c0_5] : memref<16x1xf32, #tpu.memory_space<vmem>>, vector<16x1xf32>
    %7 = vector.broadcast %6 : vector<16x1xf32> to vector<16x256xf32>
    %8 = arith.addf %5, %7 : vector<16x256xf32>
    %c0_6 = arith.constant 0 : index
    %c0_7 = arith.constant 0 : index
    %c0_8 = arith.constant 0 : index
    %9 = vector.load %arg5[%c0_6, %c0_7, %c0_8] : memref<1x16x256xf32, #tpu.memory_space<vmem>>, vector<1x16x256xf32>
    %10 = vector.shape_cast %9 : vector<1x16x256xf32> to vector<16x256xf32>
    %11 = vector.shape_cast %8 : vector<16x256xf32> to vector<1x16x256xf32>
    tpu.vector_store %arg5[%c0_6, %c0_7, %c0_8], %11 {strides = array<i32>} : memref<1x16x256xf32, #tpu.memory_space<vmem>>, vector<1x16x256xf32>,
    return
  }
  func.func @transform_0(%arg0: i32, %arg1: i32) -> (i32, i32, i32) {
    %c0_i32 = arith.constant 0 : i32
    %c0_i32_0 = arith.constant 0 : i32
    return %arg0, %c0_i32, %arg1 : i32, i32, i32
  }
  func.func @transform_1(%arg0: i32, %arg1: i32) -> (i32, i32) {
    %c0_i32 = arith.constant 0 : i32
    %c0_i32_0 = arith.constant 0 : i32
    %c0_i32_1 = arith.constant 0 : i32
    return %c0_i32, %c0_i32_0 : i32, i32
  }
  func.func @transform_2(%arg0: i32, %arg1: i32) -> (i32, i32) {
    %c0_i32 = arith.constant 0 : i32
    %c0_i32_0 = arith.constant 0 : i32
    %c0_i32_1 = arith.constant 0 : i32
    return %c0_i32, %c0_i32_0 : i32, i32
  }
  func.func @transform_3(%arg0: i32, %arg1: i32) -> (i32, i32, i32) {
    %c0_i32 = arith.constant 0 : i32
    %c0_i32_0 = arith.constant 0 : i32
    return %arg0, %c0_i32, %arg1 : i32, i32, i32
  }
}

module attributes {stable_mosaic.version = 11 : i64} {
  func.func @_spectral_mix_kernel(%arg0: i32, %arg1: memref<1x2x16x128xf32, #tpu.memory_space<vmem>>, %arg2: memref<2x16x16x128xf32, #tpu.memory_space<vmem>>, %arg3: memref<1x2x16x128xf32, #tpu.memory_space<vmem>>) attributes {dimension_semantics = [#tpu.dimension_semantics<parallel>], iteration_bounds = array<i64: 2>, scalar_prefetch = 0 : i64, scratch_operands = 0 : i64, tpu.core_type = #tpu.core_type<tc>, window_params = [{transform_indices = @transform_0, window_bounds = array<i64: 1, 2, 16, 128>}, {pipeline_mode = #tpu.pipeline_mode<synchronous>, transform_indices = @transform_1, window_bounds = array<i64: 2, 16, 16, 128>}, {transform_indices = @transform_2, window_bounds = array<i64: 1, 2, 16, 128>}]} {
    %c0 = arith.constant 0 : index
    %c0_0 = arith.constant 0 : index
    %c0_1 = arith.constant 0 : index
    %c0_2 = arith.constant 0 : index
    %0 = vector.load %arg1[%c0, %c0_0, %c0_1, %c0_2] : memref<1x2x16x128xf32, #tpu.memory_space<vmem>>, vector<1x1x1x128xf32>
    %1 = vector.shape_cast %0 : vector<1x1x1x128xf32> to vector<1x128xf32>
    %c0_3 = arith.constant 0 : index
    %c1 = arith.constant 1 : index
    %c0_4 = arith.constant 0 : index
    %c0_5 = arith.constant 0 : index
    %2 = vector.load %arg1[%c0_3, %c1, %c0_4, %c0_5] : memref<1x2x16x128xf32, #tpu.memory_space<vmem>>, vector<1x1x1x128xf32>
    %3 = vector.shape_cast %2 : vector<1x1x1x128xf32> to vector<1x128xf32>
    %c0_6 = arith.constant 0 : index
    %c0_7 = arith.constant 0 : index
    %c0_8 = arith.constant 0 : index
    %c0_9 = arith.constant 0 : index
    %4 = vector.load %arg2[%c0_6, %c0_7, %c0_8, %c0_9] : memref<2x16x16x128xf32, #tpu.memory_space<vmem>>, vector<1x1x16x128xf32>
    %5 = vector.shape_cast %4 : vector<1x1x16x128xf32> to vector<16x128xf32>
    %c1_10 = arith.constant 1 : index
    %c0_11 = arith.constant 0 : index
    %c0_12 = arith.constant 0 : index
    %c0_13 = arith.constant 0 : index
    %6 = vector.load %arg2[%c1_10, %c0_11, %c0_12, %c0_13] : memref<2x16x16x128xf32, #tpu.memory_space<vmem>>, vector<1x1x16x128xf32>
    %7 = vector.shape_cast %6 : vector<1x1x16x128xf32> to vector<16x128xf32>
    %8 = vector.broadcast %1 : vector<1x128xf32> to vector<16x128xf32>
    %9 = arith.mulf %8, %5 : vector<16x128xf32>
    %10 = vector.broadcast %3 : vector<1x128xf32> to vector<16x128xf32>
    %11 = arith.mulf %10, %7 : vector<16x128xf32>
    %12 = arith.subf %9, %11 : vector<16x128xf32>
    %13 = vector.broadcast %1 : vector<1x128xf32> to vector<16x128xf32>
    %14 = arith.mulf %13, %7 : vector<16x128xf32>
    %15 = vector.broadcast %3 : vector<1x128xf32> to vector<16x128xf32>
    %16 = arith.mulf %15, %5 : vector<16x128xf32>
    %17 = arith.addf %14, %16 : vector<16x128xf32>
    %c0_14 = arith.constant 0 : index
    %c0_15 = arith.constant 0 : index
    %c1_16 = arith.constant 1 : index
    %c0_17 = arith.constant 0 : index
    %18 = vector.load %arg1[%c0_14, %c0_15, %c1_16, %c0_17] : memref<1x2x16x128xf32, #tpu.memory_space<vmem>>, vector<1x1x1x128xf32>
    %19 = vector.shape_cast %18 : vector<1x1x1x128xf32> to vector<1x128xf32>
    %c0_18 = arith.constant 0 : index
    %c1_19 = arith.constant 1 : index
    %c1_20 = arith.constant 1 : index
    %c0_21 = arith.constant 0 : index
    %20 = vector.load %arg1[%c0_18, %c1_19, %c1_20, %c0_21] : memref<1x2x16x128xf32, #tpu.memory_space<vmem>>, vector<1x1x1x128xf32>
    %21 = vector.shape_cast %20 : vector<1x1x1x128xf32> to vector<1x128xf32>
    %c0_22 = arith.constant 0 : index
    %c1_23 = arith.constant 1 : index
    %c0_24 = arith.constant 0 : index
    %c0_25 = arith.constant 0 : index
    %22 = vector.load %arg2[%c0_22, %c1_23, %c0_24, %c0_25] : memref<2x16x16x128xf32, #tpu.memory_space<vmem>>, vector<1x1x16x128xf32>
    %23 = vector.shape_cast %22 : vector<1x1x16x128xf32> to vector<16x128xf32>
    %c1_26 = arith.constant 1 : index
    %c1_27 = arith.constant 1 : index
    %c0_28 = arith.constant 0 : index
    %c0_29 = arith.constant 0 : index
    %24 = vector.load %arg2[%c1_26, %c1_27, %c0_28, %c0_29] : memref<2x16x16x128xf32, #tpu.memory_space<vmem>>, vector<1x1x16x128xf32>
    %25 = vector.shape_cast %24 : vector<1x1x16x128xf32> to vector<16x128xf32>
    %26 = vector.broadcast %19 : vector<1x128xf32> to vector<16x128xf32>
    %27 = arith.mulf %26, %23 : vector<16x128xf32>
    %28 = vector.broadcast %21 : vector<1x128xf32> to vector<16x128xf32>
    %29 = arith.mulf %28, %25 : vector<16x128xf32>
    %30 = arith.subf %27, %29 : vector<16x128xf32>
    %31 = vector.broadcast %19 : vector<1x128xf32> to vector<16x128xf32>
    %32 = arith.mulf %31, %25 : vector<16x128xf32>
    %33 = vector.broadcast %21 : vector<1x128xf32> to vector<16x128xf32>
    %34 = arith.mulf %33, %23 : vector<16x128xf32>
    %35 = arith.addf %32, %34 : vector<16x128xf32>
    %36 = arith.addf %12, %30 : vector<16x128xf32>
    %37 = arith.addf %17, %35 : vector<16x128xf32>
    %c0_30 = arith.constant 0 : index
    %c0_31 = arith.constant 0 : index
    %c2 = arith.constant 2 : index
    %c0_32 = arith.constant 0 : index
    %38 = vector.load %arg1[%c0_30, %c0_31, %c2, %c0_32] : memref<1x2x16x128xf32, #tpu.memory_space<vmem>>, vector<1x1x1x128xf32>
    %39 = vector.shape_cast %38 : vector<1x1x1x128xf32> to vector<1x128xf32>
    %c0_33 = arith.constant 0 : index
    %c1_34 = arith.constant 1 : index
    %c2_35 = arith.constant 2 : index
    %c0_36 = arith.constant 0 : index
    %40 = vector.load %arg1[%c0_33, %c1_34, %c2_35, %c0_36] : memref<1x2x16x128xf32, #tpu.memory_space<vmem>>, vector<1x1x1x128xf32>
    %41 = vector.shape_cast %40 : vector<1x1x1x128xf32> to vector<1x128xf32>
    %c0_37 = arith.constant 0 : index
    %c2_38 = arith.constant 2 : index
    %c0_39 = arith.constant 0 : index
    %c0_40 = arith.constant 0 : index
    %42 = vector.load %arg2[%c0_37, %c2_38, %c0_39, %c0_40] : memref<2x16x16x128xf32, #tpu.memory_space<vmem>>, vector<1x1x16x128xf32>
    %43 = vector.shape_cast %42 : vector<1x1x16x128xf32> to vector<16x128xf32>
    %c1_41 = arith.constant 1 : index
    %c2_42 = arith.constant 2 : index
    %c0_43 = arith.constant 0 : index
    %c0_44 = arith.constant 0 : index
    %44 = vector.load %arg2[%c1_41, %c2_42, %c0_43, %c0_44] : memref<2x16x16x128xf32, #tpu.memory_space<vmem>>, vector<1x1x16x128xf32>
    %45 = vector.shape_cast %44 : vector<1x1x16x128xf32> to vector<16x128xf32>
    %46 = vector.broadcast %39 : vector<1x128xf32> to vector<16x128xf32>
    %47 = arith.mulf %46, %43 : vector<16x128xf32>
    %48 = vector.broadcast %41 : vector<1x128xf32> to vector<16x128xf32>
    %49 = arith.mulf %48, %45 : vector<16x128xf32>
    %50 = arith.subf %47, %49 : vector<16x128xf32>
    %51 = vector.broadcast %39 : vector<1x128xf32> to vector<16x128xf32>
    %52 = arith.mulf %51, %45 : vector<16x128xf32>
    %53 = vector.broadcast %41 : vector<1x128xf32> to vector<16x128xf32>
    %54 = arith.mulf %53, %43 : vector<16x128xf32>
    %55 = arith.addf %52, %54 : vector<16x128xf32>
    %56 = arith.addf %36, %50 : vector<16x128xf32>
    %57 = arith.addf %37, %55 : vector<16x128xf32>
    %c0_45 = arith.constant 0 : index
    %c0_46 = arith.constant 0 : index
    %c3 = arith.constant 3 : index
    %c0_47 = arith.constant 0 : index
    %58 = vector.load %arg1[%c0_45, %c0_46, %c3, %c0_47] : memref<1x2x16x128xf32, #tpu.memory_space<vmem>>, vector<1x1x1x128xf32>
    %59 = vector.shape_cast %58 : vector<1x1x1x128xf32> to vector<1x128xf32>
    %c0_48 = arith.constant 0 : index
    %c1_49 = arith.constant 1 : index
    %c3_50 = arith.constant 3 : index
    %c0_51 = arith.constant 0 : index
    %60 = vector.load %arg1[%c0_48, %c1_49, %c3_50, %c0_51] : memref<1x2x16x128xf32, #tpu.memory_space<vmem>>, vector<1x1x1x128xf32>
    %61 = vector.shape_cast %60 : vector<1x1x1x128xf32> to vector<1x128xf32>
    %c0_52 = arith.constant 0 : index
    %c3_53 = arith.constant 3 : index
    %c0_54 = arith.constant 0 : index
    %c0_55 = arith.constant 0 : index
    %62 = vector.load %arg2[%c0_52, %c3_53, %c0_54, %c0_55] : memref<2x16x16x128xf32, #tpu.memory_space<vmem>>, vector<1x1x16x128xf32>
    %63 = vector.shape_cast %62 : vector<1x1x16x128xf32> to vector<16x128xf32>
    %c1_56 = arith.constant 1 : index
    %c3_57 = arith.constant 3 : index
    %c0_58 = arith.constant 0 : index
    %c0_59 = arith.constant 0 : index
    %64 = vector.load %arg2[%c1_56, %c3_57, %c0_58, %c0_59] : memref<2x16x16x128xf32, #tpu.memory_space<vmem>>, vector<1x1x16x128xf32>
    %65 = vector.shape_cast %64 : vector<1x1x16x128xf32> to vector<16x128xf32>
    %66 = vector.broadcast %59 : vector<1x128xf32> to vector<16x128xf32>
    %67 = arith.mulf %66, %63 : vector<16x128xf32>
    %68 = vector.broadcast %61 : vector<1x128xf32> to vector<16x128xf32>
    %69 = arith.mulf %68, %65 : vector<16x128xf32>
    %70 = arith.subf %67, %69 : vector<16x128xf32>
    %71 = vector.broadcast %59 : vector<1x128xf32> to vector<16x128xf32>
    %72 = arith.mulf %71, %65 : vector<16x128xf32>
    %73 = vector.broadcast %61 : vector<1x128xf32> to vector<16x128xf32>
    %74 = arith.mulf %73, %63 : vector<16x128xf32>
    %75 = arith.addf %72, %74 : vector<16x128xf32>
    %76 = arith.addf %56, %70 : vector<16x128xf32>
    %77 = arith.addf %57, %75 : vector<16x128xf32>
    %c0_60 = arith.constant 0 : index
    %c0_61 = arith.constant 0 : index
    %c4 = arith.constant 4 : index
    %c0_62 = arith.constant 0 : index
    %78 = vector.load %arg1[%c0_60, %c0_61, %c4, %c0_62] : memref<1x2x16x128xf32, #tpu.memory_space<vmem>>, vector<1x1x1x128xf32>
    %79 = vector.shape_cast %78 : vector<1x1x1x128xf32> to vector<1x128xf32>
    %c0_63 = arith.constant 0 : index
    %c1_64 = arith.constant 1 : index
    %c4_65 = arith.constant 4 : index
    %c0_66 = arith.constant 0 : index
    %80 = vector.load %arg1[%c0_63, %c1_64, %c4_65, %c0_66] : memref<1x2x16x128xf32, #tpu.memory_space<vmem>>, vector<1x1x1x128xf32>
    %81 = vector.shape_cast %80 : vector<1x1x1x128xf32> to vector<1x128xf32>
    %c0_67 = arith.constant 0 : index
    %c4_68 = arith.constant 4 : index
    %c0_69 = arith.constant 0 : index
    %c0_70 = arith.constant 0 : index
    %82 = vector.load %arg2[%c0_67, %c4_68, %c0_69, %c0_70] : memref<2x16x16x128xf32, #tpu.memory_space<vmem>>, vector<1x1x16x128xf32>
    %83 = vector.shape_cast %82 : vector<1x1x16x128xf32> to vector<16x128xf32>
    %c1_71 = arith.constant 1 : index
    %c4_72 = arith.constant 4 : index
    %c0_73 = arith.constant 0 : index
    %c0_74 = arith.constant 0 : index
    %84 = vector.load %arg2[%c1_71, %c4_72, %c0_73, %c0_74] : memref<2x16x16x128xf32, #tpu.memory_space<vmem>>, vector<1x1x16x128xf32>
    %85 = vector.shape_cast %84 : vector<1x1x16x128xf32> to vector<16x128xf32>
    %86 = vector.broadcast %79 : vector<1x128xf32> to vector<16x128xf32>
    %87 = arith.mulf %86, %83 : vector<16x128xf32>
    %88 = vector.broadcast %81 : vector<1x128xf32> to vector<16x128xf32>
    %89 = arith.mulf %88, %85 : vector<16x128xf32>
    %90 = arith.subf %87, %89 : vector<16x128xf32>
    %91 = vector.broadcast %79 : vector<1x128xf32> to vector<16x128xf32>
    %92 = arith.mulf %91, %85 : vector<16x128xf32>
    %93 = vector.broadcast %81 : vector<1x128xf32> to vector<16x128xf32>
    %94 = arith.mulf %93, %83 : vector<16x128xf32>
    %95 = arith.addf %92, %94 : vector<16x128xf32>
    %96 = arith.addf %76, %90 : vector<16x128xf32>
    %97 = arith.addf %77, %95 : vector<16x128xf32>
    %c0_75 = arith.constant 0 : index
    %c0_76 = arith.constant 0 : index
    %c5 = arith.constant 5 : index
    %c0_77 = arith.constant 0 : index
    %98 = vector.load %arg1[%c0_75, %c0_76, %c5, %c0_77] : memref<1x2x16x128xf32, #tpu.memory_space<vmem>>, vector<1x1x1x128xf32>
    %99 = vector.shape_cast %98 : vector<1x1x1x128xf32> to vector<1x128xf32>
    %c0_78 = arith.constant 0 : index
    %c1_79 = arith.constant 1 : index
    %c5_80 = arith.constant 5 : index
    %c0_81 = arith.constant 0 : index
    %100 = vector.load %arg1[%c0_78, %c1_79, %c5_80, %c0_81] : memref<1x2x16x128xf32, #tpu.memory_space<vmem>>, vector<1x1x1x128xf32>
    %101 = vector.shape_cast %100 : vector<1x1x1x128xf32> to vector<1x128xf32>
    %c0_82 = arith.constant 0 : index
    %c5_83 = arith.constant 5 : index
    %c0_84 = arith.constant 0 : index
    %c0_85 = arith.constant 0 : index
    %102 = vector.load %arg2[%c0_82, %c5_83, %c0_84, %c0_85] : memref<2x16x16x128xf32, #tpu.memory_space<vmem>>, vector<1x1x16x128xf32>
    %103 = vector.shape_cast %102 : vector<1x1x16x128xf32> to vector<16x128xf32>
    %c1_86 = arith.constant 1 : index
    %c5_87 = arith.constant 5 : index
    %c0_88 = arith.constant 0 : index
    %c0_89 = arith.constant 0 : index
    %104 = vector.load %arg2[%c1_86, %c5_87, %c0_88, %c0_89] : memref<2x16x16x128xf32, #tpu.memory_space<vmem>>, vector<1x1x16x128xf32>
    %105 = vector.shape_cast %104 : vector<1x1x16x128xf32> to vector<16x128xf32>
    %106 = vector.broadcast %99 : vector<1x128xf32> to vector<16x128xf32>
    %107 = arith.mulf %106, %103 : vector<16x128xf32>
    %108 = vector.broadcast %101 : vector<1x128xf32> to vector<16x128xf32>
    %109 = arith.mulf %108, %105 : vector<16x128xf32>
    %110 = arith.subf %107, %109 : vector<16x128xf32>
    %111 = vector.broadcast %99 : vector<1x128xf32> to vector<16x128xf32>
    %112 = arith.mulf %111, %105 : vector<16x128xf32>
    %113 = vector.broadcast %101 : vector<1x128xf32> to vector<16x128xf32>
    %114 = arith.mulf %113, %103 : vector<16x128xf32>
    %115 = arith.addf %112, %114 : vector<16x128xf32>
    %116 = arith.addf %96, %110 : vector<16x128xf32>
    %117 = arith.addf %97, %115 : vector<16x128xf32>
    %c0_90 = arith.constant 0 : index
    %c0_91 = arith.constant 0 : index
    %c6 = arith.constant 6 : index
    %c0_92 = arith.constant 0 : index
    %118 = vector.load %arg1[%c0_90, %c0_91, %c6, %c0_92] : memref<1x2x16x128xf32, #tpu.memory_space<vmem>>, vector<1x1x1x128xf32>
    %119 = vector.shape_cast %118 : vector<1x1x1x128xf32> to vector<1x128xf32>
    %c0_93 = arith.constant 0 : index
    %c1_94 = arith.constant 1 : index
    %c6_95 = arith.constant 6 : index
    %c0_96 = arith.constant 0 : index
    %120 = vector.load %arg1[%c0_93, %c1_94, %c6_95, %c0_96] : memref<1x2x16x128xf32, #tpu.memory_space<vmem>>, vector<1x1x1x128xf32>
    %121 = vector.shape_cast %120 : vector<1x1x1x128xf32> to vector<1x128xf32>
    %c0_97 = arith.constant 0 : index
    %c6_98 = arith.constant 6 : index
    %c0_99 = arith.constant 0 : index
    %c0_100 = arith.constant 0 : index
    %122 = vector.load %arg2[%c0_97, %c6_98, %c0_99, %c0_100] : memref<2x16x16x128xf32, #tpu.memory_space<vmem>>, vector<1x1x16x128xf32>
    %123 = vector.shape_cast %122 : vector<1x1x16x128xf32> to vector<16x128xf32>
    %c1_101 = arith.constant 1 : index
    %c6_102 = arith.constant 6 : index
    %c0_103 = arith.constant 0 : index
    %c0_104 = arith.constant 0 : index
    %124 = vector.load %arg2[%c1_101, %c6_102, %c0_103, %c0_104] : memref<2x16x16x128xf32, #tpu.memory_space<vmem>>, vector<1x1x16x128xf32>
    %125 = vector.shape_cast %124 : vector<1x1x16x128xf32> to vector<16x128xf32>
    %126 = vector.broadcast %119 : vector<1x128xf32> to vector<16x128xf32>
    %127 = arith.mulf %126, %123 : vector<16x128xf32>
    %128 = vector.broadcast %121 : vector<1x128xf32> to vector<16x128xf32>
    %129 = arith.mulf %128, %125 : vector<16x128xf32>
    %130 = arith.subf %127, %129 : vector<16x128xf32>
    %131 = vector.broadcast %119 : vector<1x128xf32> to vector<16x128xf32>
    %132 = arith.mulf %131, %125 : vector<16x128xf32>
    %133 = vector.broadcast %121 : vector<1x128xf32> to vector<16x128xf32>
    %134 = arith.mulf %133, %123 : vector<16x128xf32>
    %135 = arith.addf %132, %134 : vector<16x128xf32>
    %136 = arith.addf %116, %130 : vector<16x128xf32>
    %137 = arith.addf %117, %135 : vector<16x128xf32>
    %c0_105 = arith.constant 0 : index
    %c0_106 = arith.constant 0 : index
    %c7 = arith.constant 7 : index
    %c0_107 = arith.constant 0 : index
    %138 = vector.load %arg1[%c0_105, %c0_106, %c7, %c0_107] : memref<1x2x16x128xf32, #tpu.memory_space<vmem>>, vector<1x1x1x128xf32>
    %139 = vector.shape_cast %138 : vector<1x1x1x128xf32> to vector<1x128xf32>
    %c0_108 = arith.constant 0 : index
    %c1_109 = arith.constant 1 : index
    %c7_110 = arith.constant 7 : index
    %c0_111 = arith.constant 0 : index
    %140 = vector.load %arg1[%c0_108, %c1_109, %c7_110, %c0_111] : memref<1x2x16x128xf32, #tpu.memory_space<vmem>>, vector<1x1x1x128xf32>
    %141 = vector.shape_cast %140 : vector<1x1x1x128xf32> to vector<1x128xf32>
    %c0_112 = arith.constant 0 : index
    %c7_113 = arith.constant 7 : index
    %c0_114 = arith.constant 0 : index
    %c0_115 = arith.constant 0 : index
    %142 = vector.load %arg2[%c0_112, %c7_113, %c0_114, %c0_115] : memref<2x16x16x128xf32, #tpu.memory_space<vmem>>, vector<1x1x16x128xf32>
    %143 = vector.shape_cast %142 : vector<1x1x16x128xf32> to vector<16x128xf32>
    %c1_116 = arith.constant 1 : index
    %c7_117 = arith.constant 7 : index
    %c0_118 = arith.constant 0 : index
    %c0_119 = arith.constant 0 : index
    %144 = vector.load %arg2[%c1_116, %c7_117, %c0_118, %c0_119] : memref<2x16x16x128xf32, #tpu.memory_space<vmem>>, vector<1x1x16x128xf32>
    %145 = vector.shape_cast %144 : vector<1x1x16x128xf32> to vector<16x128xf32>
    %146 = vector.broadcast %139 : vector<1x128xf32> to vector<16x128xf32>
    %147 = arith.mulf %146, %143 : vector<16x128xf32>
    %148 = vector.broadcast %141 : vector<1x128xf32> to vector<16x128xf32>
    %149 = arith.mulf %148, %145 : vector<16x128xf32>
    %150 = arith.subf %147, %149 : vector<16x128xf32>
    %151 = vector.broadcast %139 : vector<1x128xf32> to vector<16x128xf32>
    %152 = arith.mulf %151, %145 : vector<16x128xf32>
    %153 = vector.broadcast %141 : vector<1x128xf32> to vector<16x128xf32>
    %154 = arith.mulf %153, %143 : vector<16x128xf32>
    %155 = arith.addf %152, %154 : vector<16x128xf32>
    %156 = arith.addf %136, %150 : vector<16x128xf32>
    %157 = arith.addf %137, %155 : vector<16x128xf32>
    %c0_120 = arith.constant 0 : index
    %c0_121 = arith.constant 0 : index
    %c8 = arith.constant 8 : index
    %c0_122 = arith.constant 0 : index
    %158 = vector.load %arg1[%c0_120, %c0_121, %c8, %c0_122] : memref<1x2x16x128xf32, #tpu.memory_space<vmem>>, vector<1x1x1x128xf32>
    %159 = vector.shape_cast %158 : vector<1x1x1x128xf32> to vector<1x128xf32>
    %c0_123 = arith.constant 0 : index
    %c1_124 = arith.constant 1 : index
    %c8_125 = arith.constant 8 : index
    %c0_126 = arith.constant 0 : index
    %160 = vector.load %arg1[%c0_123, %c1_124, %c8_125, %c0_126] : memref<1x2x16x128xf32, #tpu.memory_space<vmem>>, vector<1x1x1x128xf32>
    %161 = vector.shape_cast %160 : vector<1x1x1x128xf32> to vector<1x128xf32>
    %c0_127 = arith.constant 0 : index
    %c8_128 = arith.constant 8 : index
    %c0_129 = arith.constant 0 : index
    %c0_130 = arith.constant 0 : index
    %162 = vector.load %arg2[%c0_127, %c8_128, %c0_129, %c0_130] : memref<2x16x16x128xf32, #tpu.memory_space<vmem>>, vector<1x1x16x128xf32>
    %163 = vector.shape_cast %162 : vector<1x1x16x128xf32> to vector<16x128xf32>
    %c1_131 = arith.constant 1 : index
    %c8_132 = arith.constant 8 : index
    %c0_133 = arith.constant 0 : index
    %c0_134 = arith.constant 0 : index
    %164 = vector.load %arg2[%c1_131, %c8_132, %c0_133, %c0_134] : memref<2x16x16x128xf32, #tpu.memory_space<vmem>>, vector<1x1x16x128xf32>
    %165 = vector.shape_cast %164 : vector<1x1x16x128xf32> to vector<16x128xf32>
    %166 = vector.broadcast %159 : vector<1x128xf32> to vector<16x128xf32>
    %167 = arith.mulf %166, %163 : vector<16x128xf32>
    %168 = vector.broadcast %161 : vector<1x128xf32> to vector<16x128xf32>
    %169 = arith.mulf %168, %165 : vector<16x128xf32>
    %170 = arith.subf %167, %169 : vector<16x128xf32>
    %171 = vector.broadcast %159 : vector<1x128xf32> to vector<16x128xf32>
    %172 = arith.mulf %171, %165 : vector<16x128xf32>
    %173 = vector.broadcast %161 : vector<1x128xf32> to vector<16x128xf32>
    %174 = arith.mulf %173, %163 : vector<16x128xf32>
    %175 = arith.addf %172, %174 : vector<16x128xf32>
    %176 = arith.addf %156, %170 : vector<16x128xf32>
    %177 = arith.addf %157, %175 : vector<16x128xf32>
    %c0_135 = arith.constant 0 : index
    %c0_136 = arith.constant 0 : index
    %c9 = arith.constant 9 : index
    %c0_137 = arith.constant 0 : index
    %178 = vector.load %arg1[%c0_135, %c0_136, %c9, %c0_137] : memref<1x2x16x128xf32, #tpu.memory_space<vmem>>, vector<1x1x1x128xf32>
    %179 = vector.shape_cast %178 : vector<1x1x1x128xf32> to vector<1x128xf32>
    %c0_138 = arith.constant 0 : index
    %c1_139 = arith.constant 1 : index
    %c9_140 = arith.constant 9 : index
    %c0_141 = arith.constant 0 : index
    %180 = vector.load %arg1[%c0_138, %c1_139, %c9_140, %c0_141] : memref<1x2x16x128xf32, #tpu.memory_space<vmem>>, vector<1x1x1x128xf32>
    %181 = vector.shape_cast %180 : vector<1x1x1x128xf32> to vector<1x128xf32>
    %c0_142 = arith.constant 0 : index
    %c9_143 = arith.constant 9 : index
    %c0_144 = arith.constant 0 : index
    %c0_145 = arith.constant 0 : index
    %182 = vector.load %arg2[%c0_142, %c9_143, %c0_144, %c0_145] : memref<2x16x16x128xf32, #tpu.memory_space<vmem>>, vector<1x1x16x128xf32>
    %183 = vector.shape_cast %182 : vector<1x1x16x128xf32> to vector<16x128xf32>
    %c1_146 = arith.constant 1 : index
    %c9_147 = arith.constant 9 : index
    %c0_148 = arith.constant 0 : index
    %c0_149 = arith.constant 0 : index
    %184 = vector.load %arg2[%c1_146, %c9_147, %c0_148, %c0_149] : memref<2x16x16x128xf32, #tpu.memory_space<vmem>>, vector<1x1x16x128xf32>
    %185 = vector.shape_cast %184 : vector<1x1x16x128xf32> to vector<16x128xf32>
    %186 = vector.broadcast %179 : vector<1x128xf32> to vector<16x128xf32>
    %187 = arith.mulf %186, %183 : vector<16x128xf32>
    %188 = vector.broadcast %181 : vector<1x128xf32> to vector<16x128xf32>
    %189 = arith.mulf %188, %185 : vector<16x128xf32>
    %190 = arith.subf %187, %189 : vector<16x128xf32>
    %191 = vector.broadcast %179 : vector<1x128xf32> to vector<16x128xf32>
    %192 = arith.mulf %191, %185 : vector<16x128xf32>
    %193 = vector.broadcast %181 : vector<1x128xf32> to vector<16x128xf32>
    %194 = arith.mulf %193, %183 : vector<16x128xf32>
    %195 = arith.addf %192, %194 : vector<16x128xf32>
    %196 = arith.addf %176, %190 : vector<16x128xf32>
    %197 = arith.addf %177, %195 : vector<16x128xf32>
    %c0_150 = arith.constant 0 : index
    %c0_151 = arith.constant 0 : index
    %c10 = arith.constant 10 : index
    %c0_152 = arith.constant 0 : index
    %198 = vector.load %arg1[%c0_150, %c0_151, %c10, %c0_152] : memref<1x2x16x128xf32, #tpu.memory_space<vmem>>, vector<1x1x1x128xf32>
    %199 = vector.shape_cast %198 : vector<1x1x1x128xf32> to vector<1x128xf32>
    %c0_153 = arith.constant 0 : index
    %c1_154 = arith.constant 1 : index
    %c10_155 = arith.constant 10 : index
    %c0_156 = arith.constant 0 : index
    %200 = vector.load %arg1[%c0_153, %c1_154, %c10_155, %c0_156] : memref<1x2x16x128xf32, #tpu.memory_space<vmem>>, vector<1x1x1x128xf32>
    %201 = vector.shape_cast %200 : vector<1x1x1x128xf32> to vector<1x128xf32>
    %c0_157 = arith.constant 0 : index
    %c10_158 = arith.constant 10 : index
    %c0_159 = arith.constant 0 : index
    %c0_160 = arith.constant 0 : index
    %202 = vector.load %arg2[%c0_157, %c10_158, %c0_159, %c0_160] : memref<2x16x16x128xf32, #tpu.memory_space<vmem>>, vector<1x1x16x128xf32>
    %203 = vector.shape_cast %202 : vector<1x1x16x128xf32> to vector<16x128xf32>
    %c1_161 = arith.constant 1 : index
    %c10_162 = arith.constant 10 : index
    %c0_163 = arith.constant 0 : index
    %c0_164 = arith.constant 0 : index
    %204 = vector.load %arg2[%c1_161, %c10_162, %c0_163, %c0_164] : memref<2x16x16x128xf32, #tpu.memory_space<vmem>>, vector<1x1x16x128xf32>
    %205 = vector.shape_cast %204 : vector<1x1x16x128xf32> to vector<16x128xf32>
    %206 = vector.broadcast %199 : vector<1x128xf32> to vector<16x128xf32>
    %207 = arith.mulf %206, %203 : vector<16x128xf32>
    %208 = vector.broadcast %201 : vector<1x128xf32> to vector<16x128xf32>
    %209 = arith.mulf %208, %205 : vector<16x128xf32>
    %210 = arith.subf %207, %209 : vector<16x128xf32>
    %211 = vector.broadcast %199 : vector<1x128xf32> to vector<16x128xf32>
    %212 = arith.mulf %211, %205 : vector<16x128xf32>
    %213 = vector.broadcast %201 : vector<1x128xf32> to vector<16x128xf32>
    %214 = arith.mulf %213, %203 : vector<16x128xf32>
    %215 = arith.addf %212, %214 : vector<16x128xf32>
    %216 = arith.addf %196, %210 : vector<16x128xf32>
    %217 = arith.addf %197, %215 : vector<16x128xf32>
    %c0_165 = arith.constant 0 : index
    %c0_166 = arith.constant 0 : index
    %c11 = arith.constant 11 : index
    %c0_167 = arith.constant 0 : index
    %218 = vector.load %arg1[%c0_165, %c0_166, %c11, %c0_167] : memref<1x2x16x128xf32, #tpu.memory_space<vmem>>, vector<1x1x1x128xf32>
    %219 = vector.shape_cast %218 : vector<1x1x1x128xf32> to vector<1x128xf32>
    %c0_168 = arith.constant 0 : index
    %c1_169 = arith.constant 1 : index
    %c11_170 = arith.constant 11 : index
    %c0_171 = arith.constant 0 : index
    %220 = vector.load %arg1[%c0_168, %c1_169, %c11_170, %c0_171] : memref<1x2x16x128xf32, #tpu.memory_space<vmem>>, vector<1x1x1x128xf32>
    %221 = vector.shape_cast %220 : vector<1x1x1x128xf32> to vector<1x128xf32>
    %c0_172 = arith.constant 0 : index
    %c11_173 = arith.constant 11 : index
    %c0_174 = arith.constant 0 : index
    %c0_175 = arith.constant 0 : index
    %222 = vector.load %arg2[%c0_172, %c11_173, %c0_174, %c0_175] : memref<2x16x16x128xf32, #tpu.memory_space<vmem>>, vector<1x1x16x128xf32>
    %223 = vector.shape_cast %222 : vector<1x1x16x128xf32> to vector<16x128xf32>
    %c1_176 = arith.constant 1 : index
    %c11_177 = arith.constant 11 : index
    %c0_178 = arith.constant 0 : index
    %c0_179 = arith.constant 0 : index
    %224 = vector.load %arg2[%c1_176, %c11_177, %c0_178, %c0_179] : memref<2x16x16x128xf32, #tpu.memory_space<vmem>>, vector<1x1x16x128xf32>
    %225 = vector.shape_cast %224 : vector<1x1x16x128xf32> to vector<16x128xf32>
    %226 = vector.broadcast %219 : vector<1x128xf32> to vector<16x128xf32>
    %227 = arith.mulf %226, %223 : vector<16x128xf32>
    %228 = vector.broadcast %221 : vector<1x128xf32> to vector<16x128xf32>
    %229 = arith.mulf %228, %225 : vector<16x128xf32>
    %230 = arith.subf %227, %229 : vector<16x128xf32>
    %231 = vector.broadcast %219 : vector<1x128xf32> to vector<16x128xf32>
    %232 = arith.mulf %231, %225 : vector<16x128xf32>
    %233 = vector.broadcast %221 : vector<1x128xf32> to vector<16x128xf32>
    %234 = arith.mulf %233, %223 : vector<16x128xf32>
    %235 = arith.addf %232, %234 : vector<16x128xf32>
    %236 = arith.addf %216, %230 : vector<16x128xf32>
    %237 = arith.addf %217, %235 : vector<16x128xf32>
    %c0_180 = arith.constant 0 : index
    %c0_181 = arith.constant 0 : index
    %c12 = arith.constant 12 : index
    %c0_182 = arith.constant 0 : index
    %238 = vector.load %arg1[%c0_180, %c0_181, %c12, %c0_182] : memref<1x2x16x128xf32, #tpu.memory_space<vmem>>, vector<1x1x1x128xf32>
    %239 = vector.shape_cast %238 : vector<1x1x1x128xf32> to vector<1x128xf32>
    %c0_183 = arith.constant 0 : index
    %c1_184 = arith.constant 1 : index
    %c12_185 = arith.constant 12 : index
    %c0_186 = arith.constant 0 : index
    %240 = vector.load %arg1[%c0_183, %c1_184, %c12_185, %c0_186] : memref<1x2x16x128xf32, #tpu.memory_space<vmem>>, vector<1x1x1x128xf32>
    %241 = vector.shape_cast %240 : vector<1x1x1x128xf32> to vector<1x128xf32>
    %c0_187 = arith.constant 0 : index
    %c12_188 = arith.constant 12 : index
    %c0_189 = arith.constant 0 : index
    %c0_190 = arith.constant 0 : index
    %242 = vector.load %arg2[%c0_187, %c12_188, %c0_189, %c0_190] : memref<2x16x16x128xf32, #tpu.memory_space<vmem>>, vector<1x1x16x128xf32>
    %243 = vector.shape_cast %242 : vector<1x1x16x128xf32> to vector<16x128xf32>
    %c1_191 = arith.constant 1 : index
    %c12_192 = arith.constant 12 : index
    %c0_193 = arith.constant 0 : index
    %c0_194 = arith.constant 0 : index
    %244 = vector.load %arg2[%c1_191, %c12_192, %c0_193, %c0_194] : memref<2x16x16x128xf32, #tpu.memory_space<vmem>>, vector<1x1x16x128xf32>
    %245 = vector.shape_cast %244 : vector<1x1x16x128xf32> to vector<16x128xf32>
    %246 = vector.broadcast %239 : vector<1x128xf32> to vector<16x128xf32>
    %247 = arith.mulf %246, %243 : vector<16x128xf32>
    %248 = vector.broadcast %241 : vector<1x128xf32> to vector<16x128xf32>
    %249 = arith.mulf %248, %245 : vector<16x128xf32>
    %250 = arith.subf %247, %249 : vector<16x128xf32>
    %251 = vector.broadcast %239 : vector<1x128xf32> to vector<16x128xf32>
    %252 = arith.mulf %251, %245 : vector<16x128xf32>
    %253 = vector.broadcast %241 : vector<1x128xf32> to vector<16x128xf32>
    %254 = arith.mulf %253, %243 : vector<16x128xf32>
    %255 = arith.addf %252, %254 : vector<16x128xf32>
    %256 = arith.addf %236, %250 : vector<16x128xf32>
    %257 = arith.addf %237, %255 : vector<16x128xf32>
    %c0_195 = arith.constant 0 : index
    %c0_196 = arith.constant 0 : index
    %c13 = arith.constant 13 : index
    %c0_197 = arith.constant 0 : index
    %258 = vector.load %arg1[%c0_195, %c0_196, %c13, %c0_197] : memref<1x2x16x128xf32, #tpu.memory_space<vmem>>, vector<1x1x1x128xf32>
    %259 = vector.shape_cast %258 : vector<1x1x1x128xf32> to vector<1x128xf32>
    %c0_198 = arith.constant 0 : index
    %c1_199 = arith.constant 1 : index
    %c13_200 = arith.constant 13 : index
    %c0_201 = arith.constant 0 : index
    %260 = vector.load %arg1[%c0_198, %c1_199, %c13_200, %c0_201] : memref<1x2x16x128xf32, #tpu.memory_space<vmem>>, vector<1x1x1x128xf32>
    %261 = vector.shape_cast %260 : vector<1x1x1x128xf32> to vector<1x128xf32>
    %c0_202 = arith.constant 0 : index
    %c13_203 = arith.constant 13 : index
    %c0_204 = arith.constant 0 : index
    %c0_205 = arith.constant 0 : index
    %262 = vector.load %arg2[%c0_202, %c13_203, %c0_204, %c0_205] : memref<2x16x16x128xf32, #tpu.memory_space<vmem>>, vector<1x1x16x128xf32>
    %263 = vector.shape_cast %262 : vector<1x1x16x128xf32> to vector<16x128xf32>
    %c1_206 = arith.constant 1 : index
    %c13_207 = arith.constant 13 : index
    %c0_208 = arith.constant 0 : index
    %c0_209 = arith.constant 0 : index
    %264 = vector.load %arg2[%c1_206, %c13_207, %c0_208, %c0_209] : memref<2x16x16x128xf32, #tpu.memory_space<vmem>>, vector<1x1x16x128xf32>
    %265 = vector.shape_cast %264 : vector<1x1x16x128xf32> to vector<16x128xf32>
    %266 = vector.broadcast %259 : vector<1x128xf32> to vector<16x128xf32>
    %267 = arith.mulf %266, %263 : vector<16x128xf32>
    %268 = vector.broadcast %261 : vector<1x128xf32> to vector<16x128xf32>
    %269 = arith.mulf %268, %265 : vector<16x128xf32>
    %270 = arith.subf %267, %269 : vector<16x128xf32>
    %271 = vector.broadcast %259 : vector<1x128xf32> to vector<16x128xf32>
    %272 = arith.mulf %271, %265 : vector<16x128xf32>
    %273 = vector.broadcast %261 : vector<1x128xf32> to vector<16x128xf32>
    %274 = arith.mulf %273, %263 : vector<16x128xf32>
    %275 = arith.addf %272, %274 : vector<16x128xf32>
    %276 = arith.addf %256, %270 : vector<16x128xf32>
    %277 = arith.addf %257, %275 : vector<16x128xf32>
    %c0_210 = arith.constant 0 : index
    %c0_211 = arith.constant 0 : index
    %c14 = arith.constant 14 : index
    %c0_212 = arith.constant 0 : index
    %278 = vector.load %arg1[%c0_210, %c0_211, %c14, %c0_212] : memref<1x2x16x128xf32, #tpu.memory_space<vmem>>, vector<1x1x1x128xf32>
    %279 = vector.shape_cast %278 : vector<1x1x1x128xf32> to vector<1x128xf32>
    %c0_213 = arith.constant 0 : index
    %c1_214 = arith.constant 1 : index
    %c14_215 = arith.constant 14 : index
    %c0_216 = arith.constant 0 : index
    %280 = vector.load %arg1[%c0_213, %c1_214, %c14_215, %c0_216] : memref<1x2x16x128xf32, #tpu.memory_space<vmem>>, vector<1x1x1x128xf32>
    %281 = vector.shape_cast %280 : vector<1x1x1x128xf32> to vector<1x128xf32>
    %c0_217 = arith.constant 0 : index
    %c14_218 = arith.constant 14 : index
    %c0_219 = arith.constant 0 : index
    %c0_220 = arith.constant 0 : index
    %282 = vector.load %arg2[%c0_217, %c14_218, %c0_219, %c0_220] : memref<2x16x16x128xf32, #tpu.memory_space<vmem>>, vector<1x1x16x128xf32>
    %283 = vector.shape_cast %282 : vector<1x1x16x128xf32> to vector<16x128xf32>
    %c1_221 = arith.constant 1 : index
    %c14_222 = arith.constant 14 : index
    %c0_223 = arith.constant 0 : index
    %c0_224 = arith.constant 0 : index
    %284 = vector.load %arg2[%c1_221, %c14_222, %c0_223, %c0_224] : memref<2x16x16x128xf32, #tpu.memory_space<vmem>>, vector<1x1x16x128xf32>
    %285 = vector.shape_cast %284 : vector<1x1x16x128xf32> to vector<16x128xf32>
    %286 = vector.broadcast %279 : vector<1x128xf32> to vector<16x128xf32>
    %287 = arith.mulf %286, %283 : vector<16x128xf32>
    %288 = vector.broadcast %281 : vector<1x128xf32> to vector<16x128xf32>
    %289 = arith.mulf %288, %285 : vector<16x128xf32>
    %290 = arith.subf %287, %289 : vector<16x128xf32>
    %291 = vector.broadcast %279 : vector<1x128xf32> to vector<16x128xf32>
    %292 = arith.mulf %291, %285 : vector<16x128xf32>
    %293 = vector.broadcast %281 : vector<1x128xf32> to vector<16x128xf32>
    %294 = arith.mulf %293, %283 : vector<16x128xf32>
    %295 = arith.addf %292, %294 : vector<16x128xf32>
    %296 = arith.addf %276, %290 : vector<16x128xf32>
    %297 = arith.addf %277, %295 : vector<16x128xf32>
    %c0_225 = arith.constant 0 : index
    %c0_226 = arith.constant 0 : index
    %c15 = arith.constant 15 : index
    %c0_227 = arith.constant 0 : index
    %298 = vector.load %arg1[%c0_225, %c0_226, %c15, %c0_227] : memref<1x2x16x128xf32, #tpu.memory_space<vmem>>, vector<1x1x1x128xf32>
    %299 = vector.shape_cast %298 : vector<1x1x1x128xf32> to vector<1x128xf32>
    %c0_228 = arith.constant 0 : index
    %c1_229 = arith.constant 1 : index
    %c15_230 = arith.constant 15 : index
    %c0_231 = arith.constant 0 : index
    %300 = vector.load %arg1[%c0_228, %c1_229, %c15_230, %c0_231] : memref<1x2x16x128xf32, #tpu.memory_space<vmem>>, vector<1x1x1x128xf32>
    %301 = vector.shape_cast %300 : vector<1x1x1x128xf32> to vector<1x128xf32>
    %c0_232 = arith.constant 0 : index
    %c15_233 = arith.constant 15 : index
    %c0_234 = arith.constant 0 : index
    %c0_235 = arith.constant 0 : index
    %302 = vector.load %arg2[%c0_232, %c15_233, %c0_234, %c0_235] : memref<2x16x16x128xf32, #tpu.memory_space<vmem>>, vector<1x1x16x128xf32>
    %303 = vector.shape_cast %302 : vector<1x1x16x128xf32> to vector<16x128xf32>
    %c1_236 = arith.constant 1 : index
    %c15_237 = arith.constant 15 : index
    %c0_238 = arith.constant 0 : index
    %c0_239 = arith.constant 0 : index
    %304 = vector.load %arg2[%c1_236, %c15_237, %c0_238, %c0_239] : memref<2x16x16x128xf32, #tpu.memory_space<vmem>>, vector<1x1x16x128xf32>
    %305 = vector.shape_cast %304 : vector<1x1x16x128xf32> to vector<16x128xf32>
    %306 = vector.broadcast %299 : vector<1x128xf32> to vector<16x128xf32>
    %307 = arith.mulf %306, %303 : vector<16x128xf32>
    %308 = vector.broadcast %301 : vector<1x128xf32> to vector<16x128xf32>
    %309 = arith.mulf %308, %305 : vector<16x128xf32>
    %310 = arith.subf %307, %309 : vector<16x128xf32>
    %311 = vector.broadcast %299 : vector<1x128xf32> to vector<16x128xf32>
    %312 = arith.mulf %311, %305 : vector<16x128xf32>
    %313 = vector.broadcast %301 : vector<1x128xf32> to vector<16x128xf32>
    %314 = arith.mulf %313, %303 : vector<16x128xf32>
    %315 = arith.addf %312, %314 : vector<16x128xf32>
    %316 = arith.addf %296, %310 : vector<16x128xf32>
    %317 = arith.addf %297, %315 : vector<16x128xf32>
    %c0_240 = arith.constant 0 : index
    %c0_241 = arith.constant 0 : index
    %c0_242 = arith.constant 0 : index
    %c0_243 = arith.constant 0 : index
    %318 = vector.load %arg3[%c0_240, %c0_241, %c0_242, %c0_243] : memref<1x2x16x128xf32, #tpu.memory_space<vmem>>, vector<1x1x16x128xf32>
    %319 = vector.shape_cast %318 : vector<1x1x16x128xf32> to vector<16x128xf32>
    %320 = vector.shape_cast %316 : vector<16x128xf32> to vector<1x1x16x128xf32>
    tpu.vector_store %arg3[%c0_240, %c0_241, %c0_242, %c0_243], %320 {strides = array<i32>} : memref<1x2x16x128xf32, #tpu.memory_space<vmem>>, vector<1x1x16x128xf32>,
    %c0_244 = arith.constant 0 : index
    %c1_245 = arith.constant 1 : index
    %c0_246 = arith.constant 0 : index
    %c0_247 = arith.constant 0 : index
    %321 = vector.load %arg3[%c0_244, %c1_245, %c0_246, %c0_247] : memref<1x2x16x128xf32, #tpu.memory_space<vmem>>, vector<1x1x16x128xf32>
    %322 = vector.shape_cast %321 : vector<1x1x16x128xf32> to vector<16x128xf32>
    %323 = vector.shape_cast %317 : vector<16x128xf32> to vector<1x1x16x128xf32>
    tpu.vector_store %arg3[%c0_244, %c1_245, %c0_246, %c0_247], %323 {strides = array<i32>} : memref<1x2x16x128xf32, #tpu.memory_space<vmem>>, vector<1x1x16x128xf32>,
    return
  }
  func.func @transform_0(%arg0: i32) -> (i32, i32, i32, i32) {
    %c0_i32 = arith.constant 0 : i32
    %c0_i32_0 = arith.constant 0 : i32
    %c0_i32_1 = arith.constant 0 : i32
    %c0_i32_2 = arith.constant 0 : i32
    return %arg0, %c0_i32, %c0_i32_0, %c0_i32_1 : i32, i32, i32, i32
  }
  func.func @transform_1(%arg0: i32) -> (i32, i32, i32, i32) {
    %c0_i32 = arith.constant 0 : i32
    %c0_i32_0 = arith.constant 0 : i32
    %c0_i32_1 = arith.constant 0 : i32
    %c0_i32_2 = arith.constant 0 : i32
    %c0_i32_3 = arith.constant 0 : i32
    return %c0_i32, %c0_i32_0, %c0_i32_1, %c0_i32_2 : i32, i32, i32, i32
  }
  func.func @transform_2(%arg0: i32) -> (i32, i32, i32, i32) {
    %c0_i32 = arith.constant 0 : i32
    %c0_i32_0 = arith.constant 0 : i32
    %c0_i32_1 = arith.constant 0 : i32
    %c0_i32_2 = arith.constant 0 : i32
    return %arg0, %c0_i32, %c0_i32_0, %c0_i32_1 : i32, i32, i32, i32
  }
}

module attributes {stable_mosaic.version = 11 : i64} {
  func.func @_pointwise_kernel(%arg0: i32, %arg1: i32, %arg2: memref<1x16x640xf32, #tpu.memory_space<vmem>>, %arg3: memref<16x16xf32, #tpu.memory_space<vmem>>, %arg4: memref<16x1xf32, #tpu.memory_space<vmem>>, %arg5: memref<1x16x640xf32, #tpu.memory_space<vmem>>, %arg6: memref<1x16x640xf32, #tpu.memory_space<vmem>>) attributes {dimension_semantics = [#tpu.dimension_semantics<parallel>, #tpu.dimension_semantics<parallel>], iteration_bounds = array<i64: 2, 1>, scalar_prefetch = 0 : i64, scratch_operands = 0 : i64, tpu.core_type = #tpu.core_type<tc>, window_params = [{transform_indices = @transform_0, window_bounds = array<i64: 1, 16, 640>}, {pipeline_mode = #tpu.pipeline_mode<synchronous>, transform_indices = @transform_1, window_bounds = array<i64: 16, 16>}, {pipeline_mode = #tpu.pipeline_mode<synchronous>, transform_indices = @transform_2, window_bounds = array<i64: 16, 1>}, {transform_indices = @transform_3, window_bounds = array<i64: 1, 16, 640>}, {transform_indices = @transform_4, window_bounds = array<i64: 1, 16, 640>}]} {
    %c0 = arith.constant 0 : index
    %c0_0 = arith.constant 0 : index
    %c0_1 = arith.constant 0 : index
    %0 = vector.load %arg2[%c0, %c0_0, %c0_1] : memref<1x16x640xf32, #tpu.memory_space<vmem>>, vector<1x16x640xf32>
    %1 = vector.shape_cast %0 : vector<1x16x640xf32> to vector<16x640xf32>
    %2 = arith.truncf %1 : vector<16x640xf32> to vector<16x640xbf16>
    %c0_2 = arith.constant 0 : index
    %c0_3 = arith.constant 0 : index
    %3 = vector.load %arg3[%c0_2, %c0_3] : memref<16x16xf32, #tpu.memory_space<vmem>>, vector<16x16xf32>
    %4 = arith.truncf %3 : vector<16x16xf32> to vector<16x16xbf16>
    %cst = arith.constant dense<0.000000e+00> : vector<16x640xf32>
    %5 = tpu.matmul %4, %2, %cst {dimension_numbers = #tpu.dot_dimension_numbers<[1], [0], [0], [1], [0, 0, 1, 1], [], []>} : vector<16x16xbf16>, vector<16x640xbf16>, vector<16x640xf32> -> vector<16x640xf32>
    %c0_4 = arith.constant 0 : index
    %c0_5 = arith.constant 0 : index
    %6 = vector.load %arg4[%c0_4, %c0_5] : memref<16x1xf32, #tpu.memory_space<vmem>>, vector<16x1xf32>
    %7 = vector.broadcast %6 : vector<16x1xf32> to vector<16x640xf32>
    %8 = arith.addf %5, %7 : vector<16x640xf32>
    %c0_6 = arith.constant 0 : index
    %c0_7 = arith.constant 0 : index
    %c0_8 = arith.constant 0 : index
    %9 = vector.load %arg5[%c0_6, %c0_7, %c0_8] : memref<1x16x640xf32, #tpu.memory_space<vmem>>, vector<1x16x640xf32>
    %10 = vector.shape_cast %9 : vector<1x16x640xf32> to vector<16x640xf32>
    %11 = arith.addf %8, %10 : vector<16x640xf32>
    %cst_9 = arith.constant 5.000000e-01 : f32
    %12 = vector.broadcast %cst_9 : f32 to vector<16x640xf32>
    %13 = arith.mulf %12, %11 : vector<16x640xf32>
    %cst_10 = arith.constant 0.707106769 : f32
    %14 = vector.broadcast %cst_10 : f32 to vector<16x640xf32>
    %15 = arith.mulf %11, %14 : vector<16x640xf32>
    %16 = math.absf %15 : vector<16x640xf32>
    %cst_11 = arith.constant 5.000000e-01 : f32
    %17 = vector.broadcast %cst_11 : f32 to vector<16x640xf32>
    %18 = arith.mulf %17, %16 : vector<16x640xf32>
    %cst_12 = arith.constant 1.000000e+00 : f32
    %19 = vector.broadcast %cst_12 : f32 to vector<16x640xf32>
    %20 = arith.addf %19, %18 : vector<16x640xf32>
    %21 = tpu.reciprocal %20 {approx = true} : vector<16x640xf32> -> vector<16x640xf32>
    %22 = arith.mulf %20, %21 : vector<16x640xf32>
    %cst_13 = arith.constant 2.000000e+00 : f32
    %23 = vector.broadcast %cst_13 : f32 to vector<16x640xf32>
    %24 = arith.subf %23, %22 : vector<16x640xf32>
    %25 = arith.mulf %21, %24 : vector<16x640xf32>
    %26 = arith.mulf %25, %25 : vector<16x640xf32>
    %27 = arith.mulf %26, %26 : vector<16x640xf32>
    %28 = arith.mulf %27, %27 : vector<16x640xf32>
    %cst_14 = arith.constant 1.00002372 : f32
    %29 = vector.broadcast %cst_14 : f32 to vector<16x640xf32>
    %30 = arith.mulf %29, %25 : vector<16x640xf32>
    %cst_15 = arith.constant -1.26551223 : f32
    %31 = vector.broadcast %cst_15 : f32 to vector<16x640xf32>
    %32 = arith.addf %31, %30 : vector<16x640xf32>
    %cst_16 = arith.constant 0.0967841818 : f32
    %33 = vector.broadcast %cst_16 : f32 to vector<16x640xf32>
    %34 = arith.mulf %33, %25 : vector<16x640xf32>
    %cst_17 = arith.constant 0.374091953 : f32
    %35 = vector.broadcast %cst_17 : f32 to vector<16x640xf32>
    %36 = arith.addf %35, %34 : vector<16x640xf32>
    %cst_18 = arith.constant 0.278868079 : f32
    %37 = vector.broadcast %cst_18 : f32 to vector<16x640xf32>
    %38 = arith.mulf %37, %25 : vector<16x640xf32>
    %cst_19 = arith.constant -0.186288059 : f32
    %39 = vector.broadcast %cst_19 : f32 to vector<16x640xf32>
    %40 = arith.addf %39, %38 : vector<16x640xf32>
    %cst_20 = arith.constant 1.48851585 : f32
    %41 = vector.broadcast %cst_20 : f32 to vector<16x640xf32>
    %42 = arith.mulf %41, %25 : vector<16x640xf32>
    %cst_21 = arith.constant -1.13520396 : f32
    %43 = vector.broadcast %cst_21 : f32 to vector<16x640xf32>
    %44 = arith.addf %43, %42 : vector<16x640xf32>
    %cst_22 = arith.constant 0.170872763 : f32
    %45 = vector.broadcast %cst_22 : f32 to vector<16x640xf32>
    %46 = arith.mulf %45, %25 : vector<16x640xf32>
    %cst_23 = arith.constant -0.822152256 : f32
    %47 = vector.broadcast %cst_23 : f32 to vector<16x640xf32>
    %48 = arith.addf %47, %46 : vector<16x640xf32>
    %49 = arith.mulf %36, %26 : vector<16x640xf32>
    %50 = arith.addf %32, %49 : vector<16x640xf32>
    %51 = arith.mulf %44, %26 : vector<16x640xf32>
    %52 = arith.addf %40, %51 : vector<16x640xf32>
    %53 = arith.mulf %52, %27 : vector<16x640xf32>
    %54 = arith.addf %50, %53 : vector<16x640xf32>
    %55 = arith.mulf %48, %28 : vector<16x640xf32>
    %56 = arith.addf %54, %55 : vector<16x640xf32>
    %cst_24 = arith.constant 0.000000e+00 : f32
    %57 = vector.broadcast %cst_24 : f32 to vector<16x640xf32>
    %58 = arith.subf %57, %16 : vector<16x640xf32>
    %59 = arith.mulf %58, %16 : vector<16x640xf32>
    %60 = arith.addf %59, %56 : vector<16x640xf32>
    %61 = math.exp %60 : vector<16x640xf32>
    %62 = arith.mulf %25, %61 : vector<16x640xf32>
    %cst_25 = arith.constant 0.000000e+00 : f32
    %63 = vector.broadcast %cst_25 : f32 to vector<16x640xf32>
    %64 = arith.cmpf oge, %15, %63 : vector<16x640xf32>
    %cst_26 = arith.constant 1.000000e+00 : f32
    %65 = vector.broadcast %cst_26 : f32 to vector<16x640xf32>
    %66 = arith.subf %65, %62 : vector<16x640xf32>
    %cst_27 = arith.constant 1.000000e+00 : f32
    %67 = vector.broadcast %cst_27 : f32 to vector<16x640xf32>
    %68 = arith.subf %62, %67 : vector<16x640xf32>
    %69 = arith.select %64, %66, %68 : vector<16x640xi1>, vector<16x640xf32>
    %cst_28 = arith.constant 1.000000e+00 : f32
    %70 = vector.broadcast %cst_28 : f32 to vector<16x640xf32>
    %71 = arith.addf %70, %69 : vector<16x640xf32>
    %72 = arith.mulf %13, %71 : vector<16x640xf32>
    %c0_29 = arith.constant 0 : index
    %c0_30 = arith.constant 0 : index
    %c0_31 = arith.constant 0 : index
    %73 = vector.load %arg6[%c0_29, %c0_30, %c0_31] : memref<1x16x640xf32, #tpu.memory_space<vmem>>, vector<1x16x640xf32>
    %74 = vector.shape_cast %73 : vector<1x16x640xf32> to vector<16x640xf32>
    %75 = vector.shape_cast %72 : vector<16x640xf32> to vector<1x16x640xf32>
    tpu.vector_store %arg6[%c0_29, %c0_30, %c0_31], %75 {strides = array<i32>} : memref<1x16x640xf32, #tpu.memory_space<vmem>>, vector<1x16x640xf32>,
    return
  }
  func.func @transform_0(%arg0: i32, %arg1: i32) -> (i32, i32, i32) {
    %c0_i32 = arith.constant 0 : i32
    %c0_i32_0 = arith.constant 0 : i32
    return %arg0, %c0_i32, %arg1 : i32, i32, i32
  }
  func.func @transform_1(%arg0: i32, %arg1: i32) -> (i32, i32) {
    %c0_i32 = arith.constant 0 : i32
    %c0_i32_0 = arith.constant 0 : i32
    %c0_i32_1 = arith.constant 0 : i32
    return %c0_i32, %c0_i32_0 : i32, i32
  }
  func.func @transform_2(%arg0: i32, %arg1: i32) -> (i32, i32) {
    %c0_i32 = arith.constant 0 : i32
    %c0_i32_0 = arith.constant 0 : i32
    %c0_i32_1 = arith.constant 0 : i32
    return %c0_i32, %c0_i32_0 : i32, i32
  }
  func.func @transform_3(%arg0: i32, %arg1: i32) -> (i32, i32, i32) {
    %c0_i32 = arith.constant 0 : i32
    %c0_i32_0 = arith.constant 0 : i32
    return %arg0, %c0_i32, %arg1 : i32, i32, i32
  }
  func.func @transform_4(%arg0: i32, %arg1: i32) -> (i32, i32, i32) {
    %c0_i32 = arith.constant 0 : i32
    %c0_i32_0 = arith.constant 0 : i32
    return %arg0, %c0_i32, %arg1 : i32, i32, i32
  }
}

module attributes {stable_mosaic.version = 11 : i64} {
  func.func @_pointwise_kernel(%arg0: i32, %arg1: i32, %arg2: memref<1x16x640xf32, #tpu.memory_space<vmem>>, %arg3: memref<16x16xf32, #tpu.memory_space<vmem>>, %arg4: memref<16x1xf32, #tpu.memory_space<vmem>>, %arg5: memref<1x16x640xf32, #tpu.memory_space<vmem>>, %arg6: memref<1x16x640xf32, #tpu.memory_space<vmem>>) attributes {dimension_semantics = [#tpu.dimension_semantics<parallel>, #tpu.dimension_semantics<parallel>], iteration_bounds = array<i64: 2, 1>, scalar_prefetch = 0 : i64, scratch_operands = 0 : i64, tpu.core_type = #tpu.core_type<tc>, window_params = [{transform_indices = @transform_0, window_bounds = array<i64: 1, 16, 640>}, {pipeline_mode = #tpu.pipeline_mode<synchronous>, transform_indices = @transform_1, window_bounds = array<i64: 16, 16>}, {pipeline_mode = #tpu.pipeline_mode<synchronous>, transform_indices = @transform_2, window_bounds = array<i64: 16, 1>}, {transform_indices = @transform_3, window_bounds = array<i64: 1, 16, 640>}, {transform_indices = @transform_4, window_bounds = array<i64: 1, 16, 640>}]} {
    %c0 = arith.constant 0 : index
    %c0_0 = arith.constant 0 : index
    %c0_1 = arith.constant 0 : index
    %0 = vector.load %arg2[%c0, %c0_0, %c0_1] : memref<1x16x640xf32, #tpu.memory_space<vmem>>, vector<1x16x640xf32>
    %1 = vector.shape_cast %0 : vector<1x16x640xf32> to vector<16x640xf32>
    %2 = arith.truncf %1 : vector<16x640xf32> to vector<16x640xbf16>
    %c0_2 = arith.constant 0 : index
    %c0_3 = arith.constant 0 : index
    %3 = vector.load %arg3[%c0_2, %c0_3] : memref<16x16xf32, #tpu.memory_space<vmem>>, vector<16x16xf32>
    %4 = arith.truncf %3 : vector<16x16xf32> to vector<16x16xbf16>
    %cst = arith.constant dense<0.000000e+00> : vector<16x640xf32>
    %5 = tpu.matmul %4, %2, %cst {dimension_numbers = #tpu.dot_dimension_numbers<[1], [0], [0], [1], [0, 0, 1, 1], [], []>} : vector<16x16xbf16>, vector<16x640xbf16>, vector<16x640xf32> -> vector<16x640xf32>
    %c0_4 = arith.constant 0 : index
    %c0_5 = arith.constant 0 : index
    %6 = vector.load %arg4[%c0_4, %c0_5] : memref<16x1xf32, #tpu.memory_space<vmem>>, vector<16x1xf32>
    %7 = vector.broadcast %6 : vector<16x1xf32> to vector<16x640xf32>
    %8 = arith.addf %5, %7 : vector<16x640xf32>
    %c0_6 = arith.constant 0 : index
    %c0_7 = arith.constant 0 : index
    %c0_8 = arith.constant 0 : index
    %9 = vector.load %arg5[%c0_6, %c0_7, %c0_8] : memref<1x16x640xf32, #tpu.memory_space<vmem>>, vector<1x16x640xf32>
    %10 = vector.shape_cast %9 : vector<1x16x640xf32> to vector<16x640xf32>
    %11 = arith.addf %8, %10 : vector<16x640xf32>
    %c0_9 = arith.constant 0 : index
    %c0_10 = arith.constant 0 : index
    %c0_11 = arith.constant 0 : index
    %12 = vector.load %arg6[%c0_9, %c0_10, %c0_11] : memref<1x16x640xf32, #tpu.memory_space<vmem>>, vector<1x16x640xf32>
    %13 = vector.shape_cast %12 : vector<1x16x640xf32> to vector<16x640xf32>
    %14 = vector.shape_cast %11 : vector<16x640xf32> to vector<1x16x640xf32>
    tpu.vector_store %arg6[%c0_9, %c0_10, %c0_11], %14 {strides = array<i32>} : memref<1x16x640xf32, #tpu.memory_space<vmem>>, vector<1x16x640xf32>,
    return
  }
  func.func @transform_0(%arg0: i32, %arg1: i32) -> (i32, i32, i32) {
    %c0_i32 = arith.constant 0 : i32
    %c0_i32_0 = arith.constant 0 : i32
    return %arg0, %c0_i32, %arg1 : i32, i32, i32
  }
  func.func @transform_1(%arg0: i32, %arg1: i32) -> (i32, i32) {
    %c0_i32 = arith.constant 0 : i32
    %c0_i32_0 = arith.constant 0 : i32
    %c0_i32_1 = arith.constant 0 : i32
    return %c0_i32, %c0_i32_0 : i32, i32
  }
  func.func @transform_2(%arg0: i32, %arg1: i32) -> (i32, i32) {
    %c0_i32 = arith.constant 0 : i32
    %c0_i32_0 = arith.constant 0 : i32
    %c0_i32_1 = arith.constant 0 : i32
    return %c0_i32, %c0_i32_0 : i32, i32
  }
  func.func @transform_3(%arg0: i32, %arg1: i32) -> (i32, i32, i32) {
    %c0_i32 = arith.constant 0 : i32
    %c0_i32_0 = arith.constant 0 : i32
    return %arg0, %c0_i32, %arg1 : i32, i32, i32
  }
  func.func @transform_4(%arg0: i32, %arg1: i32) -> (i32, i32, i32) {
    %c0_i32 = arith.constant 0 : i32
    %c0_i32_0 = arith.constant 0 : i32
    return %arg0, %c0_i32, %arg1 : i32, i32, i32
  }
}

module attributes {stable_mosaic.version = 11 : i64} {
  func.func @_head_kernel(%arg0: i32, %arg1: i32, %arg2: memref<1x16x256xf32, #tpu.memory_space<vmem>>, %arg3: memref<128x16xf32, #tpu.memory_space<vmem>>, %arg4: memref<128x1xf32, #tpu.memory_space<vmem>>, %arg5: memref<1x128xf32, #tpu.memory_space<vmem>>, %arg6: memref<1x1xf32, #tpu.memory_space<vmem>>, %arg7: memref<1x1x256xf32, #tpu.memory_space<vmem>>) attributes {dimension_semantics = [#tpu.dimension_semantics<parallel>, #tpu.dimension_semantics<parallel>], iteration_bounds = array<i64: 2, 1>, scalar_prefetch = 0 : i64, scratch_operands = 0 : i64, tpu.core_type = #tpu.core_type<tc>, window_params = [{transform_indices = @transform_0, window_bounds = array<i64: 1, 16, 256>}, {pipeline_mode = #tpu.pipeline_mode<synchronous>, transform_indices = @transform_1, window_bounds = array<i64: 128, 16>}, {pipeline_mode = #tpu.pipeline_mode<synchronous>, transform_indices = @transform_2, window_bounds = array<i64: 128, 1>}, {pipeline_mode = #tpu.pipeline_mode<synchronous>, transform_indices = @transform_3, window_bounds = array<i64: 1, 128>}, {pipeline_mode = #tpu.pipeline_mode<synchronous>, transform_indices = @transform_4, window_bounds = array<i64: 1, 1>}, {transform_indices = @transform_5, window_bounds = array<i64: 1, 1, 256>}]} {
    %c0 = arith.constant 0 : index
    %c0_0 = arith.constant 0 : index
    %c0_1 = arith.constant 0 : index
    %0 = vector.load %arg2[%c0, %c0_0, %c0_1] : memref<1x16x256xf32, #tpu.memory_space<vmem>>, vector<1x16x256xf32>
    %1 = vector.shape_cast %0 : vector<1x16x256xf32> to vector<16x256xf32>
    %2 = arith.truncf %1 : vector<16x256xf32> to vector<16x256xbf16>
    %c0_2 = arith.constant 0 : index
    %c0_3 = arith.constant 0 : index
    %3 = vector.load %arg3[%c0_2, %c0_3] : memref<128x16xf32, #tpu.memory_space<vmem>>, vector<128x16xf32>
    %4 = arith.truncf %3 : vector<128x16xf32> to vector<128x16xbf16>
    %cst = arith.constant dense<0.000000e+00> : vector<128x256xf32>
    %5 = tpu.matmul %4, %2, %cst {dimension_numbers = #tpu.dot_dimension_numbers<[1], [0], [0], [1], [0, 0, 1, 1], [], []>} : vector<128x16xbf16>, vector<16x256xbf16>, vector<128x256xf32> -> vector<128x256xf32>
    %c0_4 = arith.constant 0 : index
    %c0_5 = arith.constant 0 : index
    %6 = vector.load %arg4[%c0_4, %c0_5] : memref<128x1xf32, #tpu.memory_space<vmem>>, vector<128x1xf32>
    %7 = vector.broadcast %6 : vector<128x1xf32> to vector<128x256xf32>
    %8 = arith.addf %5, %7 : vector<128x256xf32>
    %cst_6 = arith.constant 5.000000e-01 : f32
    %9 = vector.broadcast %cst_6 : f32 to vector<128x256xf32>
    %10 = arith.mulf %9, %8 : vector<128x256xf32>
    %cst_7 = arith.constant 0.707106769 : f32
    %11 = vector.broadcast %cst_7 : f32 to vector<128x256xf32>
    %12 = arith.mulf %8, %11 : vector<128x256xf32>
    %13 = math.absf %12 : vector<128x256xf32>
    %cst_8 = arith.constant 5.000000e-01 : f32
    %14 = vector.broadcast %cst_8 : f32 to vector<128x256xf32>
    %15 = arith.mulf %14, %13 : vector<128x256xf32>
    %cst_9 = arith.constant 1.000000e+00 : f32
    %16 = vector.broadcast %cst_9 : f32 to vector<128x256xf32>
    %17 = arith.addf %16, %15 : vector<128x256xf32>
    %18 = tpu.reciprocal %17 {approx = true} : vector<128x256xf32> -> vector<128x256xf32>
    %19 = arith.mulf %17, %18 : vector<128x256xf32>
    %cst_10 = arith.constant 2.000000e+00 : f32
    %20 = vector.broadcast %cst_10 : f32 to vector<128x256xf32>
    %21 = arith.subf %20, %19 : vector<128x256xf32>
    %22 = arith.mulf %18, %21 : vector<128x256xf32>
    %23 = arith.mulf %22, %22 : vector<128x256xf32>
    %24 = arith.mulf %23, %23 : vector<128x256xf32>
    %25 = arith.mulf %24, %24 : vector<128x256xf32>
    %cst_11 = arith.constant 1.00002372 : f32
    %26 = vector.broadcast %cst_11 : f32 to vector<128x256xf32>
    %27 = arith.mulf %26, %22 : vector<128x256xf32>
    %cst_12 = arith.constant -1.26551223 : f32
    %28 = vector.broadcast %cst_12 : f32 to vector<128x256xf32>
    %29 = arith.addf %28, %27 : vector<128x256xf32>
    %cst_13 = arith.constant 0.0967841818 : f32
    %30 = vector.broadcast %cst_13 : f32 to vector<128x256xf32>
    %31 = arith.mulf %30, %22 : vector<128x256xf32>
    %cst_14 = arith.constant 0.374091953 : f32
    %32 = vector.broadcast %cst_14 : f32 to vector<128x256xf32>
    %33 = arith.addf %32, %31 : vector<128x256xf32>
    %cst_15 = arith.constant 0.278868079 : f32
    %34 = vector.broadcast %cst_15 : f32 to vector<128x256xf32>
    %35 = arith.mulf %34, %22 : vector<128x256xf32>
    %cst_16 = arith.constant -0.186288059 : f32
    %36 = vector.broadcast %cst_16 : f32 to vector<128x256xf32>
    %37 = arith.addf %36, %35 : vector<128x256xf32>
    %cst_17 = arith.constant 1.48851585 : f32
    %38 = vector.broadcast %cst_17 : f32 to vector<128x256xf32>
    %39 = arith.mulf %38, %22 : vector<128x256xf32>
    %cst_18 = arith.constant -1.13520396 : f32
    %40 = vector.broadcast %cst_18 : f32 to vector<128x256xf32>
    %41 = arith.addf %40, %39 : vector<128x256xf32>
    %cst_19 = arith.constant 0.170872763 : f32
    %42 = vector.broadcast %cst_19 : f32 to vector<128x256xf32>
    %43 = arith.mulf %42, %22 : vector<128x256xf32>
    %cst_20 = arith.constant -0.822152256 : f32
    %44 = vector.broadcast %cst_20 : f32 to vector<128x256xf32>
    %45 = arith.addf %44, %43 : vector<128x256xf32>
    %46 = arith.mulf %33, %23 : vector<128x256xf32>
    %47 = arith.addf %29, %46 : vector<128x256xf32>
    %48 = arith.mulf %41, %23 : vector<128x256xf32>
    %49 = arith.addf %37, %48 : vector<128x256xf32>
    %50 = arith.mulf %49, %24 : vector<128x256xf32>
    %51 = arith.addf %47, %50 : vector<128x256xf32>
    %52 = arith.mulf %45, %25 : vector<128x256xf32>
    %53 = arith.addf %51, %52 : vector<128x256xf32>
    %cst_21 = arith.constant 0.000000e+00 : f32
    %54 = vector.broadcast %cst_21 : f32 to vector<128x256xf32>
    %55 = arith.subf %54, %13 : vector<128x256xf32>
    %56 = arith.mulf %55, %13 : vector<128x256xf32>
    %57 = arith.addf %56, %53 : vector<128x256xf32>
    %58 = math.exp %57 : vector<128x256xf32>
    %59 = arith.mulf %22, %58 : vector<128x256xf32>
    %cst_22 = arith.constant 0.000000e+00 : f32
    %60 = vector.broadcast %cst_22 : f32 to vector<128x256xf32>
    %61 = arith.cmpf oge, %12, %60 : vector<128x256xf32>
    %cst_23 = arith.constant 1.000000e+00 : f32
    %62 = vector.broadcast %cst_23 : f32 to vector<128x256xf32>
    %63 = arith.subf %62, %59 : vector<128x256xf32>
    %cst_24 = arith.constant 1.000000e+00 : f32
    %64 = vector.broadcast %cst_24 : f32 to vector<128x256xf32>
    %65 = arith.subf %59, %64 : vector<128x256xf32>
    %66 = arith.select %61, %63, %65 : vector<128x256xi1>, vector<128x256xf32>
    %cst_25 = arith.constant 1.000000e+00 : f32
    %67 = vector.broadcast %cst_25 : f32 to vector<128x256xf32>
    %68 = arith.addf %67, %66 : vector<128x256xf32>
    %69 = arith.mulf %10, %68 : vector<128x256xf32>
    %c0_26 = arith.constant 0 : index
    %c0_27 = arith.constant 0 : index
    %70 = vector.load %arg5[%c0_26, %c0_27] : memref<1x128xf32, #tpu.memory_space<vmem>>, vector<1x128xf32>
    %71 = arith.truncf %70 : vector<1x128xf32> to vector<1x128xbf16>
    %72 = arith.truncf %69 : vector<128x256xf32> to vector<128x256xbf16>
    %cst_28 = arith.constant dense<0.000000e+00> : vector<1x256xf32>
    %73 = tpu.matmul %71, %72, %cst_28 {dimension_numbers = #tpu.dot_dimension_numbers<[1], [0], [0], [1], [0, 0, 1, 1], [], []>} : vector<1x128xbf16>, vector<128x256xbf16>, vector<1x256xf32> -> vector<1x256xf32>
    %c0_29 = arith.constant 0 : index
    %c0_30 = arith.constant 0 : index
    %74 = vector.load %arg6[%c0_29, %c0_30] : memref<1x1xf32, #tpu.memory_space<vmem>>, vector<1x1xf32>
    %75 = vector.broadcast %74 : vector<1x1xf32> to vector<1x256xf32>
    %76 = arith.addf %73, %75 : vector<1x256xf32>
    %c0_31 = arith.constant 0 : index
    %c0_32 = arith.constant 0 : index
    %c0_33 = arith.constant 0 : index
    %77 = vector.load %arg7[%c0_31, %c0_32, %c0_33] : memref<1x1x256xf32, #tpu.memory_space<vmem>>, vector<1x1x256xf32>
    %78 = vector.shape_cast %77 : vector<1x1x256xf32> to vector<1x256xf32>
    %79 = vector.shape_cast %76 : vector<1x256xf32> to vector<1x1x256xf32>
    tpu.vector_store %arg7[%c0_31, %c0_32, %c0_33], %79 {strides = array<i32>} : memref<1x1x256xf32, #tpu.memory_space<vmem>>, vector<1x1x256xf32>,
    return
  }
  func.func @transform_0(%arg0: i32, %arg1: i32) -> (i32, i32, i32) {
    %c0_i32 = arith.constant 0 : i32
    %c0_i32_0 = arith.constant 0 : i32
    return %arg0, %c0_i32, %arg1 : i32, i32, i32
  }
  func.func @transform_1(%arg0: i32, %arg1: i32) -> (i32, i32) {
    %c0_i32 = arith.constant 0 : i32
    %c0_i32_0 = arith.constant 0 : i32
    %c0_i32_1 = arith.constant 0 : i32
    return %c0_i32, %c0_i32_0 : i32, i32
  }
  func.func @transform_2(%arg0: i32, %arg1: i32) -> (i32, i32) {
    %c0_i32 = arith.constant 0 : i32
    %c0_i32_0 = arith.constant 0 : i32
    %c0_i32_1 = arith.constant 0 : i32
    return %c0_i32, %c0_i32_0 : i32, i32
  }
  func.func @transform_3(%arg0: i32, %arg1: i32) -> (i32, i32) {
    %c0_i32 = arith.constant 0 : i32
    %c0_i32_0 = arith.constant 0 : i32
    %c0_i32_1 = arith.constant 0 : i32
    return %c0_i32, %c0_i32_0 : i32, i32
  }
  func.func @transform_4(%arg0: i32, %arg1: i32) -> (i32, i32) {
    %c0_i32 = arith.constant 0 : i32
    %c0_i32_0 = arith.constant 0 : i32
    %c0_i32_1 = arith.constant 0 : i32
    return %c0_i32, %c0_i32_0 : i32, i32
  }
  func.func @transform_5(%arg0: i32, %arg1: i32) -> (i32, i32, i32) {
    %c0_i32 = arith.constant 0 : i32
    %c0_i32_0 = arith.constant 0 : i32
    return %arg0, %c0_i32, %arg1 : i32, i32, i32
  }
}

</mosaic_0001>

<llo_original>
// kernel: fno2d_forward.10
$region0: #{fno2d_forward.10}
  #allocation0 [shape = 'u32[]', space=smem, size = 0x4, offset = 0x4, fixed_abs, tag = 'smem constant byte address 0x4 - core index']
  #allocation1 [shape = 'u32[144,128]{1,0:T(1,128)}', space=vmem, size = 0x12000, scoped, tag = 'internal scratch']
  %s0 = inlined_call_operand.vmem [shape: f32[2,3,256], index: 0, kind: input, shape index: {}]
  %s1 = inlined_call_operand.vmem [shape: f32[16,3], index: 1, kind: input, shape index: {}]
  %s2 = inlined_call_operand.vmem [shape: f32[16,1], index: 2, kind: input, shape index: {}]
  %s3 = inlined_call_operand.vmem [shape: f32[2,16,256], index: 3, kind: output, shape index: {}]
  %s4 = sld [smem:[#allocation0]]
  $region45: #{fno2d_forward.10} parent=0
    _
  %s6 = ssub.s32 1, %s4
  %s7 = scalar_select 0, %s6, %s4
  loop: start=0, step=1, limit=4
  $region2: #{fno2d_forward.10} parent=0 // loop_pre_header
    _
  $region3: #{fno2d_forward.10} parent=0 // loop_header
    %s9 = sphi 0, %s13
    %p10 = scmp.ge.s32.totalorder %s9, 4
    %s16 = sphi 0, %s28
    %s17 = sphi 0, %s24
    %s18 = sphi 0, %s16
    %s19 = sphi 0, %s17
    %s20 = sphi 0, %s18
    %s21 = sphi 0, %s19
    %s33 = sphi 0, %s35
    %s36 = sphi 0, %s33
    %s37 = sphi 0, %s36
    %s53 = sphi 0, %s37
    %s57 = sphi 0, %s57
    %s59 = sphi 0, %s57
    %s60 = sphi 0, %s59
    %s74 = sphi 0, %s60
    %s78 = sphi 0, %s78
    %s80 = sphi 0, %s78
    %s81 = sphi 0, %s80
    %s95 = sphi 0, %s81
    %s103 = sphi 0, %s105
    %s106 = sphi 0, %s103
    %s107 = sphi 0, %s106
    %s123 = sphi 0, %s107
  $region4: #{fno2d_forward.10} parent=0 // loop_header_branch
    %12 = sbr.rel (%p10) target = $region8
  $region5: #{fno2d_forward.10} parent=0 // loop_body
    %s14 = ssub.s32 %s9, 1
    %s15 = ssub.s32 %s9, 2
    %s22 = sadd.s32 1, %s17
    %p23 = scmp.ge.s32.totalorder %s22, 1
    %s24 = scalar_select %p23, 0, %s22
    %s25 = sadd.s32 1, %s16
    %s26 = scalar_select %p23, %s25, %s16
    %p27 = scmp.ge.s32.totalorder %s26, 2
    %s28 = scalar_select %p27, 0, %s26
    %s29 = ssub.s32 %s16, %s28
    %s30 = ssub.s32 %s17, %s24
    %s31 = sor.u32 %s29, %s30
    %p32 = scmp.eq.s32.totalorder %s31, 0
    %s34 = sadd.s32 %s33, 1
    %s35 = scalar_select %p32, %s33, %s34
    %p38 = pneg %p32
    %p39 = scmp.eq.s32.totalorder %s9, 1
    %p40 = por %p38, %p39
    %p41 = scmp.ne.s32.totalorder %s33, %s36
    %p42 = scmp.eq.s32.totalorder %s9, 0
    %p43 = por %p41, %p42
    %p44 = scmp.ne.s32.totalorder %s33, %s36
    %p45 = scmp.eq.s32.totalorder %s14, 1
    %p46 = por %p44, %p45
    %p47 = scmp.ne.s32.totalorder %s36, %s37
    %p48 = scmp.eq.s32.totalorder %s14, 0
    %p49 = por %p47, %p48
    %p50 = scmp.ne.s32.totalorder %s36, %s37
    %p51 = scmp.eq.s32.totalorder %s15, 1
    %p52 = por %p50, %p51
    %p54 = scmp.ne.s32.totalorder %s37, %s53
    %p55 = scmp.eq.s32.totalorder %s15, 0
    %p56 = por %p54, %p55
    %s58 = sadd.s32 %s57, 1
    %p61 = scmp.eq.s32.totalorder %s9, 1
    %p62 = scmp.ne.s32.totalorder %s57, %s59
    %p63 = scmp.eq.s32.totalorder %s9, 0
    %p64 = por %p62, %p63
    %p65 = scmp.ne.s32.totalorder %s57, %s59
    %p66 = scmp.eq.s32.totalorder %s14, 1
    %p67 = por %p65, %p66
    %p68 = scmp.ne.s32.totalorder %s59, %s60
    %p69 = scmp.eq.s32.totalorder %s14, 0
    %p70 = por %p68, %p69
    %p71 = scmp.ne.s32.totalorder %s59, %s60
    %p72 = scmp.eq.s32.totalorder %s15, 1
    %p73 = por %p71, %p72
    %p75 = scmp.ne.s32.totalorder %s60, %s74
    %p76 = scmp.eq.s32.totalorder %s15, 0
    %p77 = por %p75, %p76
    %s79 = sadd.s32 %s78, 1
    %p82 = scmp.eq.s32.totalorder %s9, 1
    %p83 = scmp.ne.s32.totalorder %s78, %s80
    %p84 = scmp.eq.s32.totalorder %s9, 0
    %p85 = por %p83, %p84
    %p86 = scmp.ne.s32.totalorder %s78, %s80
    %p87 = scmp.eq.s32.totalorder %s14, 1
    %p88 = por %p86, %p87
    %p89 = scmp.ne.s32.totalorder %s80, %s81
    %p90 = scmp.eq.s32.totalorder %s14, 0
    %p91 = por %p89, %p90
    %p92 = scmp.ne.s32.totalorder %s80, %s81
    %p93 = scmp.eq.s32.totalorder %s15, 1
    %p94 = por %p92, %p93
    %p96 = scmp.ne.s32.totalorder %s81, %s95
    %p97 = scmp.eq.s32.totalorder %s15, 0
    %p98 = por %p96, %p97
    %s99 = ssub.s32 %s16, %s28
    %s100 = ssub.s32 %s17, %s24
    %s101 = sor.u32 %s99, %s100
    %p102 = scmp.eq.s32.totalorder %s101, 0
    %s104 = sadd.s32 %s103, 1
    %s105 = scalar_select %p102, %s103, %s104
    %p108 = pneg %p102
    %p109 = scmp.eq.s32.totalorder %s9, 1
    %p110 = por %p108, %p109
    %p111 = scmp.ne.s32.totalorder %s103, %s106
    %p112 = scmp.eq.s32.totalorder %s9, 0
    %p113 = por %p111, %p112
    %p114 = scmp.ne.s32.totalorder %s103, %s106
    %p115 = scmp.eq.s32.totalorder %s14, 1
    %p116 = por %p114, %p115
    %p117 = scmp.ne.s32.totalorder %s106, %s107
    %p118 = scmp.eq.s32.totalorder %s14, 0
    %p119 = por %p117, %p118
    %p120 = scmp.ne.s32.totalorder %s106, %s107
    %p121 = scmp.eq.s32.totalorder %s15, 1
    %p122 = por %p120, %p121
    %p124 = scmp.ne.s32.totalorder %s107, %s123
    %p125 = scmp.eq.s32.totalorder %s15, 0
    %p126 = por %p124, %p125
    %p127 = scmp.le.s32.totalorder 1, %s9
    %p128 = scmp.lt.s32.totalorder %s9, 3
    %p129 = pnand %p127, %p128
    %p130 = pneg %p129
    // Predicated region
    $region9: #{fno2d_forward.10} parent=5 // pred_check
      _
    $region10: #{fno2d_forward.10} parent=5 // pred_check_branch
      %132 = sbr.rel (%p129) target = $region12
    $region11: #{fno2d_forward.10} parent=5 // pred_region
      %s133 = ssub.s32 %s9, 1
      // Predicated region
      $region13: #{fno2d_forward.10} parent=11 // pred_check
        %p134 = pneg %p70
      $region14: #{fno2d_forward.10} parent=11 // pred_check_branch
        %136 = sbr.rel (%p134) target = $region16
      $region15: #{fno2d_forward.10} parent=11 // pred_region
        _
      $region16: #{fno2d_forward.10} parent=11 // pred_fallthru
        _
      // Predicated region
      $region17: #{fno2d_forward.10} parent=11 // pred_check
        %p137 = pneg %p91
      $region18: #{fno2d_forward.10} parent=11 // pred_check_branch
        %139 = sbr.rel (%p137) target = $region20
      $region19: #{fno2d_forward.10} parent=11 // pred_region
        _
      $region20: #{fno2d_forward.10} parent=11 // pred_fallthru
        _
    $region12: #{fno2d_forward.10} parent=5 // pred_fallthru
      _
    %p140 = scmp.lt.s32.totalorder %s9, 2
    // Predicated region
    $region21: #{fno2d_forward.10} parent=5 // pred_check
      %p141 = pneg %p140
    $region22: #{fno2d_forward.10} parent=5 // pred_check_branch
      %143 = sbr.rel (%p141) target = $region24
    $region23: #{fno2d_forward.10} parent=5 // pred_region
      // Predicated region
      $region25: #{fno2d_forward.10} parent=23 // pred_check
        %p144 = pneg %p43
      $region26: #{fno2d_forward.10} parent=23 // pred_check_branch
        %146 = sbr.rel (%p144) target = $region28
      $region27: #{fno2d_forward.10} parent=23 // pred_region
        %s147 = smul.u32 2, %s17
        %p148 = scmp.lt.s32.totalorder %s16, 1
        %s149 = scalar_select %p148, %s16, 1
        %p150 = scmp.lt.s32.totalorder %s147, 1
        %s151 = scalar_select %p150, %s147, 1
        %s152 = smul.addr %s149, 2
        %s153 = sadd.s32 %s151, %s152
        %s154 = smul.addr %s153, 4
        %s155 = scalar_lea.vmem %s0, %s154
        %s156 = smul.u32 2, %s17
      $region28: #{fno2d_forward.10} parent=23 // pred_fallthru
        _
    $region24: #{fno2d_forward.10} parent=5 // pred_fallthru
      _
    %p157 = scmp.le.s32.totalorder 1, %s9
    %p158 = scmp.lt.s32.totalorder %s9, 3
    %p159 = pnand %p157, %p158
    %p160 = pneg %p159
    // Predicated region
    $region29: #{fno2d_forward.10} parent=5 // pred_check
      _
    $region30: #{fno2d_forward.10} parent=5 // pred_check_branch
      %162 = sbr.rel (%p159) target = $region32
    $region31: #{fno2d_forward.10} parent=5 // pred_region
      %s163 = ssub.s32 %s9, 1
      %s164 = smul.u32 2, %s19
      %p165 = scmp.lt.s32.totalorder %s18, 1
      %s166 = scalar_select %p165, %s18, 1
      %p167 = scmp.lt.s32.totalorder %s164, 1
      %s168 = scalar_select %p167, %s164, 1
      %s169 = smul.addr %s166, 2
      %s170 = sadd.s32 %s168, %s169
      %s171 = smul.addr %s170, 4
      %s172 = scalar_lea.vmem %s0, %s171
      %p173 = pneg %p49
      %p174 = pneg %p46
      %p175 = pneg %p70
      %p176 = pneg %p67
      %p177 = pneg %p91
      %p178 = pneg %p88
      %p179 = pneg %p119
      %p180 = pneg %p116
      %s181 = smul.u32 2, %s19
      %p182 = scmp.lt.s32.totalorder %s18, 1
      %s183 = scalar_select %p182, %s18, 1
      %p184 = scmp.lt.s32.totalorder %s181, 1
      %s185 = scalar_select %p184, %s181, 1
      %s186 = smul.addr %s183, 4
      %s187 = sadd.s32 %s185, %s186
      %s188 = smul.addr %s187, 8
      %s189 = scalar_lea.vmem %s3, %s188
      %s190 = smul.u32 2, %s19
      %p191 = scmp.lt.s32.totalorder %s18, 1
      %s192 = scalar_select %p191, %s18, 1
      %p193 = scmp.lt.s32.totalorder %s190, 1
      %s194 = scalar_select %p193, %s190, 1
      %s195 = smul.addr %s192, 2
      %s196 = sadd.s32 %s194, %s195
      %s197 = smul.addr %s196, 4
      %s198 = scalar_lea.vmem %s0, %s197
      %s199 = smul.u32 2, %s19
      %s200 = smul.u32 2, %s19
      %p201 = scmp.lt.s32.totalorder %s18, 1
      %s202 = scalar_select %p201, %s18, 1
      %p203 = scmp.lt.s32.totalorder %s200, 1
      %s204 = scalar_select %p203, %s200, 1
      %s205 = smul.addr %s202, 4
      %s206 = sadd.s32 %s204, %s205
      %s207 = smul.addr %s206, 8
      %s208 = scalar_lea.vmem %s3, %s207
      %s209 = smul.u32 2, %s19
      %v211 = vld [vmem:[%s198] sm:$0x77]
      %v213 = vcombine.high %v211, %v211
      %v215 = vpack.c.bf16 %v211, %v211
      %v216 = vpack.c.bf16 %v213, %v213
      %v217 = vld [vmem:[%s1] sm:$0xff]
      %v218 = vld [vmem:[%s1 + $0x8] sm:$0xff]
      %v219 = vpack.c.bf16 %v218, %v217
      %v220 = vld [vmem:[%s2] sm:$0xff]
      %v221 = vld [vmem:[%s2 + $0x8] sm:$0xff]
      %223 = vset.pattern.permute.xlu0 0
      %224 = vperm.xlu0 %223, %v220
      %v225 = vpop.permute.xlu0 %224
      %228 = vset.pattern.permute.xlu0 0
      %229 = vperm.xlu0 %228, %v221
      %v230 = vpop.permute.xlu0 %229
      %vm232 = vcmask 23552
      %v234 = vsel %vm232, %v219, 0
      %vm236 = vcmask 1040384
      %vm237 = vcmask 1041408
      %v238 = vsel %vm236, 4294967295, 65535
      %v239 = vsel %vm237, %v238, 0
      %v241 = vand.u32 %v215, %v239
      %v244 = vand.u32 %v216, %v239
      %246 = vmatprep.subr.bf16.mxu0 %v244
      %247 = vmatpush1.bf16.msra.mxu0 %v241
      %248 = vmatprep.subr.bf16.mxu0 0
      %249 = vmatpush1.bf16.msra.mxu0 0
      %250 = vmatprep.subr.bf16.mxu0 0
      %251 = vmatpush1.bf16.msra.mxu0 0
      %252 = vmatprep.subr.bf16.mxu0 0
      %253 = vmatpush1.bf16.msra.mxu0 0
      %254 = vmatprep.subr.bf16.mxu0 0
      %255 = vmatpush1.bf16.msra.mxu0 0
      %256 = vmatprep.subr.bf16.mxu0 0
      %257 = vmatpush1.bf16.msra.mxu0 0
      %258 = vmatprep.subr.bf16.mxu0 0
      %259 = vmatpush1.bf16.msra.mxu0 0
      %260 = vmatprep.subr.bf16.mxu0 0
      %261 = vmatpush1.bf16.msra.mxu0 0
      %262 = vmatprep.subr.bf16.mxu0 0
      %263 = vmatpush1.bf16.msra.mxu0 0
      %264 = vmatprep.subr.bf16.mxu0 0
      %265 = vmatpush1.bf16.msra.mxu0 0
      %266 = vmatprep.subr.bf16.mxu0 0
      %267 = vmatpush1.bf16.msra.mxu0 0
      %268 = vmatprep.subr.bf16.mxu0 0
      %269 = vmatpush1.bf16.msra.mxu0 0
      %270 = vmatprep.subr.bf16.mxu0 0
      %271 = vmatpush1.bf16.msra.mxu0 0
      %272 = vmatprep.subr.bf16.mxu0 0
      %273 = vmatpush1.bf16.msra.mxu0 0
      %274 = vmatprep.subr.bf16.mxu0 0
      %275 = vmatpush1.bf16.msra.mxu0 0
      %276 = vmatprep.subr.bf16.mxu0 0
      %277 = vmatpush1.bf16.msra.mxu0 0
      %278 = vmatprep.mubr.bf16.mxu0 0
      %279 = vmatmul.mubr.bf16.gmra.mrb[0].mxu0 %v234
      %v280 = vpop.f32.mrb[0].mxu0
      %v281 = vadd.f32 %v225, %v280
      %v282 = vpop.f32.mrb[0].mxu0
      %v283 = vadd.f32 %v225, %v282
      %v284 = vpop.f32.mrb[0].mxu0
      %v285 = vadd.f32 %v230, %v284
      %v286 = vpop.f32.mrb[0].mxu0
      %v287 = vadd.f32 %v230, %v286
      %288 = vdwg.mxu0
      %289 = vst [vmem:[%s208] sm:$0xff] %v281
      %290 = vst [vmem:[%s208 + $0x8] sm:$0xff] %v283
      %291 = vst [vmem:[%s208 + $0x10] sm:$0xff] %v285
      %292 = vst [vmem:[%s208 + $0x18] sm:$0xff] %v287
      %s293 = smul.u32 2, %s19
      %p294 = scmp.lt.s32.totalorder %s18, 1
      %s295 = scalar_select %p294, %s18, 1
      %p296 = scmp.lt.s32.totalorder %s293, 1
      %s297 = scalar_select %p296, %s293, 1
      %s298 = smul.addr %s295, 4
      %s299 = sadd.s32 %s297, %s298
      %s300 = smul.addr %s299, 8
      %s301 = scalar_lea.vmem %s3, %s300
      // Predicated region
      $region33: #{fno2d_forward.10} parent=31 // pred_check
        %p302 = pneg %p116
      $region34: #{fno2d_forward.10} parent=31 // pred_check_branch
        %304 = sbr.rel (%p302) target = $region36
      $region35: #{fno2d_forward.10} parent=31 // pred_region
        %s305 = smul.u32 2, %s19
      $region36: #{fno2d_forward.10} parent=31 // pred_fallthru
        _
    $region32: #{fno2d_forward.10} parent=5 // pred_fallthru
      _
    %p306 = scmp.le.s32.totalorder 2, %s9
    // Predicated region
    $region37: #{fno2d_forward.10} parent=5 // pred_check
      %p307 = pneg %p306
    $region38: #{fno2d_forward.10} parent=5 // pred_check_branch
      %309 = sbr.rel (%p307) target = $region40
    $region39: #{fno2d_forward.10} parent=5 // pred_region
      %s310 = ssub.s32 %s9, 2
      // Predicated region
      $region41: #{fno2d_forward.10} parent=39 // pred_check
        %p311 = pneg %p122
      $region42: #{fno2d_forward.10} parent=39 // pred_check_branch
        %313 = sbr.rel (%p311) target = $region44
      $region43: #{fno2d_forward.10} parent=39 // pred_region
        %s314 = smul.u32 2, %s21
        %p315 = scmp.lt.s32.totalorder %s20, 1
        %s316 = scalar_select %p315, %s20, 1
        %p317 = scmp.lt.s32.totalorder %s314, 1
        %s318 = scalar_select %p317, %s314, 1
        %s319 = smul.addr %s316, 4
        %s320 = sadd.s32 %s318, %s319
        %s321 = smul.addr %s320, 8
        %s322 = scalar_lea.vmem %s3, %s321
      $region44: #{fno2d_forward.10} parent=39 // pred_fallthru
        _
    $region40: #{fno2d_forward.10} parent=5 // pred_fallthru
      _
  $region6: #{fno2d_forward.10} parent=0 // loop_footer
    %s13 = sadd.s32 1, %s9
  $region7: #{fno2d_forward.10} parent=0 // loop_footer_branch
    %8 = sbr.rel target = $region3
  $region8: #{fno2d_forward.10} parent=0 // loop_exit
    _

// kernel: custom-call.3
$region0: #{custom-call.3}
  %s0 = inlined_call_operand.hbm [shape: c64[16,16,6,6], index: 0, kind: input, shape index: {}]
  %s1 = inlined_call_operand.vmem [shape: f32[16,16,6,6], index: 1, kind: output, shape index: {}]
  %s2 = scalar_lea.hbm %s0, 9216
  $region1: #{custom-call.3} parent=0
    #allocation0 [shape = 's32[1]{0}', space=sflag, size = 0x4, scoped, tag = 'scoped memory for custom-call.3']
    %3 = vsyncpa [#allocation0], 0
    %s4 = sshll.u32 %s1, 4
    %s5 = int_to_ptr.vmem [resolvable:$true] %s4
    %7 = dma.hbm_to_vmem [thread:$0]  %s2, 9216, %s5, [#allocation0]
    %8 = dma.done [#allocation0], 9216
    %9 = vsyncpa [#allocation0], 1

// kernel: custom-call.2
$region0: #{custom-call.2}
  %s0 = inlined_call_operand.hbm [shape: c64[16,16,6,6], index: 0, kind: input, shape index: {}]
  %s1 = inlined_call_operand.vmem [shape: f32[16,16,6,6], index: 1, kind: output, shape index: {}]
  $region1: #{custom-call.2} parent=0
    #allocation0 [shape = 's32[1]{0}', space=sflag, size = 0x4, scoped, tag = 'scoped memory for custom-call.2']
    %2 = vsyncpa [#allocation0], 0
    %s3 = sshll.u32 %s1, 4
    %s4 = int_to_ptr.vmem [resolvable:$true] %s3
    %6 = dma.hbm_to_vmem [thread:$0]  %s0, 9216, %s4, [#allocation0]
    %7 = dma.done [#allocation0], 9216
    %8 = vsyncpa [#allocation0], 1

// kernel: fno2d_forward.11
$region0: #{fno2d_forward.11}
  #allocation0 [shape = 'u32[]', space=smem, size = 0x4, offset = 0x4, fixed_abs, tag = 'smem constant byte address 0x4 - core index']
  #allocation1 [shape = 'u32[144,128]{1,0:T(1,128)}', space=vmem, size = 0x12000, scoped, tag = 'internal scratch']
  %s0 = inlined_call_operand.vmem [shape: f32[2,2,16,128], index: 0, kind: input, shape index: {}]
  %s1 = inlined_call_operand.vmem [shape: f32[2,16,16,128], index: 1, kind: input, shape index: {}]
  %s2 = inlined_call_operand.vmem [shape: f32[2,2,16,128], index: 2, kind: output, shape index: {}]
  %s3 = sld [smem:[#allocation0]]
  $region41: #{fno2d_forward.11} parent=0
    _
  %s5 = ssub.s32 1, %s3
  %s6 = scalar_select 0, %s5, %s3
  loop: start=0, step=1, limit=4
  $region2: #{fno2d_forward.11} parent=0 // loop_pre_header
    _
  $region3: #{fno2d_forward.11} parent=0 // loop_header
    %s8 = sphi 0, %s12
    %p9 = scmp.ge.s32.totalorder %s8, 4
    %s18 = sphi 0, %s20
    %s21 = sphi 0, %s18
    %s22 = sphi 0, %s21
    %s38 = sphi 0, %s22
    %s42 = sphi 0, %s42
    %s44 = sphi 0, %s42
    %s45 = sphi 0, %s44
    %s59 = sphi 0, %s45
    %s65 = sphi 0, %s67
    %s68 = sphi 0, %s65
    %s69 = sphi 0, %s68
    %s85 = sphi 0, %s69
  $region4: #{fno2d_forward.11} parent=0 // loop_header_branch
    %11 = sbr.rel (%p9) target = $region8
  $region5: #{fno2d_forward.11} parent=0 // loop_body
    %s13 = ssub.s32 %s8, 1
    %s14 = ssub.s32 %s8, 2
    %s15 = sadd.s32 %s8, 1
    %s16 = ssub.s32 %s8, %s15
    %p17 = scmp.eq.s32.totalorder %s16, 0
    %s19 = sadd.s32 %s18, 1
    %s20 = scalar_select %p17, %s18, %s19
    %p23 = pneg %p17
    %p24 = scmp.eq.s32.totalorder %s8, 1
    %p25 = por %p23, %p24
    %p26 = scmp.ne.s32.totalorder %s18, %s21
    %p27 = scmp.eq.s32.totalorder %s8, 0
    %p28 = por %p26, %p27
    %p29 = scmp.ne.s32.totalorder %s18, %s21
    %p30 = scmp.eq.s32.totalorder %s13, 1
    %p31 = por %p29, %p30
    %p32 = scmp.ne.s32.totalorder %s21, %s22
    %p33 = scmp.eq.s32.totalorder %s13, 0
    %p34 = por %p32, %p33
    %p35 = scmp.ne.s32.totalorder %s21, %s22
    %p36 = scmp.eq.s32.totalorder %s14, 1
    %p37 = por %p35, %p36
    %p39 = scmp.ne.s32.totalorder %s22, %s38
    %p40 = scmp.eq.s32.totalorder %s14, 0
    %p41 = por %p39, %p40
    %s43 = sadd.s32 %s42, 1
    %p46 = scmp.eq.s32.totalorder %s8, 1
    %p47 = scmp.ne.s32.totalorder %s42, %s44
    %p48 = scmp.eq.s32.totalorder %s8, 0
    %p49 = por %p47, %p48
    %p50 = scmp.ne.s32.totalorder %s42, %s44
    %p51 = scmp.eq.s32.totalorder %s13, 1
    %p52 = por %p50, %p51
    %p53 = scmp.ne.s32.totalorder %s44, %s45
    %p54 = scmp.eq.s32.totalorder %s13, 0
    %p55 = por %p53, %p54
    %p56 = scmp.ne.s32.totalorder %s44, %s45
    %p57 = scmp.eq.s32.totalorder %s14, 1
    %p58 = por %p56, %p57
    %p60 = scmp.ne.s32.totalorder %s45, %s59
    %p61 = scmp.eq.s32.totalorder %s14, 0
    %p62 = por %p60, %p61
    %s63 = ssub.s32 %s8, %s15
    %p64 = scmp.eq.s32.totalorder %s63, 0
    %s66 = sadd.s32 %s65, 1
    %s67 = scalar_select %p64, %s65, %s66
    %p70 = pneg %p64
    %p71 = scmp.eq.s32.totalorder %s8, 1
    %p72 = por %p70, %p71
    %p73 = scmp.ne.s32.totalorder %s65, %s68
    %p74 = scmp.eq.s32.totalorder %s8, 0
    %p75 = por %p73, %p74
    %p76 = scmp.ne.s32.totalorder %s65, %s68
    %p77 = scmp.eq.s32.totalorder %s13, 1
    %p78 = por %p76, %p77
    %p79 = scmp.ne.s32.totalorder %s68, %s69
    %p80 = scmp.eq.s32.totalorder %s13, 0
    %p81 = por %p79, %p80
    %p82 = scmp.ne.s32.totalorder %s68, %s69
    %p83 = scmp.eq.s32.totalorder %s14, 1
    %p84 = por %p82, %p83
    %p86 = scmp.ne.s32.totalorder %s69, %s85
    %p87 = scmp.eq.s32.totalorder %s14, 0
    %p88 = por %p86, %p87
    %p89 = scmp.le.s32.totalorder 1, %s8
    %p90 = scmp.lt.s32.totalorder %s8, 3
    %p91 = pnand %p89, %p90
    %p92 = pneg %p91
    // Predicated region
    $region9: #{fno2d_forward.11} parent=5 // pred_check
      _
    $region10: #{fno2d_forward.11} parent=5 // pred_check_branch
      %94 = sbr.rel (%p91) target = $region12
    $region11: #{fno2d_forward.11} parent=5 // pred_region
      %s95 = ssub.s32 %s8, 1
      // Predicated region
      $region13: #{fno2d_forward.11} parent=11 // pred_check
        %p96 = pneg %p55
      $region14: #{fno2d_forward.11} parent=11 // pred_check_branch
        %98 = sbr.rel (%p96) target = $region16
      $region15: #{fno2d_forward.11} parent=11 // pred_region
        _
      $region16: #{fno2d_forward.11} parent=11 // pred_fallthru
        _
    $region12: #{fno2d_forward.11} parent=5 // pred_fallthru
      _
    %p99 = scmp.lt.s32.totalorder %s8, 2
    // Predicated region
    $region17: #{fno2d_forward.11} parent=5 // pred_check
      %p100 = pneg %p99
    $region18: #{fno2d_forward.11} parent=5 // pred_check_branch
      %102 = sbr.rel (%p100) target = $region20
    $region19: #{fno2d_forward.11} parent=5 // pred_region
      // Predicated region
      $region21: #{fno2d_forward.11} parent=19 // pred_check
        %p103 = pneg %p28
      $region22: #{fno2d_forward.11} parent=19 // pred_check_branch
        %105 = sbr.rel (%p103) target = $region24
      $region23: #{fno2d_forward.11} parent=19 // pred_region
        %p106 = scmp.lt.s32.totalorder %s8, 1
        %s107 = scalar_select %p106, %s8, 1
        %s108 = smul.addr %s107, 4
        %s109 = smul.addr %s108, 8
        %s110 = scalar_lea.vmem %s0, %s109
      $region24: #{fno2d_forward.11} parent=19 // pred_fallthru
        _
    $region20: #{fno2d_forward.11} parent=5 // pred_fallthru
      _
    %p111 = scmp.le.s32.totalorder 1, %s8
    %p112 = scmp.lt.s32.totalorder %s8, 3
    %p113 = pnand %p111, %p112
    %p114 = pneg %p113
    // Predicated region
    $region25: #{fno2d_forward.11} parent=5 // pred_check
      _
    $region26: #{fno2d_forward.11} parent=5 // pred_check_branch
      %116 = sbr.rel (%p113) target = $region28
    $region27: #{fno2d_forward.11} parent=5 // pred_region
      %s117 = ssub.s32 %s8, 1
      %p118 = scmp.lt.s32.totalorder %s13, 1
      %s119 = scalar_select %p118, %s13, 1
      %s120 = smul.addr %s119, 4
      %s121 = smul.addr %s120, 8
      %s122 = scalar_lea.vmem %s0, %s121
      %p123 = pneg %p34
      %p124 = pneg %p31
      %p125 = pneg %p55
      %p126 = pneg %p52
      %p127 = pneg %p81
      %p128 = pneg %p78
      %p129 = scmp.lt.s32.totalorder %s13, 1
      %s130 = scalar_select %p129, %s13, 1
      %s131 = smul.addr %s130, 4
      %s132 = smul.addr %s131, 8
      %s133 = scalar_lea.vmem %s2, %s132
      %p134 = scmp.lt.s32.totalorder %s13, 1
      %s135 = scalar_select %p134, %s13, 1
      %s136 = smul.addr %s135, 4
      %s137 = smul.addr %s136, 8
      %s138 = scalar_lea.vmem %s0, %s137
      %p139 = scmp.lt.s32.totalorder %s13, 1
      %s140 = scalar_select %p139, %s13, 1
      %s141 = smul.addr %s140, 4
      %s142 = smul.addr %s141, 8
      %s143 = scalar_lea.vmem %s2, %s142
      %v144 = vld [vmem:[%s138] sm:$0x1]
      %s145 = scalar_lea.vmem %s138, 16
      %v146 = vld [vmem:[%s145] sm:$0x1]
      %v147 = vld [vmem:[%s1] sm:$0xff]
      %v148 = vld [vmem:[%s1 + $0x8] sm:$0xff]
      %s149 = scalar_lea.vmem %s1, 256
      %v150 = vld [vmem:[%s149] sm:$0xff]
      %v151 = vld [vmem:[%s149 + $0x8] sm:$0xff]
      %v152 = vlaneseq
      %v153 = vshrl.u32 %v152, 7
      %v154 = vsub.s32 0, %v153
      %v155 = vrot.slane %v144, %v154
      %v156 = vmul.f32 %v155, %v147
      %v157 = vmul.f32 %v155, %v148
      %v158 = vlaneseq
      %v159 = vshrl.u32 %v158, 7
      %v160 = vsub.s32 0, %v159
      %v161 = vrot.slane %v146, %v160
      %v162 = vmul.f32 %v161, %v150
      %v163 = vmul.f32 %v161, %v151
      %v164 = vsub.f32 %v156, %v162
      %v165 = vsub.f32 %v157, %v163
      %v166 = vmul.f32 %v155, %v150
      %v167 = vmul.f32 %v155, %v151
      %v168 = vmul.f32 %v161, %v147
      %v169 = vmul.f32 %v161, %v148
      %v170 = vadd.f32 %v166, %v168
      %v171 = vadd.f32 %v167, %v169
      %v172 = vld [vmem:[%s138 + $0x1] sm:$0x1]
      %v173 = vld [vmem:[%s145 + $0x1] sm:$0x1]
      %s174 = scalar_lea.vmem %s1, 16
      %v175 = vld [vmem:[%s174] sm:$0xff]
      %v176 = vld [vmem:[%s174 + $0x8] sm:$0xff]
      %s177 = scalar_lea.vmem %s1, 272
      %v178 = vld [vmem:[%s177] sm:$0xff]
      %v179 = vld [vmem:[%s177 + $0x8] sm:$0xff]
      %v180 = vlaneseq
      %v181 = vshrl.u32 %v180, 7
      %v182 = vsub.s32 0, %v181
      %v183 = vrot.slane %v172, %v182
      %v184 = vmul.f32 %v183, %v175
      %v185 = vmul.f32 %v183, %v176
      %v186 = vlaneseq
      %v187 = vshrl.u32 %v186, 7
      %v188 = vsub.s32 0, %v187
      %v189 = vrot.slane %v173, %v188
      %v190 = vmul.f32 %v189, %v178
      %v191 = vmul.f32 %v189, %v179
      %v192 = vsub.f32 %v184, %v190
      %v193 = vsub.f32 %v185, %v191
      %v194 = vmul.f32 %v183, %v178
      %v195 = vmul.f32 %v183, %v179
      %v196 = vmul.f32 %v189, %v175
      %v197 = vmul.f32 %v189, %v176
      %v198 = vadd.f32 %v194, %v196
      %v199 = vadd.f32 %v195, %v197
      %v200 = vadd.f32 %v164, %v192
      %v201 = vadd.f32 %v165, %v193
      %v202 = vadd.f32 %v170, %v198
      %v203 = vadd.f32 %v171, %v199
      %v204 = vld [vmem:[%s138 + $0x2] sm:$0x1]
      %v205 = vld [vmem:[%s145 + $0x2] sm:$0x1]
      %s206 = scalar_lea.vmem %s1, 32
      %v207 = vld [vmem:[%s206] sm:$0xff]
      %v208 = vld [vmem:[%s206 + $0x8] sm:$0xff]
      %s209 = scalar_lea.vmem %s1, 288
      %v210 = vld [vmem:[%s209] sm:$0xff]
      %v211 = vld [vmem:[%s209 + $0x8] sm:$0xff]
      %v212 = vlaneseq
      %v213 = vshrl.u32 %v212, 7
      %v214 = vsub.s32 0, %v213
      %v215 = vrot.slane %v204, %v214
      %v216 = vmul.f32 %v215, %v207
      %v217 = vmul.f32 %v215, %v208
      %v218 = vlaneseq
      %v219 = vshrl.u32 %v218, 7
      %v220 = vsub.s32 0, %v219
      %v221 = vrot.slane %v205, %v220
      %v222 = vmul.f32 %v221, %v210
      %v223 = vmul.f32 %v221, %v211
      %v224 = vsub.f32 %v216, %v222
      %v225 = vsub.f32 %v217, %v223
      %v226 = vmul.f32 %v215, %v210
      %v227 = vmul.f32 %v215, %v211
      %v228 = vmul.f32 %v221, %v207
      %v229 = vmul.f32 %v221, %v208
      %v230 = vadd.f32 %v226, %v228
      %v231 = vadd.f32 %v227, %v229
      %v232 = vadd.f32 %v200, %v224
      %v233 = vadd.f32 %v201, %v225
      %v234 = vadd.f32 %v202, %v230
      %v235 = vadd.f32 %v203, %v231
      %v236 = vld [vmem:[%s138 + $0x3] sm:$0x1]
      %v237 = vld [vmem:[%s145 + $0x3] sm:$0x1]
      %s238 = scalar_lea.vmem %s1, 48
      %v239 = vld [vmem:[%s238] sm:$0xff]
      %v240 = vld [vmem:[%s238 + $0x8] sm:$0xff]
      %s241 = scalar_lea.vmem %s1, 304
      %v242 = vld [vmem:[%s241] sm:$0xff]
      %v243 = vld [vmem:[%s241 + $0x8] sm:$0xff]
      %v244 = vlaneseq
      %v245 = vshrl.u32 %v244, 7
      %v246 = vsub.s32 0, %v245
      %v247 = vrot.slane %v236, %v246
      %v248 = vmul.f32 %v247, %v239
      %v249 = vmul.f32 %v247, %v240
      %v250 = vlaneseq
      %v251 = vshrl.u32 %v250, 7
      %v252 = vsub.s32 0, %v251
      %v253 = vrot.slane %v237, %v252
      %v254 = vmul.f32 %v253, %v242
      %v255 = vmul.f32 %v253, %v243
      %v256 = vsub.f32 %v248, %v254
      %v257 = vsub.f32 %v249, %v255
      %v258 = vmul.f32 %v247, %v242
      %v259 = vmul.f32 %v247, %v243
      %v260 = vmul.f32 %v253, %v239
      %v261 = vmul.f32 %v253, %v240
      %v262 = vadd.f32 %v258, %v260
      %v263 = vadd.f32 %v259, %v261
      %v264 = vadd.f32 %v232, %v256
      %v265 = vadd.f32 %v233, %v257
      %v266 = vadd.f32 %v234, %v262
      %v267 = vadd.f32 %v235, %v263
      %v268 = vld [vmem:[%s138 + $0x4] sm:$0x1]
      %v269 = vld [vmem:[%s145 + $0x4] sm:$0x1]
      %s270 = scalar_lea.vmem %s1, 64
      %v271 = vld [vmem:[%s270] sm:$0xff]
      %v272 = vld [vmem:[%s270 + $0x8] sm:$0xff]
      %s273 = scalar_lea.vmem %s1, 320
      %v274 = vld [vmem:[%s273] sm:$0xff]
      %v275 = vld [vmem:[%s273 + $0x8] sm:$0xff]
      %v276 = vlaneseq
      %v277 = vshrl.u32 %v276, 7
      %v278 = vsub.s32 0, %v277
      %v279 = vrot.slane %v268, %v278
      %v280 = vmul.f32 %v279, %v271
      %v281 = vmul.f32 %v279, %v272
      %v282 = vlaneseq
      %v283 = vshrl.u32 %v282, 7
      %v284 = vsub.s32 0, %v283
      %v285 = vrot.slane %v269, %v284
      %v286 = vmul.f32 %v285, %v274
      %v287 = vmul.f32 %v285, %v275
      %v288 = vsub.f32 %v280, %v286
      %v289 = vsub.f32 %v281, %v287
      %v290 = vmul.f32 %v279, %v274
      %v291 = vmul.f32 %v279, %v275
      %v292 = vmul.f32 %v285, %v271
      %v293 = vmul.f32 %v285, %v272
      %v294 = vadd.f32 %v290, %v292
      %v295 = vadd.f32 %v291, %v293
      %v296 = vadd.f32 %v264, %v288
      %v297 = vadd.f32 %v265, %v289
      %v298 = vadd.f32 %v266, %v294
      %v299 = vadd.f32 %v267, %v295
      %v300 = vld [vmem:[%s138 + $0x5] sm:$0x1]
      %v301 = vld [vmem:[%s145 + $0x5] sm:$0x1]
      %s302 = scalar_lea.vmem %s1, 80
      %v303 = vld [vmem:[%s302] sm:$0xff]
      %v304 = vld [vmem:[%s302 + $0x8] sm:$0xff]
      %s305 = scalar_lea.vmem %s1, 336
      %v306 = vld [vmem:[%s305] sm:$0xff]
      %v307 = vld [vmem:[%s305 + $0x8] sm:$0xff]
      %v308 = vlaneseq
      %v309 = vshrl.u32 %v308, 7
      %v310 = vsub.s32 0, %v309
      %v311 = vrot.slane %v300, %v310
      %v312 = vmul.f32 %v311, %v303
      %v313 = vmul.f32 %v311, %v304
      %v314 = vlaneseq
      %v315 = vshrl.u32 %v314, 7
      %v316 = vsub.s32 0, %v315
      %v317 = vrot.slane %v301, %v316
      %v318 = vmul.f32 %v317, %v306
      %v319 = vmul.f32 %v317, %v307
      %v320 = vsub.f32 %v312, %v318
      %v321 = vsub.f32 %v313, %v319
      %v322 = vmul.f32 %v311, %v306
      %v323 = vmul.f32 %v311, %v307
      %v324 = vmul.f32 %v317, %v303
      %v325 = vmul.f32 %v317, %v304
      %v326 = vadd.f32 %v322, %v324
      %v327 = vadd.f32 %v323, %v325
      %v328 = vadd.f32 %v296, %v320
      %v329 = vadd.f32 %v297, %v321
      %v330 = vadd.f32 %v298, %v326
      %v331 = vadd.f32 %v299, %v327
      %v332 = vld [vmem:[%s138 + $0x6] sm:$0x1]
      %v333 = vld [vmem:[%s145 + $0x6] sm:$0x1]
      %s334 = scalar_lea.vmem %s1, 96
      %v335 = vld [vmem:[%s334] sm:$0xff]
      %v336 = vld [vmem:[%s334 + $0x8] sm:$0xff]
      %s337 = scalar_lea.vmem %s1, 352
      %v338 = vld [vmem:[%s337] sm:$0xff]
      %v339 = vld [vmem:[%s337 + $0x8] sm:$0xff]
      %v340 = vlaneseq
      %v341 = vshrl.u32 %v340, 7
      %v342 = vsub.s32 0, %v341
      %v343 = vrot.slane %v332, %v342
      %v344 = vmul.f32 %v343, %v335
      %v345 = vmul.f32 %v343, %v336
      %v346 = vlaneseq
      %v347 = vshrl.u32 %v346, 7
      %v348 = vsub.s32 0, %v347
      %v349 = vrot.slane %v333, %v348
      %v350 = vmul.f32 %v349, %v338
      %v351 = vmul.f32 %v349, %v339
      %v352 = vsub.f32 %v344, %v350
      %v353 = vsub.f32 %v345, %v351
      %v354 = vmul.f32 %v343, %v338
      %v355 = vmul.f32 %v343, %v339
      %v356 = vmul.f32 %v349, %v335
      %v357 = vmul.f32 %v349, %v336
      %v358 = vadd.f32 %v354, %v356
      %v359 = vadd.f32 %v355, %v357
      %v360 = vadd.f32 %v328, %v352
      %v361 = vadd.f32 %v329, %v353
      %v362 = vadd.f32 %v330, %v358
      %v363 = vadd.f32 %v331, %v359
      %v364 = vld [vmem:[%s138 + $0x7] sm:$0x1]
      %v365 = vld [vmem:[%s145 + $0x7] sm:$0x1]
      %s366 = scalar_lea.vmem %s1, 112
      %v367 = vld [vmem:[%s366] sm:$0xff]
      %v368 = vld [vmem:[%s366 + $0x8] sm:$0xff]
      %s369 = scalar_lea.vmem %s1, 368
      %v370 = vld [vmem:[%s369] sm:$0xff]
      %v371 = vld [vmem:[%s369 + $0x8] sm:$0xff]
      %v372 = vlaneseq
      %v373 = vshrl.u32 %v372, 7
      %v374 = vsub.s32 0, %v373
      %v375 = vrot.slane %v364, %v374
      %v376 = vmul.f32 %v375, %v367
      %v377 = vmul.f32 %v375, %v368
      %v378 = vlaneseq
      %v379 = vshrl.u32 %v378, 7
      %v380 = vsub.s32 0, %v379
      %v381 = vrot.slane %v365, %v380
      %v382 = vmul.f32 %v381, %v370
      %v383 = vmul.f32 %v381, %v371
      %v384 = vsub.f32 %v376, %v382
      %v385 = vsub.f32 %v377, %v383
      %v386 = vmul.f32 %v375, %v370
      %v387 = vmul.f32 %v375, %v371
      %v388 = vmul.f32 %v381, %v367
      %v389 = vmul.f32 %v381, %v368
      %v390 = vadd.f32 %v386, %v388
      %v391 = vadd.f32 %v387, %v389
      %v392 = vadd.f32 %v360, %v384
      %v393 = vadd.f32 %v361, %v385
      %v394 = vadd.f32 %v362, %v390
      %v395 = vadd.f32 %v363, %v391
      %v396 = vld [vmem:[%s138 + $0x8] sm:$0x1]
      %v397 = vld [vmem:[%s145 + $0x8] sm:$0x1]
      %s398 = scalar_lea.vmem %s1, 128
      %v399 = vld [vmem:[%s398] sm:$0xff]
      %v400 = vld [vmem:[%s398 + $0x8] sm:$0xff]
      %s401 = scalar_lea.vmem %s1, 384
      %v402 = vld [vmem:[%s401] sm:$0xff]
      %v403 = vld [vmem:[%s401 + $0x8] sm:$0xff]
      %v404 = vlaneseq
      %v405 = vshrl.u32 %v404, 7
      %v406 = vsub.s32 0, %v405
      %v407 = vrot.slane %v396, %v406
      %v408 = vmul.f32 %v407, %v399
      %v409 = vmul.f32 %v407, %v400
      %v410 = vlaneseq
      %v411 = vshrl.u32 %v410, 7
      %v412 = vsub.s32 0, %v411
      %v413 = vrot.slane %v397, %v412
      %v414 = vmul.f32 %v413, %v402
      %v415 = vmul.f32 %v413, %v403
      %v416 = vsub.f32 %v408, %v414
      %v417 = vsub.f32 %v409, %v415
      %v418 = vmul.f32 %v407, %v402
      %v419 = vmul.f32 %v407, %v403
      %v420 = vmul.f32 %v413, %v399
      %v421 = vmul.f32 %v413, %v400
      %v422 = vadd.f32 %v418, %v420
      %v423 = vadd.f32 %v419, %v421
      %v424 = vadd.f32 %v392, %v416
      %v425 = vadd.f32 %v393, %v417
      %v426 = vadd.f32 %v394, %v422
      %v427 = vadd.f32 %v395, %v423
      %v428 = vld [vmem:[%s138 + $0x9] sm:$0x1]
      %v429 = vld [vmem:[%s145 + $0x9] sm:$0x1]
      %s430 = scalar_lea.vmem %s1, 144
      %v431 = vld [vmem:[%s430] sm:$0xff]
      %v432 = vld [vmem:[%s430 + $0x8] sm:$0xff]
      %s433 = scalar_lea.vmem %s1, 400
      %v434 = vld [vmem:[%s433] sm:$0xff]
      %v435 = vld [vmem:[%s433 + $0x8] sm:$0xff]
      %v436 = vlaneseq
      %v437 = vshrl.u32 %v436, 7
      %v438 = vsub.s32 0, %v437
      %v439 = vrot.slane %v428, %v438
      %v440 = vmul.f32 %v439, %v431
      %v441 = vmul.f32 %v439, %v432
      %v442 = vlaneseq
      %v443 = vshrl.u32 %v442, 7
      %v444 = vsub.s32 0, %v443
      %v445 = vrot.slane %v429, %v444
      %v446 = vmul.f32 %v445, %v434
      %v447 = vmul.f32 %v445, %v435
      %v448 = vsub.f32 %v440, %v446
      %v449 = vsub.f32 %v441, %v447
      %v450 = vmul.f32 %v439, %v434
      %v451 = vmul.f32 %v439, %v435
      %v452 = vmul.f32 %v445, %v431
      %v453 = vmul.f32 %v445, %v432
      %v454 = vadd.f32 %v450, %v452
      %v455 = vadd.f32 %v451, %v453
      %v456 = vadd.f32 %v424, %v448
      %v457 = vadd.f32 %v425, %v449
      %v458 = vadd.f32 %v426, %v454
      %v459 = vadd.f32 %v427, %v455
      %v460 = vld [vmem:[%s138 + $0xa] sm:$0x1]
      %v461 = vld [vmem:[%s145 + $0xa] sm:$0x1]
      %s462 = scalar_lea.vmem %s1, 160
      %v463 = vld [vmem:[%s462] sm:$0xff]
      %v464 = vld [vmem:[%s462 + $0x8] sm:$0xff]
      %s465 = scalar_lea.vmem %s1, 416
      %v466 = vld [vmem:[%s465] sm:$0xff]
      %v467 = vld [vmem:[%s465 + $0x8] sm:$0xff]
      %v468 = vlaneseq
      %v469 = vshrl.u32 %v468, 7
      %v470 = vsub.s32 0, %v469
      %v471 = vrot.slane %v460, %v470
      %v472 = vmul.f32 %v471, %v463
      %v473 = vmul.f32 %v471, %v464
      %v474 = vlaneseq
      %v475 = vshrl.u32 %v474, 7
      %v476 = vsub.s32 0, %v475
      %v477 = vrot.slane %v461, %v476
      %v478 = vmul.f32 %v477, %v466
      %v479 = vmul.f32 %v477, %v467
      %v480 = vsub.f32 %v472, %v478
      %v481 = vsub.f32 %v473, %v479
      %v482 = vmul.f32 %v471, %v466
      %v483 = vmul.f32 %v471, %v467
      %v484 = vmul.f32 %v477, %v463
      %v485 = vmul.f32 %v477, %v464
      %v486 = vadd.f32 %v482, %v484
      %v487 = vadd.f32 %v483, %v485
      %v488 = vadd.f32 %v456, %v480
      %v489 = vadd.f32 %v457, %v481
      %v490 = vadd.f32 %v458, %v486
      %v491 = vadd.f32 %v459, %v487
      %v492 = vld [vmem:[%s138 + $0xb] sm:$0x1]
      %v493 = vld [vmem:[%s145 + $0xb] sm:$0x1]
      %s494 = scalar_lea.vmem %s1, 176
      %v495 = vld [vmem:[%s494] sm:$0xff]
      %v496 = vld [vmem:[%s494 + $0x8] sm:$0xff]
      %s497 = scalar_lea.vmem %s1, 432
      %v498 = vld [vmem:[%s497] sm:$0xff]
      %v499 = vld [vmem:[%s497 + $0x8] sm:$0xff]
      %v500 = vlaneseq
      %v501 = vshrl.u32 %v500, 7
      %v502 = vsub.s32 0, %v501
      %v503 = vrot.slane %v492, %v502
      %v504 = vmul.f32 %v503, %v495
      %v505 = vmul.f32 %v503, %v496
      %v506 = vlaneseq
      %v507 = vshrl.u32 %v506, 7
      %v508 = vsub.s32 0, %v507
      %v509 = vrot.slane %v493, %v508
      %v510 = vmul.f32 %v509, %v498
      %v511 = vmul.f32 %v509, %v499
      %v512 = vsub.f32 %v504, %v510
      %v513 = vsub.f32 %v505, %v511
      %v514 = vmul.f32 %v503, %v498
      %v515 = vmul.f32 %v503, %v499
      %v516 = vmul.f32 %v509, %v495
      %v517 = vmul.f32 %v509, %v496
      %v518 = vadd.f32 %v514, %v516
      %v519 = vadd.f32 %v515, %v517
      %v520 = vadd.f32 %v488, %v512
      %v521 = vadd.f32 %v489, %v513
      %v522 = vadd.f32 %v490, %v518
      %v523 = vadd.f32 %v491, %v519
      %v524 = vld [vmem:[%s138 + $0xc] sm:$0x1]
      %v525 = vld [vmem:[%s145 + $0xc] sm:$0x1]
      %s526 = scalar_lea.vmem %s1, 192
      %v527 = vld [vmem:[%s526] sm:$0xff]
      %v528 = vld [vmem:[%s526 + $0x8] sm:$0xff]
      %s529 = scalar_lea.vmem %s1, 448
      %v530 = vld [vmem:[%s529] sm:$0xff]
      %v531 = vld [vmem:[%s529 + $0x8] sm:$0xff]
      %v532 = vlaneseq
      %v533 = vshrl.u32 %v532, 7
      %v534 = vsub.s32 0, %v533
      %v535 = vrot.slane %v524, %v534
      %v536 = vmul.f32 %v535, %v527
      %v537 = vmul.f32 %v535, %v528
      %v538 = vlaneseq
      %v539 = vshrl.u32 %v538, 7
      %v540 = vsub.s32 0, %v539
      %v541 = vrot.slane %v525, %v540
      %v542 = vmul.f32 %v541, %v530
      %v543 = vmul.f32 %v541, %v531
      %v544 = vsub.f32 %v536, %v542
      %v545 = vsub.f32 %v537, %v543
      %v546 = vmul.f32 %v535, %v530
      %v547 = vmul.f32 %v535, %v531
      %v548 = vmul.f32 %v541, %v527
      %v549 = vmul.f32 %v541, %v528
      %v550 = vadd.f32 %v546, %v548
      %v551 = vadd.f32 %v547, %v549
      %v552 = vadd.f32 %v520, %v544
      %v553 = vadd.f32 %v521, %v545
      %v554 = vadd.f32 %v522, %v550
      %v555 = vadd.f32 %v523, %v551
      %v556 = vld [vmem:[%s138 + $0xd] sm:$0x1]
      %v557 = vld [vmem:[%s145 + $0xd] sm:$0x1]
      %s558 = scalar_lea.vmem %s1, 208
      %v559 = vld [vmem:[%s558] sm:$0xff]
      %v560 = vld [vmem:[%s558 + $0x8] sm:$0xff]
      %s561 = scalar_lea.vmem %s1, 464
      %v562 = vld [vmem:[%s561] sm:$0xff]
      %v563 = vld [vmem:[%s561 + $0x8] sm:$0xff]
      %v564 = vlaneseq
      %v565 = vshrl.u32 %v564, 7
      %v566 = vsub.s32 0, %v565
      %v567 = vrot.slane %v556, %v566
      %v568 = vmul.f32 %v567, %v559
      %v569 = vmul.f32 %v567, %v560
      %v570 = vlaneseq
      %v571 = vshrl.u32 %v570, 7
      %v572 = vsub.s32 0, %v571
      %v573 = vrot.slane %v557, %v572
      %v574 = vmul.f32 %v573, %v562
      %v575 = vmul.f32 %v573, %v563
      %v576 = vsub.f32 %v568, %v574
      %v577 = vsub.f32 %v569, %v575
      %v578 = vmul.f32 %v567, %v562
      %v579 = vmul.f32 %v567, %v563
      %v580 = vmul.f32 %v573, %v559
      %v581 = vmul.f32 %v573, %v560
      %v582 = vadd.f32 %v578, %v580
      %v583 = vadd.f32 %v579, %v581
      %v584 = vadd.f32 %v552, %v576
      %v585 = vadd.f32 %v553, %v577
      %v586 = vadd.f32 %v554, %v582
      %v587 = vadd.f32 %v555, %v583
      %v588 = vld [vmem:[%s138 + $0xe] sm:$0x1]
      %v589 = vld [vmem:[%s145 + $0xe] sm:$0x1]
      %s590 = scalar_lea.vmem %s1, 224
      %v591 = vld [vmem:[%s590] sm:$0xff]
      %v592 = vld [vmem:[%s590 + $0x8] sm:$0xff]
      %s593 = scalar_lea.vmem %s1, 480
      %v594 = vld [vmem:[%s593] sm:$0xff]
      %v595 = vld [vmem:[%s593 + $0x8] sm:$0xff]
      %v596 = vlaneseq
      %v597 = vshrl.u32 %v596, 7
      %v598 = vsub.s32 0, %v597
      %v599 = vrot.slane %v588, %v598
      %v600 = vmul.f32 %v599, %v591
      %v601 = vmul.f32 %v599, %v592
      %v602 = vlaneseq
      %v603 = vshrl.u32 %v602, 7
      %v604 = vsub.s32 0, %v603
      %v605 = vrot.slane %v589, %v604
      %v606 = vmul.f32 %v605, %v594
      %v607 = vmul.f32 %v605, %v595
      %v608 = vsub.f32 %v600, %v606
      %v609 = vsub.f32 %v601, %v607
      %v610 = vmul.f32 %v599, %v594
      %v611 = vmul.f32 %v599, %v595
      %v612 = vmul.f32 %v605, %v591
      %v613 = vmul.f32 %v605, %v592
      %v614 = vadd.f32 %v610, %v612
      %v615 = vadd.f32 %v611, %v613
      %v616 = vadd.f32 %v584, %v608
      %v617 = vadd.f32 %v585, %v609
      %v618 = vadd.f32 %v586, %v614
      %v619 = vadd.f32 %v587, %v615
      %v620 = vld [vmem:[%s138 + $0xf] sm:$0x1]
      %v621 = vld [vmem:[%s145 + $0xf] sm:$0x1]
      %s622 = scalar_lea.vmem %s1, 240
      %v623 = vld [vmem:[%s622] sm:$0xff]
      %v624 = vld [vmem:[%s622 + $0x8] sm:$0xff]
      %s625 = scalar_lea.vmem %s1, 496
      %v626 = vld [vmem:[%s625] sm:$0xff]
      %v627 = vld [vmem:[%s625 + $0x8] sm:$0xff]
      %v628 = vlaneseq
      %v629 = vshrl.u32 %v628, 7
      %v630 = vsub.s32 0, %v629
      %v631 = vrot.slane %v620, %v630
      %v632 = vmul.f32 %v631, %v623
      %v633 = vmul.f32 %v631, %v624
      %v634 = vlaneseq
      %v635 = vshrl.u32 %v634, 7
      %v636 = vsub.s32 0, %v635
      %v637 = vrot.slane %v621, %v636
      %v638 = vmul.f32 %v637, %v626
      %v639 = vmul.f32 %v637, %v627
      %v640 = vsub.f32 %v632, %v638
      %v641 = vsub.f32 %v633, %v639
      %v642 = vmul.f32 %v631, %v626
      %v643 = vmul.f32 %v631, %v627
      %v644 = vmul.f32 %v637, %v623
      %v645 = vmul.f32 %v637, %v624
      %v646 = vadd.f32 %v642, %v644
      %v647 = vadd.f32 %v643, %v645
      %v648 = vadd.f32 %v616, %v640
      %v649 = vadd.f32 %v617, %v641
      %v650 = vadd.f32 %v618, %v646
      %v651 = vadd.f32 %v619, %v647
      %652 = vst [vmem:[%s143] sm:$0xff] %v648
      %653 = vst [vmem:[%s143 + $0x8] sm:$0xff] %v649
      %s654 = scalar_lea.vmem %s143, 16
      %655 = vst [vmem:[%s654] sm:$0xff] %v650
      %656 = vst [vmem:[%s654 + $0x8] sm:$0xff] %v651
      %p657 = scmp.lt.s32.totalorder %s13, 1
      %s658 = scalar_select %p657, %s13, 1
      %s659 = smul.addr %s658, 4
      %s660 = smul.addr %s659, 8
      %s661 = scalar_lea.vmem %s2, %s660
      // Predicated region
      $region29: #{fno2d_forward.11} parent=27 // pred_check
        %p662 = pneg %p78
      $region30: #{fno2d_forward.11} parent=27 // pred_check_branch
        %664 = sbr.rel (%p662) target = $region32
      $region31: #{fno2d_forward.11} parent=27 // pred_region
        _
      $region32: #{fno2d_forward.11} parent=27 // pred_fallthru
        _
    $region28: #{fno2d_forward.11} parent=5 // pred_fallthru
      _
    %p665 = scmp.le.s32.totalorder 2, %s8
    // Predicated region
    $region33: #{fno2d_forward.11} parent=5 // pred_check
      %p666 = pneg %p665
    $region34: #{fno2d_forward.11} parent=5 // pred_check_branch
      %668 = sbr.rel (%p666) target = $region36
    $region35: #{fno2d_forward.11} parent=5 // pred_region
      %s669 = ssub.s32 %s8, 2
      // Predicated region
      $region37: #{fno2d_forward.11} parent=35 // pred_check
        %p670 = pneg %p84
      $region38: #{fno2d_forward.11} parent=35 // pred_check_branch
        %672 = sbr.rel (%p670) target = $region40
      $region39: #{fno2d_forward.11} parent=35 // pred_region
        %p673 = scmp.lt.s32.totalorder %s14, 1
        %s674 = scalar_select %p673, %s14, 1
        %s675 = smul.addr %s674, 4
        %s676 = smul.addr %s675, 8
        %s677 = scalar_lea.vmem %s2, %s676
      $region40: #{fno2d_forward.11} parent=35 // pred_fallthru
        _
    $region36: #{fno2d_forward.11} parent=5 // pred_fallthru
      _
  $region6: #{fno2d_forward.11} parent=0 // loop_footer
    %s12 = sadd.s32 1, %s8
  $region7: #{fno2d_forward.11} parent=0 // loop_footer_branch
    %7 = sbr.rel target = $region3
  $region8: #{fno2d_forward.11} parent=0 // loop_exit
    _

// kernel: reverse.8
$region0: #{reverse.8}
  #allocation0 [shape = 's32[1]{0}', space=sflag, size = 0x4, scoped, tag = 'scoped memory for reverse.8']
  %s0 = inlined_call_operand.vmem [shape: f32[2,16,25,12], index: 0, kind: input, shape index: {}]
  %s1 = inlined_call_operand.vmem [shape: f32[2,16,25,12], index: 1, kind: output, shape index: {}]
  %s2 = scalar_lea.vmem %s0, 176
  %v3 = vld [vmem:[%s2] sm:$0xff]
  %4 = vst [vmem:[%s1] sm:$0xff] %v3
  %s5 = scalar_lea.vmem %s0, 368
  %v6 = vld [vmem:[%s5] sm:$0xff]
  %s7 = scalar_lea.vmem %s1, 192
  %8 = vst [vmem:[%s7] sm:$0xff] %v6
  %s9 = scalar_lea.vmem %s0, 160
  %v10 = vld [vmem:[%s9] sm:$0xff]
  %s11 = scalar_lea.vmem %s1, 16
  %12 = vst [vmem:[%s11] sm:$0xff] %v10
  %s13 = scalar_lea.vmem %s0, 352
  %v14 = vld [vmem:[%s13] sm:$0xff]
  %s15 = scalar_lea.vmem %s1, 208
  %16 = vst [vmem:[%s15] sm:$0xff] %v14
  %s17 = scalar_lea.vmem %s0, 144
  %v18 = vld [vmem:[%s17] sm:$0xff]
  %s19 = scalar_lea.vmem %s1, 32
  %20 = vst [vmem:[%s19] sm:$0xff] %v18
  %s21 = scalar_lea.vmem %s0, 336
  %v22 = vld [vmem:[%s21] sm:$0xff]
  %s23 = scalar_lea.vmem %s1, 224
  %24 = vst [vmem:[%s23] sm:$0xff] %v22
  %s25 = scalar_lea.vmem %s0, 128
  %v26 = vld [vmem:[%s25] sm:$0xff]
  %s27 = scalar_lea.vmem %s1, 48
  %28 = vst [vmem:[%s27] sm:$0xff] %v26
  %s29 = scalar_lea.vmem %s0, 320
  %v30 = vld [vmem:[%s29] sm:$0xff]
  %s31 = scalar_lea.vmem %s1, 240
  %32 = vst [vmem:[%s31] sm:$0xff] %v30
  %s33 = scalar_lea.vmem %s0, 112
  %v34 = vld [vmem:[%s33] sm:$0xff]
  %s35 = scalar_lea.vmem %s1, 64
  %36 = vst [vmem:[%s35] sm:$0xff] %v34
  %s37 = scalar_lea.vmem %s0, 304
  %v38 = vld [vmem:[%s37] sm:$0xff]
  %s39 = scalar_lea.vmem %s1, 256
  %40 = vst [vmem:[%s39] sm:$0xff] %v38
  %s41 = scalar_lea.vmem %s0, 96
  %v42 = vld [vmem:[%s41] sm:$0xff]
  %s43 = scalar_lea.vmem %s1, 80
  %44 = vst [vmem:[%s43] sm:$0xff] %v42
  %s45 = scalar_lea.vmem %s0, 288
  %v46 = vld [vmem:[%s45] sm:$0xff]
  %s47 = scalar_lea.vmem %s1, 272
  %48 = vst [vmem:[%s47] sm:$0xff] %v46
  %s49 = scalar_lea.vmem %s0, 80
  %v50 = vld [vmem:[%s49] sm:$0xff]
  %s51 = scalar_lea.vmem %s1, 96
  %52 = vst [vmem:[%s51] sm:$0xff] %v50
  %s53 = scalar_lea.vmem %s0, 272
  %v54 = vld [vmem:[%s53] sm:$0xff]
  %s55 = scalar_lea.vmem %s1, 288
  %56 = vst [vmem:[%s55] sm:$0xff] %v54
  %s57 = scalar_lea.vmem %s0, 64
  %v58 = vld [vmem:[%s57] sm:$0xff]
  %s59 = scalar_lea.vmem %s1, 112
  %60 = vst [vmem:[%s59] sm:$0xff] %v58
  %s61 = scalar_lea.vmem %s0, 256
  %v62 = vld [vmem:[%s61] sm:$0xff]
  %s63 = scalar_lea.vmem %s1, 304
  %64 = vst [vmem:[%s63] sm:$0xff] %v62
  %s65 = scalar_lea.vmem %s0, 48
  %v66 = vld [vmem:[%s65] sm:$0xff]
  %s67 = scalar_lea.vmem %s1, 128
  %68 = vst [vmem:[%s67] sm:$0xff] %v66
  %s69 = scalar_lea.vmem %s0, 240
  %v70 = vld [vmem:[%s69] sm:$0xff]
  %s71 = scalar_lea.vmem %s1, 320
  %72 = vst [vmem:[%s71] sm:$0xff] %v70
  %s73 = scalar_lea.vmem %s0, 32
  %v74 = vld [vmem:[%s73] sm:$0xff]
  %s75 = scalar_lea.vmem %s1, 144
  %76 = vst [vmem:[%s75] sm:$0xff] %v74
  %s77 = scalar_lea.vmem %s0, 224
  %v78 = vld [vmem:[%s77] sm:$0xff]
  %s79 = scalar_lea.vmem %s1, 336
  %80 = vst [vmem:[%s79] sm:$0xff] %v78
  %s81 = scalar_lea.vmem %s0, 16
  %v82 = vld [vmem:[%s81] sm:$0xff]
  %s83 = scalar_lea.vmem %s1, 160
  %84 = vst [vmem:[%s83] sm:$0xff] %v82
  %s85 = scalar_lea.vmem %s0, 208
  %v86 = vld [vmem:[%s85] sm:$0xff]
  %s87 = scalar_lea.vmem %s1, 352
  %88 = vst [vmem:[%s87] sm:$0xff] %v86
  %v89 = vld [vmem:[%s0] sm:$0xff]
  %s90 = scalar_lea.vmem %s1, 176
  %91 = vst [vmem:[%s90] sm:$0xff] %v89
  %s92 = scalar_lea.vmem %s0, 192
  %v93 = vld [vmem:[%s92] sm:$0xff]
  %s94 = scalar_lea.vmem %s1, 368
  %95 = vst [vmem:[%s94] sm:$0xff] %v93
  %s96 = scalar_lea.vmem %s0, 184
  %v97 = vld [vmem:[%s96] sm:$0xff]
  %s98 = scalar_lea.vmem %s1, 8
  %99 = vst [vmem:[%s98] sm:$0xff] %v97
  %s100 = scalar_lea.vmem %s0, 376
  %v101 = vld [vmem:[%s100] sm:$0xff]
  %s102 = scalar_lea.vmem %s1, 200
  %103 = vst [vmem:[%s102] sm:$0xff] %v101
  %s104 = scalar_lea.vmem %s0, 168
  %v105 = vld [vmem:[%s104] sm:$0xff]
  %s106 = scalar_lea.vmem %s1, 24
  %107 = vst [vmem:[%s106] sm:$0xff] %v105
  %s108 = scalar_lea.vmem %s0, 360
  %v109 = vld [vmem:[%s108] sm:$0xff]
  %s110 = scalar_lea.vmem %s1, 216
  %111 = vst [vmem:[%s110] sm:$0xff] %v109
  %s112 = scalar_lea.vmem %s0, 152
  %v113 = vld [vmem:[%s112] sm:$0xff]
  %s114 = scalar_lea.vmem %s1, 40
  %115 = vst [vmem:[%s114] sm:$0xff] %v113
  %s116 = scalar_lea.vmem %s0, 344
  %v117 = vld [vmem:[%s116] sm:$0xff]
  %s118 = scalar_lea.vmem %s1, 232
  %119 = vst [vmem:[%s118] sm:$0xff] %v117
  %s120 = scalar_lea.vmem %s0, 136
  %v121 = vld [vmem:[%s120] sm:$0xff]
  %s122 = scalar_lea.vmem %s1, 56
  %123 = vst [vmem:[%s122] sm:$0xff] %v121
  %s124 = scalar_lea.vmem %s0, 328
  %v125 = vld [vmem:[%s124] sm:$0xff]
  %s126 = scalar_lea.vmem %s1, 248
  %127 = vst [vmem:[%s126] sm:$0xff] %v125
  %s128 = scalar_lea.vmem %s0, 120
  %v129 = vld [vmem:[%s128] sm:$0xff]
  %s130 = scalar_lea.vmem %s1, 72
  %131 = vst [vmem:[%s130] sm:$0xff] %v129
  %s132 = scalar_lea.vmem %s0, 312
  %v133 = vld [vmem:[%s132] sm:$0xff]
  %s134 = scalar_lea.vmem %s1, 264
  %135 = vst [vmem:[%s134] sm:$0xff] %v133
  %s136 = scalar_lea.vmem %s0, 104
  %v137 = vld [vmem:[%s136] sm:$0xff]
  %s138 = scalar_lea.vmem %s1, 88
  %139 = vst [vmem:[%s138] sm:$0xff] %v137
  %s140 = scalar_lea.vmem %s0, 296
  %v141 = vld [vmem:[%s140] sm:$0xff]
  %s142 = scalar_lea.vmem %s1, 280
  %143 = vst [vmem:[%s142] sm:$0xff] %v141
  %s144 = scalar_lea.vmem %s0, 88
  %v145 = vld [vmem:[%s144] sm:$0xff]
  %s146 = scalar_lea.vmem %s1, 104
  %147 = vst [vmem:[%s146] sm:$0xff] %v145
  %s148 = scalar_lea.vmem %s0, 280
  %v149 = vld [vmem:[%s148] sm:$0xff]
  %s150 = scalar_lea.vmem %s1, 296
  %151 = vst [vmem:[%s150] sm:$0xff] %v149
  %s152 = scalar_lea.vmem %s0, 72
  %v153 = vld [vmem:[%s152] sm:$0xff]
  %s154 = scalar_lea.vmem %s1, 120
  %155 = vst [vmem:[%s154] sm:$0xff] %v153
  %s156 = scalar_lea.vmem %s0, 264
  %v157 = vld [vmem:[%s156] sm:$0xff]
  %s158 = scalar_lea.vmem %s1, 312
  %159 = vst [vmem:[%s158] sm:$0xff] %v157
  %s160 = scalar_lea.vmem %s0, 56
  %v161 = vld [vmem:[%s160] sm:$0xff]
  %s162 = scalar_lea.vmem %s1, 136
  %163 = vst [vmem:[%s162] sm:$0xff] %v161
  %s164 = scalar_lea.vmem %s0, 248
  %v165 = vld [vmem:[%s164] sm:$0xff]
  %s166 = scalar_lea.vmem %s1, 328
  %167 = vst [vmem:[%s166] sm:$0xff] %v165
  %s168 = scalar_lea.vmem %s0, 40
  %v169 = vld [vmem:[%s168] sm:$0xff]
  %s170 = scalar_lea.vmem %s1, 152
  %171 = vst [vmem:[%s170] sm:$0xff] %v169
  %s172 = scalar_lea.vmem %s0, 232
  %v173 = vld [vmem:[%s172] sm:$0xff]
  %s174 = scalar_lea.vmem %s1, 344
  %175 = vst [vmem:[%s174] sm:$0xff] %v173
  %s176 = scalar_lea.vmem %s0, 24
  %v177 = vld [vmem:[%s176] sm:$0xff]
  %s178 = scalar_lea.vmem %s1, 168
  %179 = vst [vmem:[%s178] sm:$0xff] %v177
  %s180 = scalar_lea.vmem %s0, 216
  %v181 = vld [vmem:[%s180] sm:$0xff]
  %s182 = scalar_lea.vmem %s1, 360
  %183 = vst [vmem:[%s182] sm:$0xff] %v181
  %s184 = scalar_lea.vmem %s0, 8
  %v185 = vld [vmem:[%s184] sm:$0xff]
  %s186 = scalar_lea.vmem %s1, 184
  %187 = vst [vmem:[%s186] sm:$0xff] %v185
  %s188 = scalar_lea.vmem %s0, 200
  %v189 = vld [vmem:[%s188] sm:$0xff]
  %s190 = scalar_lea.vmem %s1, 376
  %191 = vst [vmem:[%s190] sm:$0xff] %v189

// kernel: fno2d_forward.12
$region0: #{fno2d_forward.12}
  #allocation0 [shape = 'u32[]', space=smem, size = 0x4, offset = 0x4, fixed_abs, tag = 'smem constant byte address 0x4 - core index']
  #allocation1 [shape = 'u32[144,128]{1,0:T(1,128)}', space=vmem, size = 0x12000, scoped, tag = 'internal scratch']
  %s0 = inlined_call_operand.vmem [shape: f32[2,16,625], index: 0, kind: input, shape index: {}]
  %s1 = inlined_call_operand.vmem [shape: f32[16,16], index: 1, kind: input, shape index: {}]
  %s2 = inlined_call_operand.vmem [shape: f32[16,1], index: 2, kind: input, shape index: {}]
  %s3 = inlined_call_operand.vmem [shape: f32[2,16,625], index: 3, kind: input, shape index: {}]
  %s4 = inlined_call_operand.vmem [shape: f32[2,16,625], index: 4, kind: output, shape index: {}]
  %s5 = sld [smem:[#allocation0]]
  $region49: #{fno2d_forward.12} parent=0
    _
  %s7 = ssub.s32 1, %s5
  %s8 = scalar_select 0, %s7, %s5
  loop: start=0, step=1, limit=4
  $region2: #{fno2d_forward.12} parent=0 // loop_pre_header
    _
  $region3: #{fno2d_forward.12} parent=0 // loop_header
    %s10 = sphi 0, %s14
    %p11 = scmp.ge.s32.totalorder %s10, 4
    %s17 = sphi 0, %s29
    %s18 = sphi 0, %s25
    %s19 = sphi 0, %s17
    %s20 = sphi 0, %s18
    %s21 = sphi 0, %s19
    %s22 = sphi 0, %s20
    %s34 = sphi 0, %s36
    %s37 = sphi 0, %s34
    %s38 = sphi 0, %s37
    %s54 = sphi 0, %s38
    %s58 = sphi 0, %s58
    %s60 = sphi 0, %s58
    %s61 = sphi 0, %s60
    %s75 = sphi 0, %s61
    %s79 = sphi 0, %s79
    %s81 = sphi 0, %s79
    %s82 = sphi 0, %s81
    %s96 = sphi 0, %s82
    %s104 = sphi 0, %s106
    %s107 = sphi 0, %s104
    %s108 = sphi 0, %s107
    %s124 = sphi 0, %s108
    %s132 = sphi 0, %s134
    %s135 = sphi 0, %s132
    %s136 = sphi 0, %s135
    %s152 = sphi 0, %s136
  $region4: #{fno2d_forward.12} parent=0 // loop_header_branch
    %13 = sbr.rel (%p11) target = $region8
  $region5: #{fno2d_forward.12} parent=0 // loop_body
    %s15 = ssub.s32 %s10, 1
    %s16 = ssub.s32 %s10, 2
    %s23 = sadd.s32 1, %s18
    %p24 = scmp.ge.s32.totalorder %s23, 1
    %s25 = scalar_select %p24, 0, %s23
    %s26 = sadd.s32 1, %s17
    %s27 = scalar_select %p24, %s26, %s17
    %p28 = scmp.ge.s32.totalorder %s27, 2
    %s29 = scalar_select %p28, 0, %s27
    %s30 = ssub.s32 %s17, %s29
    %s31 = ssub.s32 %s18, %s25
    %s32 = sor.u32 %s30, %s31
    %p33 = scmp.eq.s32.totalorder %s32, 0
    %s35 = sadd.s32 %s34, 1
    %s36 = scalar_select %p33, %s34, %s35
    %p39 = pneg %p33
    %p40 = scmp.eq.s32.totalorder %s10, 1
    %p41 = por %p39, %p40
    %p42 = scmp.ne.s32.totalorder %s34, %s37
    %p43 = scmp.eq.s32.totalorder %s10, 0
    %p44 = por %p42, %p43
    %p45 = scmp.ne.s32.totalorder %s34, %s37
    %p46 = scmp.eq.s32.totalorder %s15, 1
    %p47 = por %p45, %p46
    %p48 = scmp.ne.s32.totalorder %s37, %s38
    %p49 = scmp.eq.s32.totalorder %s15, 0
    %p50 = por %p48, %p49
    %p51 = scmp.ne.s32.totalorder %s37, %s38
    %p52 = scmp.eq.s32.totalorder %s16, 1
    %p53 = por %p51, %p52
    %p55 = scmp.ne.s32.totalorder %s38, %s54
    %p56 = scmp.eq.s32.totalorder %s16, 0
    %p57 = por %p55, %p56
    %s59 = sadd.s32 %s58, 1
    %p62 = scmp.eq.s32.totalorder %s10, 1
    %p63 = scmp.ne.s32.totalorder %s58, %s60
    %p64 = scmp.eq.s32.totalorder %s10, 0
    %p65 = por %p63, %p64
    %p66 = scmp.ne.s32.totalorder %s58, %s60
    %p67 = scmp.eq.s32.totalorder %s15, 1
    %p68 = por %p66, %p67
    %p69 = scmp.ne.s32.totalorder %s60, %s61
    %p70 = scmp.eq.s32.totalorder %s15, 0
    %p71 = por %p69, %p70
    %p72 = scmp.ne.s32.totalorder %s60, %s61
    %p73 = scmp.eq.s32.totalorder %s16, 1
    %p74 = por %p72, %p73
    %p76 = scmp.ne.s32.totalorder %s61, %s75
    %p77 = scmp.eq.s32.totalorder %s16, 0
    %p78 = por %p76, %p77
    %s80 = sadd.s32 %s79, 1
    %p83 = scmp.eq.s32.totalorder %s10, 1
    %p84 = scmp.ne.s32.totalorder %s79, %s81
    %p85 = scmp.eq.s32.totalorder %s10, 0
    %p86 = por %p84, %p85
    %p87 = scmp.ne.s32.totalorder %s79, %s81
    %p88 = scmp.eq.s32.totalorder %s15, 1
    %p89 = por %p87, %p88
    %p90 = scmp.ne.s32.totalorder %s81, %s82
    %p91 = scmp.eq.s32.totalorder %s15, 0
    %p92 = por %p90, %p91
    %p93 = scmp.ne.s32.totalorder %s81, %s82
    %p94 = scmp.eq.s32.totalorder %s16, 1
    %p95 = por %p93, %p94
    %p97 = scmp.ne.s32.totalorder %s82, %s96
    %p98 = scmp.eq.s32.totalorder %s16, 0
    %p99 = por %p97, %p98
    %s100 = ssub.s32 %s17, %s29
    %s101 = ssub.s32 %s18, %s25
    %s102 = sor.u32 %s100, %s101
    %p103 = scmp.eq.s32.totalorder %s102, 0
    %s105 = sadd.s32 %s104, 1
    %s106 = scalar_select %p103, %s104, %s105
    %p109 = pneg %p103
    %p110 = scmp.eq.s32.totalorder %s10, 1
    %p111 = por %p109, %p110
    %p112 = scmp.ne.s32.totalorder %s104, %s107
    %p113 = scmp.eq.s32.totalorder %s10, 0
    %p114 = por %p112, %p113
    %p115 = scmp.ne.s32.totalorder %s104, %s107
    %p116 = scmp.eq.s32.totalorder %s15, 1
    %p117 = por %p115, %p116
    %p118 = scmp.ne.s32.totalorder %s107, %s108
    %p119 = scmp.eq.s32.totalorder %s15, 0
    %p120 = por %p118, %p119
    %p121 = scmp.ne.s32.totalorder %s107, %s108
    %p122 = scmp.eq.s32.totalorder %s16, 1
    %p123 = por %p121, %p122
    %p125 = scmp.ne.s32.totalorder %s108, %s124
    %p126 = scmp.eq.s32.totalorder %s16, 0
    %p127 = por %p125, %p126
    %s128 = ssub.s32 %s17, %s29
    %s129 = ssub.s32 %s18, %s25
    %s130 = sor.u32 %s128, %s129
    %p131 = scmp.eq.s32.totalorder %s130, 0
    %s133 = sadd.s32 %s132, 1
    %s134 = scalar_select %p131, %s132, %s133
    %p137 = pneg %p131
    %p138 = scmp.eq.s32.totalorder %s10, 1
    %p139 = por %p137, %p138
    %p140 = scmp.ne.s32.totalorder %s132, %s135
    %p141 = scmp.eq.s32.totalorder %s10, 0
    %p142 = por %p140, %p141
    %p143 = scmp.ne.s32.totalorder %s132, %s135
    %p144 = scmp.eq.s32.totalorder %s15, 1
    %p145 = por %p143, %p144
    %p146 = scmp.ne.s32.totalorder %s135, %s136
    %p147 = scmp.eq.s32.totalorder %s15, 0
    %p148 = por %p146, %p147
    %p149 = scmp.ne.s32.totalorder %s135, %s136
    %p150 = scmp.eq.s32.totalorder %s16, 1
    %p151 = por %p149, %p150
    %p153 = scmp.ne.s32.totalorder %s136, %s152
    %p154 = scmp.eq.s32.totalorder %s16, 0
    %p155 = por %p153, %p154
    %p156 = scmp.le.s32.totalorder 1, %s10
    %p157 = scmp.lt.s32.totalorder %s10, 3
    %p158 = pnand %p156, %p157
    %p159 = pneg %p158
    // Predicated region
    $region9: #{fno2d_forward.12} parent=5 // pred_check
      _
    $region10: #{fno2d_forward.12} parent=5 // pred_check_branch
      %161 = sbr.rel (%p158) target = $region12
    $region11: #{fno2d_forward.12} parent=5 // pred_region
      %s162 = ssub.s32 %s10, 1
      // Predicated region
      $region13: #{fno2d_forward.12} parent=11 // pred_check
        %p163 = pneg %p71
      $region14: #{fno2d_forward.12} parent=11 // pred_check_branch
        %165 = sbr.rel (%p163) target = $region16
      $region15: #{fno2d_forward.12} parent=11 // pred_region
        _
      $region16: #{fno2d_forward.12} parent=11 // pred_fallthru
        _
      // Predicated region
      $region17: #{fno2d_forward.12} parent=11 // pred_check
        %p166 = pneg %p92
      $region18: #{fno2d_forward.12} parent=11 // pred_check_branch
        %168 = sbr.rel (%p166) target = $region20
      $region19: #{fno2d_forward.12} parent=11 // pred_region
        _
      $region20: #{fno2d_forward.12} parent=11 // pred_fallthru
        _
    $region12: #{fno2d_forward.12} parent=5 // pred_fallthru
      _
    %p169 = scmp.lt.s32.totalorder %s10, 2
    // Predicated region
    $region21: #{fno2d_forward.12} parent=5 // pred_check
      %p170 = pneg %p169
    $region22: #{fno2d_forward.12} parent=5 // pred_check_branch
      %172 = sbr.rel (%p170) target = $region24
    $region23: #{fno2d_forward.12} parent=5 // pred_region
      // Predicated region
      $region25: #{fno2d_forward.12} parent=23 // pred_check
        %p173 = pneg %p44
      $region26: #{fno2d_forward.12} parent=23 // pred_check_branch
        %175 = sbr.rel (%p173) target = $region28
      $region27: #{fno2d_forward.12} parent=23 // pred_region
        %s176 = smul.u32 5, %s18
        %p177 = scmp.lt.s32.totalorder %s17, 1
        %s178 = scalar_select %p177, %s17, 1
        %p179 = scmp.lt.s32.totalorder %s176, 4
        %s180 = scalar_select %p179, %s176, 4
        %s181 = smul.addr %s178, 10
        %s182 = sadd.s32 %s180, %s181
        %s183 = smul.addr %s182, 8
        %s184 = scalar_lea.vmem %s0, %s183
        %s185 = smul.u32 5, %s18
      $region28: #{fno2d_forward.12} parent=23 // pred_fallthru
        _
      // Predicated region
      $region29: #{fno2d_forward.12} parent=23 // pred_check
        %p186 = pneg %p114
      $region30: #{fno2d_forward.12} parent=23 // pred_check_branch
        %188 = sbr.rel (%p186) target = $region32
      $region31: #{fno2d_forward.12} parent=23 // pred_region
        %s189 = smul.u32 5, %s18
        %p190 = scmp.lt.s32.totalorder %s17, 1
        %s191 = scalar_select %p190, %s17, 1
        %p192 = scmp.lt.s32.totalorder %s189, 4
        %s193 = scalar_select %p192, %s189, 4
        %s194 = smul.addr %s191, 10
        %s195 = sadd.s32 %s193, %s194
        %s196 = smul.addr %s195, 8
        %s197 = scalar_lea.vmem %s3, %s196
        %s198 = smul.u32 5, %s18
      $region32: #{fno2d_forward.12} parent=23 // pred_fallthru
        _
    $region24: #{fno2d_forward.12} parent=5 // pred_fallthru
      _
    %p199 = scmp.le.s32.totalorder 1, %s10
    %p200 = scmp.lt.s32.totalorder %s10, 3
    %p201 = pnand %p199, %p200
    %p202 = pneg %p201
    // Predicated region
    $region33: #{fno2d_forward.12} parent=5 // pred_check
      _
    $region34: #{fno2d_forward.12} parent=5 // pred_check_branch
      %204 = sbr.rel (%p201) target = $region36
    $region35: #{fno2d_forward.12} parent=5 // pred_region
      %s205 = ssub.s32 %s10, 1
      %s206 = smul.u32 5, %s20
      %p207 = scmp.lt.s32.totalorder %s19, 1
      %s208 = scalar_select %p207, %s19, 1
      %p209 = scmp.lt.s32.totalorder %s206, 4
      %s210 = scalar_select %p209, %s206, 4
      %s211 = smul.addr %s208, 10
      %s212 = sadd.s32 %s210, %s211
      %s213 = smul.addr %s212, 8
      %s214 = scalar_lea.vmem %s0, %s213
      %p215 = pneg %p50
      %p216 = pneg %p47
      %p217 = pneg %p71
      %p218 = pneg %p68
      %p219 = pneg %p92
      %p220 = pneg %p89
      %s221 = smul.u32 5, %s20
      %p222 = scmp.lt.s32.totalorder %s19, 1
      %s223 = scalar_select %p222, %s19, 1
      %p224 = scmp.lt.s32.totalorder %s221, 4
      %s225 = scalar_select %p224, %s221, 4
      %s226 = smul.addr %s223, 10
      %s227 = sadd.s32 %s225, %s226
      %s228 = smul.addr %s227, 8
      %s229 = scalar_lea.vmem %s3, %s228
      %p230 = pneg %p120
      %p231 = pneg %p117
      %p232 = pneg %p148
      %p233 = pneg %p145
      %s234 = smul.u32 5, %s20
      %p235 = scmp.lt.s32.totalorder %s19, 1
      %s236 = scalar_select %p235, %s19, 1
      %p237 = scmp.lt.s32.totalorder %s234, 4
      %s238 = scalar_select %p237, %s234, 4
      %s239 = smul.addr %s236, 10
      %s240 = sadd.s32 %s238, %s239
      %s241 = smul.addr %s240, 8
      %s242 = scalar_lea.vmem %s4, %s241
      %s243 = smul.u32 5, %s20
      %p244 = scmp.lt.s32.totalorder %s19, 1
      %s245 = scalar_select %p244, %s19, 1
      %p246 = scmp.lt.s32.totalorder %s243, 4
      %s247 = scalar_select %p246, %s243, 4
      %s248 = smul.addr %s245, 10
      %s249 = sadd.s32 %s247, %s248
      %s250 = smul.addr %s249, 8
      %s251 = scalar_lea.vmem %s0, %s250
      %s252 = smul.u32 5, %s20
      %s253 = smul.u32 5, %s20
      %p254 = scmp.lt.s32.totalorder %s19, 1
      %s255 = scalar_select %p254, %s19, 1
      %p256 = scmp.lt.s32.totalorder %s253, 4
      %s257 = scalar_select %p256, %s253, 4
      %s258 = smul.addr %s255, 10
      %s259 = sadd.s32 %s257, %s258
      %s260 = smul.addr %s259, 8
      %s261 = scalar_lea.vmem %s3, %s260
      %s262 = smul.u32 5, %s20
      %s263 = smul.u32 5, %s20
      %p264 = scmp.lt.s32.totalorder %s19, 1
      %s265 = scalar_select %p264, %s19, 1
      %p266 = scmp.lt.s32.totalorder %s263, 4
      %s267 = scalar_select %p266, %s263, 4
      %s268 = smul.addr %s265, 10
      %s269 = sadd.s32 %s267, %s268
      %s270 = smul.addr %s269, 8
      %s271 = scalar_lea.vmem %s4, %s270
      %s272 = smul.u32 5, %s20
      %v274 = vld [vmem:[%s251] sm:$0xff]
      %v275 = vld [vmem:[%s251 + $0x8] sm:$0xff]
      %v276 = vld [vmem:[%s251 + $0x10] sm:$0xff]
      %v277 = vld [vmem:[%s251 + $0x18] sm:$0xff]
      %v278 = vld [vmem:[%s251 + $0x20] sm:$0xff]
      %v279 = vld [vmem:[%s251 + $0x28] sm:$0xff]
      %v280 = vld [vmem:[%s251 + $0x30] sm:$0xff]
      %v281 = vld [vmem:[%s251 + $0x38] sm:$0xff]
      %v282 = vld [vmem:[%s251 + $0x40] sm:$0xff]
      %v283 = vld [vmem:[%s251 + $0x48] sm:$0xff]
      %v284 = vpack.c.bf16 %v279, %v274
      %v285 = vpack.c.bf16 %v280, %v275
      %v286 = vpack.c.bf16 %v281, %v276
      %v287 = vpack.c.bf16 %v282, %v277
      %v288 = vpack.c.bf16 %v283, %v278
      %v289 = vld [vmem:[%s1] sm:$0xff]
      %v290 = vld [vmem:[%s1 + $0x8] sm:$0xff]
      %v291 = vpack.c.bf16 %v290, %v289
      %v292 = vld [vmem:[%s2] sm:$0xff]
      %v293 = vld [vmem:[%s2 + $0x8] sm:$0xff]
      %295 = vset.pattern.permute.xlu0 0
      %296 = vperm.xlu0 %295, %v292
      %v297 = vpop.permute.xlu0 %296
      %300 = vset.pattern.permute.xlu0 0
      %301 = vperm.xlu0 %300, %v293
      %v302 = vpop.permute.xlu0 %301
      %vm304 = vcmask 130048
      %v306 = vsel %vm304, %v291, 0
      %308 = vmatprep.subr.bf16.mxu0 %v285
      %309 = vmatpush1.bf16.msra.mxu0 %v284
      %310 = vmatprep.subr.bf16.mxu0 0
      %311 = vmatpush1.bf16.msra.mxu0 0
      %312 = vmatprep.subr.bf16.mxu0 0
      %313 = vmatpush1.bf16.msra.mxu0 0
      %314 = vmatprep.subr.bf16.mxu0 0
      %315 = vmatpush1.bf16.msra.mxu0 0
      %316 = vmatprep.subr.bf16.mxu0 0
      %317 = vmatpush1.bf16.msra.mxu0 0
      %318 = vmatprep.subr.bf16.mxu0 0
      %319 = vmatpush1.bf16.msra.mxu0 0
      %320 = vmatprep.subr.bf16.mxu0 0
      %321 = vmatpush1.bf16.msra.mxu0 0
      %322 = vmatprep.subr.bf16.mxu0 0
      %323 = vmatpush1.bf16.msra.mxu0 0
      %324 = vmatprep.subr.bf16.mxu0 0
      %325 = vmatpush1.bf16.msra.mxu0 0
      %326 = vmatprep.subr.bf16.mxu0 0
      %327 = vmatpush1.bf16.msra.mxu0 0
      %328 = vmatprep.subr.bf16.mxu0 0
      %329 = vmatpush1.bf16.msra.mxu0 0
      %330 = vmatprep.subr.bf16.mxu0 0
      %331 = vmatpush1.bf16.msra.mxu0 0
      %332 = vmatprep.subr.bf16.mxu0 0
      %333 = vmatpush1.bf16.msra.mxu0 0
      %334 = vmatprep.subr.bf16.mxu0 0
      %335 = vmatpush1.bf16.msra.mxu0 0
      %336 = vmatprep.subr.bf16.mxu0 0
      %337 = vmatpush1.bf16.msra.mxu0 0
      %338 = vmatprep.subr.bf16.mxu0 0
      %339 = vmatpush1.bf16.msra.mxu0 0
      %340 = vmatprep.mubr.bf16.mxu0 0
      %341 = vmatmul.mubr.bf16.gmra.mrb[0].mxu0 %v306
      %v342 = vpop.f32.mrb[0].mxu0
      %v343 = vadd.f32 %v297, %v342
      %v344 = vpop.f32.mrb[0].mxu0
      %v345 = vadd.f32 %v297, %v344
      %v346 = vpop.f32.mrb[0].mxu0
      %v347 = vadd.f32 %v302, %v346
      %v348 = vpop.f32.mrb[0].mxu0
      %v349 = vadd.f32 %v302, %v348
      %350 = vdwg.mxu0
      %351 = vmatprep.subr.bf16.mxu0 %v287
      %352 = vmatpush1.bf16.msra.mxu0 %v286
      %353 = vmatprep.subr.bf16.mxu0 0
      %354 = vmatpush1.bf16.msra.mxu0 0
      %355 = vmatprep.subr.bf16.mxu0 0
      %356 = vmatpush1.bf16.msra.mxu0 0
      %357 = vmatprep.subr.bf16.mxu0 0
      %358 = vmatpush1.bf16.msra.mxu0 0
      %359 = vmatprep.subr.bf16.mxu0 0
      %360 = vmatpush1.bf16.msra.mxu0 0
      %361 = vmatprep.subr.bf16.mxu0 0
      %362 = vmatpush1.bf16.msra.mxu0 0
      %363 = vmatprep.subr.bf16.mxu0 0
      %364 = vmatpush1.bf16.msra.mxu0 0
      %365 = vmatprep.subr.bf16.mxu0 0
      %366 = vmatpush1.bf16.msra.mxu0 0
      %367 = vmatprep.subr.bf16.mxu0 0
      %368 = vmatpush1.bf16.msra.mxu0 0
      %369 = vmatprep.subr.bf16.mxu0 0
      %370 = vmatpush1.bf16.msra.mxu0 0
      %371 = vmatprep.subr.bf16.mxu0 0
      %372 = vmatpush1.bf16.msra.mxu0 0
      %373 = vmatprep.subr.bf16.mxu0 0
      %374 = vmatpush1.bf16.msra.mxu0 0
      %375 = vmatprep.subr.bf16.mxu0 0
      %376 = vmatpush1.bf16.msra.mxu0 0
      %377 = vmatprep.subr.bf16.mxu0 0
      %378 = vmatpush1.bf16.msra.mxu0 0
      %379 = vmatprep.subr.bf16.mxu0 0
      %380 = vmatpush1.bf16.msra.mxu0 0
      %381 = vmatprep.subr.bf16.mxu0 0
      %382 = vmatpush1.bf16.msra.mxu0 0
      %383 = vmatprep.mubr.bf16.mxu0 0
      %384 = vmatmul.mubr.bf16.gmra.mrb[0].mxu0 %v306
      %v385 = vpop.f32.mrb[0].mxu0
      %v386 = vadd.f32 %v297, %v385
      %v387 = vpop.f32.mrb[0].mxu0
      %v388 = vadd.f32 %v297, %v387
      %v389 = vpop.f32.mrb[0].mxu0
      %v390 = vadd.f32 %v302, %v389
      %v391 = vpop.f32.mrb[0].mxu0
      %v392 = vadd.f32 %v302, %v391
      %393 = vdwg.mxu0
      %394 = vmatprep.subr.bf16.mxu0 0
      %395 = vmatpush1.bf16.msra.mxu0 %v288
      %396 = vmatprep.subr.bf16.mxu0 0
      %397 = vmatpush1.bf16.msra.mxu0 0
      %398 = vmatprep.subr.bf16.mxu0 0
      %399 = vmatpush1.bf16.msra.mxu0 0
      %400 = vmatprep.subr.bf16.mxu0 0
      %401 = vmatpush1.bf16.msra.mxu0 0
      %402 = vmatprep.subr.bf16.mxu0 0
      %403 = vmatpush1.bf16.msra.mxu0 0
      %404 = vmatprep.subr.bf16.mxu0 0
      %405 = vmatpush1.bf16.msra.mxu0 0
      %406 = vmatprep.subr.bf16.mxu0 0
      %407 = vmatpush1.bf16.msra.mxu0 0
      %408 = vmatprep.subr.bf16.mxu0 0
      %409 = vmatpush1.bf16.msra.mxu0 0
      %410 = vmatprep.subr.bf16.mxu0 0
      %411 = vmatpush1.bf16.msra.mxu0 0
      %412 = vmatprep.subr.bf16.mxu0 0
      %413 = vmatpush1.bf16.msra.mxu0 0
      %414 = vmatprep.subr.bf16.mxu0 0
      %415 = vmatpush1.bf16.msra.mxu0 0
      %416 = vmatprep.subr.bf16.mxu0 0
      %417 = vmatpush1.bf16.msra.mxu0 0
      %418 = vmatprep.subr.bf16.mxu0 0
      %419 = vmatpush1.bf16.msra.mxu0 0
      %420 = vmatprep.subr.bf16.mxu0 0
      %421 = vmatpush1.bf16.msra.mxu0 0
      %422 = vmatprep.subr.bf16.mxu0 0
      %423 = vmatpush1.bf16.msra.mxu0 0
      %424 = vmatprep.subr.bf16.mxu0 0
      %425 = vmatpush1.bf16.msra.mxu0 0
      %426 = vmatprep.mubr.bf16.mxu0 0
      %427 = vmatmul.mubr.bf16.gmra.mrb[0].mxu0 %v306
      %v428 = vpop.f32.mrb[0].mxu0
      %v429 = vadd.f32 %v297, %v428
      %v430 = vpop.f32.mrb[0].mxu0
      %v431 = vpop.f32.mrb[0].mxu0
      %v432 = vadd.f32 %v302, %v431
      %v433 = vpop.f32.mrb[0].mxu0
      %434 = vdwg.mxu0
      %v435 = vld [vmem:[%s261] sm:$0xff]
      %v436 = vld [vmem:[%s261 + $0x8] sm:$0xff]
      %v437 = vld [vmem:[%s261 + $0x10] sm:$0xff]
      %v438 = vld [vmem:[%s261 + $0x18] sm:$0xff]
      %v439 = vld [vmem:[%s261 + $0x20] sm:$0xff]
      %v440 = vld [vmem:[%s261 + $0x28] sm:$0xff]
      %v441 = vld [vmem:[%s261 + $0x30] sm:$0xff]
      %v442 = vld [vmem:[%s261 + $0x38] sm:$0xff]
      %v443 = vld [vmem:[%s261 + $0x40] sm:$0xff]
      %v444 = vld [vmem:[%s261 + $0x48] sm:$0xff]
      %v445 = vadd.f32 %v343, %v435
      %v446 = vadd.f32 %v345, %v436
      %v447 = vadd.f32 %v386, %v437
      %v448 = vadd.f32 %v388, %v438
      %v449 = vadd.f32 %v429, %v439
      %v450 = vadd.f32 %v347, %v440
      %v451 = vadd.f32 %v349, %v441
      %v452 = vadd.f32 %v390, %v442
      %v453 = vadd.f32 %v392, %v443
      %v454 = vadd.f32 %v432, %v444
      %v455 = vmul.f32 %v445, 0.5
      %v456 = vmul.f32 %v446, 0.5
      %v457 = vmul.f32 %v447, 0.5
      %v458 = vmul.f32 %v448, 0.5
      %v459 = vmul.f32 %v449, 0.5
      %v460 = vmul.f32 %v450, 0.5
      %v461 = vmul.f32 %v451, 0.5
      %v462 = vmul.f32 %v452, 0.5
      %v463 = vmul.f32 %v453, 0.5
      %v464 = vmul.f32 %v454, 0.5
      %v465 = vmul.f32 %v445, 0.70710677
      %v466 = vmul.f32 %v446, 0.70710677
      %v467 = vmul.f32 %v447, 0.70710677
      %v468 = vmul.f32 %v448, 0.70710677
      %v469 = vmul.f32 %v449, 0.70710677
      %v470 = vmul.f32 %v450, 0.70710677
      %v471 = vmul.f32 %v451, 0.70710677
      %v472 = vmul.f32 %v452, 0.70710677
      %v473 = vmul.f32 %v453, 0.70710677
      %v474 = vmul.f32 %v454, 0.70710677
      %v475 = vand.u32 2147483647, %v465
      %v476 = vand.u32 2147483647, %v466
      %v477 = vand.u32 2147483647, %v467
      %v478 = vand.u32 2147483647, %v468
      %v479 = vand.u32 2147483647, %v469
      %v480 = vand.u32 2147483647, %v470
      %v481 = vand.u32 2147483647, %v471
      %v482 = vand.u32 2147483647, %v472
      %v483 = vand.u32 2147483647, %v473
      %v484 = vand.u32 2147483647, %v474
      %v485 = vmul.f32 %v475, 0.5
      %v486 = vmul.f32 %v476, 0.5
      %v487 = vmul.f32 %v477, 0.5
      %v488 = vmul.f32 %v478, 0.5
      %v489 = vmul.f32 %v479, 0.5
      %v490 = vmul.f32 %v480, 0.5
      %v491 = vmul.f32 %v481, 0.5
      %v492 = vmul.f32 %v482, 0.5
      %v493 = vmul.f32 %v483, 0.5
      %v494 = vmul.f32 %v484, 0.5
      %v495 = vadd.f32 %v485, 1.0
      %v496 = vadd.f32 %v486, 1.0
      %v497 = vadd.f32 %v487, 1.0
      %v498 = vadd.f32 %v488, 1.0
      %v499 = vadd.f32 %v489, 1.0
      %v500 = vadd.f32 %v490, 1.0
      %v501 = vadd.f32 %v491, 1.0
      %v502 = vadd.f32 %v492, 1.0
      %v503 = vadd.f32 %v493, 1.0
      %v504 = vadd.f32 %v494, 1.0
      %v505 = vrcp.pop %v495
      %v506 = vrcp.pop %v496
      %v507 = vrcp.pop %v497
      %v508 = vrcp.pop %v498
      %v509 = vrcp.pop %v499
      %v510 = vrcp.pop %v500
      %v511 = vrcp.pop %v501
      %v512 = vrcp.pop %v502
      %v513 = vrcp.pop %v503
      %v514 = vrcp.pop %v504
      %v515 = vmul.f32 %v495, %v505
      %v516 = vmul.f32 %v496, %v506
      %v517 = vmul.f32 %v497, %v507
      %v518 = vmul.f32 %v498, %v508
      %v519 = vmul.f32 %v499, %v509
      %v520 = vmul.f32 %v500, %v510
      %v521 = vmul.f32 %v501, %v511
      %v522 = vmul.f32 %v502, %v512
      %v523 = vmul.f32 %v503, %v513
      %v524 = vmul.f32 %v504, %v514
      %v525 = vsub.f32 2.0, %v515
      %v526 = vsub.f32 2.0, %v516
      %v527 = vsub.f32 2.0, %v517
      %v528 = vsub.f32 2.0, %v518
      %v529 = vsub.f32 2.0, %v519
      %v530 = vsub.f32 2.0, %v520
      %v531 = vsub.f32 2.0, %v521
      %v532 = vsub.f32 2.0, %v522
      %v533 = vsub.f32 2.0, %v523
      %v534 = vsub.f32 2.0, %v524
      %v535 = vmul.f32 %v505, %v525
      %v536 = vmul.f32 %v506, %v526
      %v537 = vmul.f32 %v507, %v527
      %v538 = vmul.f32 %v508, %v528
      %v539 = vmul.f32 %v509, %v529
      %v540 = vmul.f32 %v510, %v530
      %v541 = vmul.f32 %v511, %v531
      %v542 = vmul.f32 %v512, %v532
      %v543 = vmul.f32 %v513, %v533
      %v544 = vmul.f32 %v514, %v534
      %v545 = vmul.f32 %v535, %v535
      %v546 = vmul.f32 %v536, %v536
      %v547 = vmul.f32 %v537, %v537
      %v548 = vmul.f32 %v538, %v538
      %v549 = vmul.f32 %v539, %v539
      %v550 = vmul.f32 %v540, %v540
      %v551 = vmul.f32 %v541, %v541
      %v552 = vmul.f32 %v542, %v542
      %v553 = vmul.f32 %v543, %v543
      %v554 = vmul.f32 %v544, %v544
      %v555 = vmul.f32 %v545, %v545
      %v556 = vmul.f32 %v546, %v546
      %v557 = vmul.f32 %v547, %v547
      %v558 = vmul.f32 %v548, %v548
      %v559 = vmul.f32 %v549, %v549
      %v560 = vmul.f32 %v550, %v550
      %v561 = vmul.f32 %v551, %v551
      %v562 = vmul.f32 %v552, %v552
      %v563 = vmul.f32 %v553, %v553
      %v564 = vmul.f32 %v554, %v554
      %v565 = vmul.f32 %v555, %v555
      %v566 = vmul.f32 %v556, %v556
      %v567 = vmul.f32 %v557, %v557
      %v568 = vmul.f32 %v558, %v558
      %v569 = vmul.f32 %v559, %v559
      %v570 = vmul.f32 %v560, %v560
      %v571 = vmul.f32 %v561, %v561
      %v572 = vmul.f32 %v562, %v562
      %v573 = vmul.f32 %v563, %v563
      %v574 = vmul.f32 %v564, %v564
      %v575 = vmul.f32 %v535, 1.0000237
      %v576 = vmul.f32 %v536, 1.0000237
      %v577 = vmul.f32 %v537, 1.0000237
      %v578 = vmul.f32 %v538, 1.0000237
      %v579 = vmul.f32 %v539, 1.0000237
      %v580 = vmul.f32 %v540, 1.0000237
      %v581 = vmul.f32 %v541, 1.0000237
      %v582 = vmul.f32 %v542, 1.0000237
      %v583 = vmul.f32 %v543, 1.0000237
      %v584 = vmul.f32 %v544, 1.0000237
      %v585 = vadd.f32 %v575, -1.2655122
      %v586 = vadd.f32 %v576, -1.2655122
      %v587 = vadd.f32 %v577, -1.2655122
      %v588 = vadd.f32 %v578, -1.2655122
      %v589 = vadd.f32 %v579, -1.2655122
      %v590 = vadd.f32 %v580, -1.2655122
      %v591 = vadd.f32 %v581, -1.2655122
      %v592 = vadd.f32 %v582, -1.2655122
      %v593 = vadd.f32 %v583, -1.2655122
      %v594 = vadd.f32 %v584, -1.2655122
      %v595 = vmul.f32 %v535, 0.09678418
      %v596 = vmul.f32 %v536, 0.09678418
      %v597 = vmul.f32 %v537, 0.09678418
      %v598 = vmul.f32 %v538, 0.09678418
      %v599 = vmul.f32 %v539, 0.09678418
      %v600 = vmul.f32 %v540, 0.09678418
      %v601 = vmul.f32 %v541, 0.09678418
      %v602 = vmul.f32 %v542, 0.09678418
      %v603 = vmul.f32 %v543, 0.09678418
      %v604 = vmul.f32 %v544, 0.09678418
      %v605 = vadd.f32 %v595, 0.37409195
      %v606 = vadd.f32 %v596, 0.37409195
      %v607 = vadd.f32 %v597, 0.37409195
      %v608 = vadd.f32 %v598, 0.37409195
      %v609 = vadd.f32 %v599, 0.37409195
      %v610 = vadd.f32 %v600, 0.37409195
      %v611 = vadd.f32 %v601, 0.37409195
      %v612 = vadd.f32 %v602, 0.37409195
      %v613 = vadd.f32 %v603, 0.37409195
      %v614 = vadd.f32 %v604, 0.37409195
      %v615 = vmul.f32 %v535, 0.27886808
      %v616 = vmul.f32 %v536, 0.27886808
      %v617 = vmul.f32 %v537, 0.27886808
      %v618 = vmul.f32 %v538, 0.27886808
      %v619 = vmul.f32 %v539, 0.27886808
      %v620 = vmul.f32 %v540, 0.27886808
      %v621 = vmul.f32 %v541, 0.27886808
      %v622 = vmul.f32 %v542, 0.27886808
      %v623 = vmul.f32 %v543, 0.27886808
      %v624 = vmul.f32 %v544, 0.27886808
      %v625 = vadd.f32 %v615, -0.18628806
      %v626 = vadd.f32 %v616, -0.18628806
      %v627 = vadd.f32 %v617, -0.18628806
      %v628 = vadd.f32 %v618, -0.18628806
      %v629 = vadd.f32 %v619, -0.18628806
      %v630 = vadd.f32 %v620, -0.18628806
      %v631 = vadd.f32 %v621, -0.18628806
      %v632 = vadd.f32 %v622, -0.18628806
      %v633 = vadd.f32 %v623, -0.18628806
      %v634 = vadd.f32 %v624, -0.18628806
      %v635 = vmul.f32 %v535, 1.4885159
      %v636 = vmul.f32 %v536, 1.4885159
      %v637 = vmul.f32 %v537, 1.4885159
      %v638 = vmul.f32 %v538, 1.4885159
      %v639 = vmul.f32 %v539, 1.4885159
      %v640 = vmul.f32 %v540, 1.4885159
      %v641 = vmul.f32 %v541, 1.4885159
      %v642 = vmul.f32 %v542, 1.4885159
      %v643 = vmul.f32 %v543, 1.4885159
      %v644 = vmul.f32 %v544, 1.4885159
      %v645 = vadd.f32 %v635, -1.135204
      %v646 = vadd.f32 %v636, -1.135204
      %v647 = vadd.f32 %v637, -1.135204
      %v648 = vadd.f32 %v638, -1.135204
      %v649 = vadd.f32 %v639, -1.135204
      %v650 = vadd.f32 %v640, -1.135204
      %v651 = vadd.f32 %v641, -1.135204
      %v652 = vadd.f32 %v642, -1.135204
      %v653 = vadd.f32 %v643, -1.135204
      %v654 = vadd.f32 %v644, -1.135204
      %v655 = vmul.f32 %v535, 0.17087276
      %v656 = vmul.f32 %v536, 0.17087276
      %v657 = vmul.f32 %v537, 0.17087276
      %v658 = vmul.f32 %v538, 0.17087276
      %v659 = vmul.f32 %v539, 0.17087276
      %v660 = vmul.f32 %v540, 0.17087276
      %v661 = vmul.f32 %v541, 0.17087276
      %v662 = vmul.f32 %v542, 0.17087276
      %v663 = vmul.f32 %v543, 0.17087276
      %v664 = vmul.f32 %v544, 0.17087276
      %v665 = vadd.f32 %v655, -0.82215226
      %v666 = vadd.f32 %v656, -0.82215226
      %v667 = vadd.f32 %v657, -0.82215226
      %v668 = vadd.f32 %v658, -0.82215226
      %v669 = vadd.f32 %v659, -0.82215226
      %v670 = vadd.f32 %v660, -0.82215226
      %v671 = vadd.f32 %v661, -0.82215226
      %v672 = vadd.f32 %v662, -0.82215226
      %v673 = vadd.f32 %v663, -0.82215226
      %v674 = vadd.f32 %v664, -0.82215226
      %v675 = vmul.f32 %v605, %v545
      %v676 = vmul.f32 %v606, %v546
      %v677 = vmul.f32 %v607, %v547
      %v678 = vmul.f32 %v608, %v548
      %v679 = vmul.f32 %v609, %v549
      %v680 = vmul.f32 %v610, %v550
      %v681 = vmul.f32 %v611, %v551
      %v682 = vmul.f32 %v612, %v552
      %v683 = vmul.f32 %v613, %v553
      %v684 = vmul.f32 %v614, %v554
      %v685 = vadd.f32 %v585, %v675
      %v686 = vadd.f32 %v586, %v676
      %v687 = vadd.f32 %v587, %v677
      %v688 = vadd.f32 %v588, %v678
      %v689 = vadd.f32 %v589, %v679
      %v690 = vadd.f32 %v590, %v680
      %v691 = vadd.f32 %v591, %v681
      %v692 = vadd.f32 %v592, %v682
      %v693 = vadd.f32 %v593, %v683
      %v694 = vadd.f32 %v594, %v684
      %v695 = vmul.f32 %v645, %v545
      %v696 = vmul.f32 %v646, %v546
      %v697 = vmul.f32 %v647, %v547
      %v698 = vmul.f32 %v648, %v548
      %v699 = vmul.f32 %v649, %v549
      %v700 = vmul.f32 %v650, %v550
      %v701 = vmul.f32 %v651, %v551
      %v702 = vmul.f32 %v652, %v552
      %v703 = vmul.f32 %v653, %v553
      %v704 = vmul.f32 %v654, %v554
      %v705 = vadd.f32 %v625, %v695
      %v706 = vadd.f32 %v626, %v696
      %v707 = vadd.f32 %v627, %v697
      %v708 = vadd.f32 %v628, %v698
      %v709 = vadd.f32 %v629, %v699
      %v710 = vadd.f32 %v630, %v700
      %v711 = vadd.f32 %v631, %v701
      %v712 = vadd.f32 %v632, %v702
      %v713 = vadd.f32 %v633, %v703
      %v714 = vadd.f32 %v634, %v704
      %v715 = vmul.f32 %v705, %v555
      %v716 = vmul.f32 %v706, %v556
      %v717 = vmul.f32 %v707, %v557
      %v718 = vmul.f32 %v708, %v558
      %v719 = vmul.f32 %v709, %v559
      %v720 = vmul.f32 %v710, %v560
      %v721 = vmul.f32 %v711, %v561
      %v722 = vmul.f32 %v712, %v562
      %v723 = vmul.f32 %v713, %v563
      %v724 = vmul.f32 %v714, %v564
      %v725 = vadd.f32 %v685, %v715
      %v726 = vadd.f32 %v686, %v716
      %v727 = vadd.f32 %v687, %v717
      %v728 = vadd.f32 %v688, %v718
      %v729 = vadd.f32 %v689, %v719
      %v730 = vadd.f32 %v690, %v720
      %v731 = vadd.f32 %v691, %v721
      %v732 = vadd.f32 %v692, %v722
      %v733 = vadd.f32 %v693, %v723
      %v734 = vadd.f32 %v694, %v724
      %v735 = vmul.f32 %v665, %v565
      %v736 = vmul.f32 %v666, %v566
      %v737 = vmul.f32 %v667, %v567
      %v738 = vmul.f32 %v668, %v568
      %v739 = vmul.f32 %v669, %v569
      %v740 = vmul.f32 %v670, %v570
      %v741 = vmul.f32 %v671, %v571
      %v742 = vmul.f32 %v672, %v572
      %v743 = vmul.f32 %v673, %v573
      %v744 = vmul.f32 %v674, %v574
      %v745 = vadd.f32 %v725, %v735
      %v746 = vadd.f32 %v726, %v736
      %v747 = vadd.f32 %v727, %v737
      %v748 = vadd.f32 %v728, %v738
      %v749 = vadd.f32 %v729, %v739
      %v750 = vadd.f32 %v730, %v740
      %v751 = vadd.f32 %v731, %v741
      %v752 = vadd.f32 %v732, %v742
      %v753 = vadd.f32 %v733, %v743
      %v754 = vadd.f32 %v734, %v744
      %v755 = vsub.f32 0.0, %v475
      %v756 = vsub.f32 0.0, %v476
      %v757 = vsub.f32 0.0, %v477
      %v758 = vsub.f32 0.0, %v478
      %v759 = vsub.f32 0.0, %v479
      %v760 = vsub.f32 0.0, %v480
      %v761 = vsub.f32 0.0, %v481
      %v762 = vsub.f32 0.0, %v482
      %v763 = vsub.f32 0.0, %v483
      %v764 = vsub.f32 0.0, %v484
      %v765 = vmul.f32 %v755, %v475
      %v766 = vmul.f32 %v756, %v476
      %v767 = vmul.f32 %v757, %v477
      %v768 = vmul.f32 %v758, %v478
      %v769 = vmul.f32 %v759, %v479
      %v770 = vmul.f32 %v760, %v480
      %v771 = vmul.f32 %v761, %v481
      %v772 = vmul.f32 %v762, %v482
      %v773 = vmul.f32 %v763, %v483
      %v774 = vmul.f32 %v764, %v484
      %v775 = vadd.f32 %v765, %v745
      %v776 = vadd.f32 %v766, %v746
      %v777 = vadd.f32 %v767, %v747
      %v778 = vadd.f32 %v768, %v748
      %v779 = vadd.f32 %v769, %v749
      %v780 = vadd.f32 %v770, %v750
      %v781 = vadd.f32 %v771, %v751
      %v782 = vadd.f32 %v772, %v752
      %v783 = vadd.f32 %v773, %v753
      %v784 = vadd.f32 %v774, %v754
      %v785 = vmul.f32 %v775, 1.442695
      %v786 = vpow.pop %v785
      %v787 = vmul.f32 %v776, 1.442695
      %v788 = vpow.pop %v787
      %v789 = vmul.f32 %v777, 1.442695
      %v790 = vpow.pop %v789
      %v791 = vmul.f32 %v778, 1.442695
      %v792 = vpow.pop %v791
      %v793 = vmul.f32 %v779, 1.442695
      %v794 = vpow.pop %v793
      %v795 = vmul.f32 %v780, 1.442695
      %v796 = vpow.pop %v795
      %v797 = vmul.f32 %v781, 1.442695
      %v798 = vpow.pop %v797
      %v799 = vmul.f32 %v782, 1.442695
      %v800 = vpow.pop %v799
      %v801 = vmul.f32 %v783, 1.442695
      %v802 = vpow.pop %v801
      %v803 = vmul.f32 %v784, 1.442695
      %v804 = vpow.pop %v803
      %v805 = vmul.f32 %v535, %v786
      %v806 = vmul.f32 %v536, %v788
      %v807 = vmul.f32 %v537, %v790
      %v808 = vmul.f32 %v538, %v792
      %v809 = vmul.f32 %v539, %v794
      %v810 = vmul.f32 %v540, %v796
      %v811 = vmul.f32 %v541, %v798
      %v812 = vmul.f32 %v542, %v800
      %v813 = vmul.f32 %v543, %v802
      %v814 = vmul.f32 %v544, %v804
      %vm815 = vcmp.ge.f32.partialorder %v465, 0.0
      %vm816 = vcmp.ge.f32.partialorder %v466, 0.0
      %vm817 = vcmp.ge.f32.partialorder %v467, 0.0
      %vm818 = vcmp.ge.f32.partialorder %v468, 0.0
      %vm819 = vcmp.ge.f32.partialorder %v469, 0.0
      %vm820 = vcmp.ge.f32.partialorder %v470, 0.0
      %vm821 = vcmp.ge.f32.partialorder %v471, 0.0
      %vm822 = vcmp.ge.f32.partialorder %v472, 0.0
      %vm823 = vcmp.ge.f32.partialorder %v473, 0.0
      %vm824 = vcmp.ge.f32.partialorder %v474, 0.0
      %v825 = vsub.f32 1.0, %v805
      %v826 = vsub.f32 1.0, %v806
      %v827 = vsub.f32 1.0, %v807
      %v828 = vsub.f32 1.0, %v808
      %v829 = vsub.f32 1.0, %v809
      %v830 = vsub.f32 1.0, %v810
      %v831 = vsub.f32 1.0, %v811
      %v832 = vsub.f32 1.0, %v812
      %v833 = vsub.f32 1.0, %v813
      %v834 = vsub.f32 1.0, %v814
      %v835 = vsub.f32 %v805, 1.0
      %v836 = vsub.f32 %v806, 1.0
      %v837 = vsub.f32 %v807, 1.0
      %v838 = vsub.f32 %v808, 1.0
      %v839 = vsub.f32 %v809, 1.0
      %v840 = vsub.f32 %v810, 1.0
      %v841 = vsub.f32 %v811, 1.0
      %v842 = vsub.f32 %v812, 1.0
      %v843 = vsub.f32 %v813, 1.0
      %v844 = vsub.f32 %v814, 1.0
      %v845 = vsel %vm815, %v825, %v835
      %v846 = vsel %vm816, %v826, %v836
      %v847 = vsel %vm817, %v827, %v837
      %v848 = vsel %vm818, %v828, %v838
      %v849 = vsel %vm819, %v829, %v839
      %v850 = vsel %vm820, %v830, %v840
      %v851 = vsel %vm821, %v831, %v841
      %v852 = vsel %vm822, %v832, %v842
      %v853 = vsel %vm823, %v833, %v843
      %v854 = vsel %vm824, %v834, %v844
      %v855 = vadd.f32 %v845, 1.0
      %v856 = vadd.f32 %v846, 1.0
      %v857 = vadd.f32 %v847, 1.0
      %v858 = vadd.f32 %v848, 1.0
      %v859 = vadd.f32 %v849, 1.0
      %v860 = vadd.f32 %v850, 1.0
      %v861 = vadd.f32 %v851, 1.0
      %v862 = vadd.f32 %v852, 1.0
      %v863 = vadd.f32 %v853, 1.0
      %v864 = vadd.f32 %v854, 1.0
      %v865 = vmul.f32 %v455, %v855
      %v866 = vmul.f32 %v456, %v856
      %v867 = vmul.f32 %v457, %v857
      %v868 = vmul.f32 %v458, %v858
      %v869 = vmul.f32 %v459, %v859
      %v870 = vmul.f32 %v460, %v860
      %v871 = vmul.f32 %v461, %v861
      %v872 = vmul.f32 %v462, %v862
      %v873 = vmul.f32 %v463, %v863
      %v874 = vmul.f32 %v464, %v864
      %875 = vst [vmem:[%s271] sm:$0xff] %v865
      %876 = vst [vmem:[%s271 + $0x8] sm:$0xff] %v866
      %877 = vst [vmem:[%s271 + $0x10] sm:$0xff] %v867
      %878 = vst [vmem:[%s271 + $0x18] sm:$0xff] %v868
      %879 = vst [vmem:[%s271 + $0x20] sm:$0xff] %v869
      %880 = vst [vmem:[%s271 + $0x28] sm:$0xff] %v870
      %881 = vst [vmem:[%s271 + $0x30] sm:$0xff] %v871
      %882 = vst [vmem:[%s271 + $0x38] sm:$0xff] %v872
      %883 = vst [vmem:[%s271 + $0x40] sm:$0xff] %v873
      %884 = vst [vmem:[%s271 + $0x48] sm:$0xff] %v874
      %s885 = smul.u32 5, %s20
      %p886 = scmp.lt.s32.totalorder %s19, 1
      %s887 = scalar_select %p886, %s19, 1
      %p888 = scmp.lt.s32.totalorder %s885, 4
      %s889 = scalar_select %p888, %s885, 4
      %s890 = smul.addr %s887, 10
      %s891 = sadd.s32 %s889, %s890
      %s892 = smul.addr %s891, 8
      %s893 = scalar_lea.vmem %s4, %s892
      // Predicated region
      $region37: #{fno2d_forward.12} parent=35 // pred_check
        %p894 = pneg %p145
      $region38: #{fno2d_forward.12} parent=35 // pred_check_branch
        %896 = sbr.rel (%p894) target = $region40
      $region39: #{fno2d_forward.12} parent=35 // pred_region
        %s897 = smul.u32 5, %s20
      $region40: #{fno2d_forward.12} parent=35 // pred_fallthru
        _
    $region36: #{fno2d_forward.12} parent=5 // pred_fallthru
      _
    %p898 = scmp.le.s32.totalorder 2, %s10
    // Predicated region
    $region41: #{fno2d_forward.12} parent=5 // pred_check
      %p899 = pneg %p898
    $region42: #{fno2d_forward.12} parent=5 // pred_check_branch
      %901 = sbr.rel (%p899) target = $region44
    $region43: #{fno2d_forward.12} parent=5 // pred_region
      %s902 = ssub.s32 %s10, 2
      // Predicated region
      $region45: #{fno2d_forward.12} parent=43 // pred_check
        %p903 = pneg %p151
      $region46: #{fno2d_forward.12} parent=43 // pred_check_branch
        %905 = sbr.rel (%p903) target = $region48
      $region47: #{fno2d_forward.12} parent=43 // pred_region
        %s906 = smul.u32 5, %s22
        %p907 = scmp.lt.s32.totalorder %s21, 1
        %s908 = scalar_select %p907, %s21, 1
        %p909 = scmp.lt.s32.totalorder %s906, 4
        %s910 = scalar_select %p909, %s906, 4
        %s911 = smul.addr %s908, 10
        %s912 = sadd.s32 %s910, %s911
        %s913 = smul.addr %s912, 8
        %s914 = scalar_lea.vmem %s4, %s913
      $region48: #{fno2d_forward.12} parent=43 // pred_fallthru
        _
    $region44: #{fno2d_forward.12} parent=5 // pred_fallthru
      _
  $region6: #{fno2d_forward.12} parent=0 // loop_footer
    %s14 = sadd.s32 1, %s10
  $region7: #{fno2d_forward.12} parent=0 // loop_footer_branch
    %9 = sbr.rel target = $region3
  $region8: #{fno2d_forward.12} parent=0 // loop_exit
    _

// kernel: fno2d_forward.18
$region0: #{fno2d_forward.18}
  #allocation0 [shape = 'u32[]', space=smem, size = 0x4, offset = 0x4, fixed_abs, tag = 'smem constant byte address 0x4 - core index']
  #allocation1 [shape = 'u32[144,128]{1,0:T(1,128)}', space=vmem, size = 0x12000, scoped, tag = 'internal scratch']
  %s0 = inlined_call_operand.vmem [shape: f32[2,16,625], index: 0, kind: input, shape index: {}]
  %s1 = inlined_call_operand.vmem [shape: f32[16,16], index: 1, kind: input, shape index: {}]
  %s2 = inlined_call_operand.vmem [shape: f32[16,1], index: 2, kind: input, shape index: {}]
  %s3 = inlined_call_operand.vmem [shape: f32[2,16,625], index: 3, kind: input, shape index: {}]
  %s4 = inlined_call_operand.vmem [shape: f32[2,16,625], index: 4, kind: output, shape index: {}]
  %s5 = sld [smem:[#allocation0]]
  $region49: #{fno2d_forward.18} parent=0
    _
  %s7 = ssub.s32 1, %s5
  %s8 = scalar_select 0, %s7, %s5
  loop: start=0, step=1, limit=4
  $region2: #{fno2d_forward.18} parent=0 // loop_pre_header
    _
  $region3: #{fno2d_forward.18} parent=0 // loop_header
    %s10 = sphi 0, %s14
    %p11 = scmp.ge.s32.totalorder %s10, 4
    %s17 = sphi 0, %s29
    %s18 = sphi 0, %s25
    %s19 = sphi 0, %s17
    %s20 = sphi 0, %s18
    %s21 = sphi 0, %s19
    %s22 = sphi 0, %s20
    %s34 = sphi 0, %s36
    %s37 = sphi 0, %s34
    %s38 = sphi 0, %s37
    %s54 = sphi 0, %s38
    %s58 = sphi 0, %s58
    %s60 = sphi 0, %s58
    %s61 = sphi 0, %s60
    %s75 = sphi 0, %s61
    %s79 = sphi 0, %s79
    %s81 = sphi 0, %s79
    %s82 = sphi 0, %s81
    %s96 = sphi 0, %s82
    %s104 = sphi 0, %s106
    %s107 = sphi 0, %s104
    %s108 = sphi 0, %s107
    %s124 = sphi 0, %s108
    %s132 = sphi 0, %s134
    %s135 = sphi 0, %s132
    %s136 = sphi 0, %s135
    %s152 = sphi 0, %s136
  $region4: #{fno2d_forward.18} parent=0 // loop_header_branch
    %13 = sbr.rel (%p11) target = $region8
  $region5: #{fno2d_forward.18} parent=0 // loop_body
    %s15 = ssub.s32 %s10, 1
    %s16 = ssub.s32 %s10, 2
    %s23 = sadd.s32 1, %s18
    %p24 = scmp.ge.s32.totalorder %s23, 1
    %s25 = scalar_select %p24, 0, %s23
    %s26 = sadd.s32 1, %s17
    %s27 = scalar_select %p24, %s26, %s17
    %p28 = scmp.ge.s32.totalorder %s27, 2
    %s29 = scalar_select %p28, 0, %s27
    %s30 = ssub.s32 %s17, %s29
    %s31 = ssub.s32 %s18, %s25
    %s32 = sor.u32 %s30, %s31
    %p33 = scmp.eq.s32.totalorder %s32, 0
    %s35 = sadd.s32 %s34, 1
    %s36 = scalar_select %p33, %s34, %s35
    %p39 = pneg %p33
    %p40 = scmp.eq.s32.totalorder %s10, 1
    %p41 = por %p39, %p40
    %p42 = scmp.ne.s32.totalorder %s34, %s37
    %p43 = scmp.eq.s32.totalorder %s10, 0
    %p44 = por %p42, %p43
    %p45 = scmp.ne.s32.totalorder %s34, %s37
    %p46 = scmp.eq.s32.totalorder %s15, 1
    %p47 = por %p45, %p46
    %p48 = scmp.ne.s32.totalorder %s37, %s38
    %p49 = scmp.eq.s32.totalorder %s15, 0
    %p50 = por %p48, %p49
    %p51 = scmp.ne.s32.totalorder %s37, %s38
    %p52 = scmp.eq.s32.totalorder %s16, 1
    %p53 = por %p51, %p52
    %p55 = scmp.ne.s32.totalorder %s38, %s54
    %p56 = scmp.eq.s32.totalorder %s16, 0
    %p57 = por %p55, %p56
    %s59 = sadd.s32 %s58, 1
    %p62 = scmp.eq.s32.totalorder %s10, 1
    %p63 = scmp.ne.s32.totalorder %s58, %s60
    %p64 = scmp.eq.s32.totalorder %s10, 0
    %p65 = por %p63, %p64
    %p66 = scmp.ne.s32.totalorder %s58, %s60
    %p67 = scmp.eq.s32.totalorder %s15, 1
    %p68 = por %p66, %p67
    %p69 = scmp.ne.s32.totalorder %s60, %s61
    %p70 = scmp.eq.s32.totalorder %s15, 0
    %p71 = por %p69, %p70
    %p72 = scmp.ne.s32.totalorder %s60, %s61
    %p73 = scmp.eq.s32.totalorder %s16, 1
    %p74 = por %p72, %p73
    %p76 = scmp.ne.s32.totalorder %s61, %s75
    %p77 = scmp.eq.s32.totalorder %s16, 0
    %p78 = por %p76, %p77
    %s80 = sadd.s32 %s79, 1
    %p83 = scmp.eq.s32.totalorder %s10, 1
    %p84 = scmp.ne.s32.totalorder %s79, %s81
    %p85 = scmp.eq.s32.totalorder %s10, 0
    %p86 = por %p84, %p85
    %p87 = scmp.ne.s32.totalorder %s79, %s81
    %p88 = scmp.eq.s32.totalorder %s15, 1
    %p89 = por %p87, %p88
    %p90 = scmp.ne.s32.totalorder %s81, %s82
    %p91 = scmp.eq.s32.totalorder %s15, 0
    %p92 = por %p90, %p91
    %p93 = scmp.ne.s32.totalorder %s81, %s82
    %p94 = scmp.eq.s32.totalorder %s16, 1
    %p95 = por %p93, %p94
    %p97 = scmp.ne.s32.totalorder %s82, %s96
    %p98 = scmp.eq.s32.totalorder %s16, 0
    %p99 = por %p97, %p98
    %s100 = ssub.s32 %s17, %s29
    %s101 = ssub.s32 %s18, %s25
    %s102 = sor.u32 %s100, %s101
    %p103 = scmp.eq.s32.totalorder %s102, 0
    %s105 = sadd.s32 %s104, 1
    %s106 = scalar_select %p103, %s104, %s105
    %p109 = pneg %p103
    %p110 = scmp.eq.s32.totalorder %s10, 1
    %p111 = por %p109, %p110
    %p112 = scmp.ne.s32.totalorder %s104, %s107
    %p113 = scmp.eq.s32.totalorder %s10, 0
    %p114 = por %p112, %p113
    %p115 = scmp.ne.s32.totalorder %s104, %s107
    %p116 = scmp.eq.s32.totalorder %s15, 1
    %p117 = por %p115, %p116
    %p118 = scmp.ne.s32.totalorder %s107, %s108
    %p119 = scmp.eq.s32.totalorder %s15, 0
    %p120 = por %p118, %p119
    %p121 = scmp.ne.s32.totalorder %s107, %s108
    %p122 = scmp.eq.s32.totalorder %s16, 1
    %p123 = por %p121, %p122
    %p125 = scmp.ne.s32.totalorder %s108, %s124
    %p126 = scmp.eq.s32.totalorder %s16, 0
    %p127 = por %p125, %p126
    %s128 = ssub.s32 %s17, %s29
    %s129 = ssub.s32 %s18, %s25
    %s130 = sor.u32 %s128, %s129
    %p131 = scmp.eq.s32.totalorder %s130, 0
    %s133 = sadd.s32 %s132, 1
    %s134 = scalar_select %p131, %s132, %s133
    %p137 = pneg %p131
    %p138 = scmp.eq.s32.totalorder %s10, 1
    %p139 = por %p137, %p138
    %p140 = scmp.ne.s32.totalorder %s132, %s135
    %p141 = scmp.eq.s32.totalorder %s10, 0
    %p142 = por %p140, %p141
    %p143 = scmp.ne.s32.totalorder %s132, %s135
    %p144 = scmp.eq.s32.totalorder %s15, 1
    %p145 = por %p143, %p144
    %p146 = scmp.ne.s32.totalorder %s135, %s136
    %p147 = scmp.eq.s32.totalorder %s15, 0
    %p148 = por %p146, %p147
    %p149 = scmp.ne.s32.totalorder %s135, %s136
    %p150 = scmp.eq.s32.totalorder %s16, 1
    %p151 = por %p149, %p150
    %p153 = scmp.ne.s32.totalorder %s136, %s152
    %p154 = scmp.eq.s32.totalorder %s16, 0
    %p155 = por %p153, %p154
    %p156 = scmp.le.s32.totalorder 1, %s10
    %p157 = scmp.lt.s32.totalorder %s10, 3
    %p158 = pnand %p156, %p157
    %p159 = pneg %p158
    // Predicated region
    $region9: #{fno2d_forward.18} parent=5 // pred_check
      _
    $region10: #{fno2d_forward.18} parent=5 // pred_check_branch
      %161 = sbr.rel (%p158) target = $region12
    $region11: #{fno2d_forward.18} parent=5 // pred_region
      %s162 = ssub.s32 %s10, 1
      // Predicated region
      $region13: #{fno2d_forward.18} parent=11 // pred_check
        %p163 = pneg %p71
      $region14: #{fno2d_forward.18} parent=11 // pred_check_branch
        %165 = sbr.rel (%p163) target = $region16
      $region15: #{fno2d_forward.18} parent=11 // pred_region
        _
      $region16: #{fno2d_forward.18} parent=11 // pred_fallthru
        _
      // Predicated region
      $region17: #{fno2d_forward.18} parent=11 // pred_check
        %p166 = pneg %p92
      $region18: #{fno2d_forward.18} parent=11 // pred_check_branch
        %168 = sbr.rel (%p166) target = $region20
      $region19: #{fno2d_forward.18} parent=11 // pred_region
        _
      $region20: #{fno2d_forward.18} parent=11 // pred_fallthru
        _
    $region12: #{fno2d_forward.18} parent=5 // pred_fallthru
      _
    %p169 = scmp.lt.s32.totalorder %s10, 2
    // Predicated region
    $region21: #{fno2d_forward.18} parent=5 // pred_check
      %p170 = pneg %p169
    $region22: #{fno2d_forward.18} parent=5 // pred_check_branch
      %172 = sbr.rel (%p170) target = $region24
    $region23: #{fno2d_forward.18} parent=5 // pred_region
      // Predicated region
      $region25: #{fno2d_forward.18} parent=23 // pred_check
        %p173 = pneg %p44
      $region26: #{fno2d_forward.18} parent=23 // pred_check_branch
        %175 = sbr.rel (%p173) target = $region28
      $region27: #{fno2d_forward.18} parent=23 // pred_region
        %s176 = smul.u32 5, %s18
        %p177 = scmp.lt.s32.totalorder %s17, 1
        %s178 = scalar_select %p177, %s17, 1
        %p179 = scmp.lt.s32.totalorder %s176, 4
        %s180 = scalar_select %p179, %s176, 4
        %s181 = smul.addr %s178, 10
        %s182 = sadd.s32 %s180, %s181
        %s183 = smul.addr %s182, 8
        %s184 = scalar_lea.vmem %s0, %s183
        %s185 = smul.u32 5, %s18
      $region28: #{fno2d_forward.18} parent=23 // pred_fallthru
        _
      // Predicated region
      $region29: #{fno2d_forward.18} parent=23 // pred_check
        %p186 = pneg %p114
      $region30: #{fno2d_forward.18} parent=23 // pred_check_branch
        %188 = sbr.rel (%p186) target = $region32
      $region31: #{fno2d_forward.18} parent=23 // pred_region
        %s189 = smul.u32 5, %s18
        %p190 = scmp.lt.s32.totalorder %s17, 1
        %s191 = scalar_select %p190, %s17, 1
        %p192 = scmp.lt.s32.totalorder %s189, 4
        %s193 = scalar_select %p192, %s189, 4
        %s194 = smul.addr %s191, 10
        %s195 = sadd.s32 %s193, %s194
        %s196 = smul.addr %s195, 8
        %s197 = scalar_lea.vmem %s3, %s196
        %s198 = smul.u32 5, %s18
      $region32: #{fno2d_forward.18} parent=23 // pred_fallthru
        _
    $region24: #{fno2d_forward.18} parent=5 // pred_fallthru
      _
    %p199 = scmp.le.s32.totalorder 1, %s10
    %p200 = scmp.lt.s32.totalorder %s10, 3
    %p201 = pnand %p199, %p200
    %p202 = pneg %p201
    // Predicated region
    $region33: #{fno2d_forward.18} parent=5 // pred_check
      _
    $region34: #{fno2d_forward.18} parent=5 // pred_check_branch
      %204 = sbr.rel (%p201) target = $region36
    $region35: #{fno2d_forward.18} parent=5 // pred_region
      %s205 = ssub.s32 %s10, 1
      %s206 = smul.u32 5, %s20
      %p207 = scmp.lt.s32.totalorder %s19, 1
      %s208 = scalar_select %p207, %s19, 1
      %p209 = scmp.lt.s32.totalorder %s206, 4
      %s210 = scalar_select %p209, %s206, 4
      %s211 = smul.addr %s208, 10
      %s212 = sadd.s32 %s210, %s211
      %s213 = smul.addr %s212, 8
      %s214 = scalar_lea.vmem %s0, %s213
      %p215 = pneg %p50
      %p216 = pneg %p47
      %p217 = pneg %p71
      %p218 = pneg %p68
      %p219 = pneg %p92
      %p220 = pneg %p89
      %s221 = smul.u32 5, %s20
      %p222 = scmp.lt.s32.totalorder %s19, 1
      %s223 = scalar_select %p222, %s19, 1
      %p224 = scmp.lt.s32.totalorder %s221, 4
      %s225 = scalar_select %p224, %s221, 4
      %s226 = smul.addr %s223, 10
      %s227 = sadd.s32 %s225, %s226
      %s228 = smul.addr %s227, 8
      %s229 = scalar_lea.vmem %s3, %s228
      %p230 = pneg %p120
      %p231 = pneg %p117
      %p232 = pneg %p148
      %p233 = pneg %p145
      %s234 = smul.u32 5, %s20
      %p235 = scmp.lt.s32.totalorder %s19, 1
      %s236 = scalar_select %p235, %s19, 1
      %p237 = scmp.lt.s32.totalorder %s234, 4
      %s238 = scalar_select %p237, %s234, 4
      %s239 = smul.addr %s236, 10
      %s240 = sadd.s32 %s238, %s239
      %s241 = smul.addr %s240, 8
      %s242 = scalar_lea.vmem %s4, %s241
      %s243 = smul.u32 5, %s20
      %p244 = scmp.lt.s32.totalorder %s19, 1
      %s245 = scalar_select %p244, %s19, 1
      %p246 = scmp.lt.s32.totalorder %s243, 4
      %s247 = scalar_select %p246, %s243, 4
      %s248 = smul.addr %s245, 10
      %s249 = sadd.s32 %s247, %s248
      %s250 = smul.addr %s249, 8
      %s251 = scalar_lea.vmem %s0, %s250
      %s252 = smul.u32 5, %s20
      %s253 = smul.u32 5, %s20
      %p254 = scmp.lt.s32.totalorder %s19, 1
      %s255 = scalar_select %p254, %s19, 1
      %p256 = scmp.lt.s32.totalorder %s253, 4
      %s257 = scalar_select %p256, %s253, 4
      %s258 = smul.addr %s255, 10
      %s259 = sadd.s32 %s257, %s258
      %s260 = smul.addr %s259, 8
      %s261 = scalar_lea.vmem %s3, %s260
      %s262 = smul.u32 5, %s20
      %s263 = smul.u32 5, %s20
      %p264 = scmp.lt.s32.totalorder %s19, 1
      %s265 = scalar_select %p264, %s19, 1
      %p266 = scmp.lt.s32.totalorder %s263, 4
      %s267 = scalar_select %p266, %s263, 4
      %s268 = smul.addr %s265, 10
      %s269 = sadd.s32 %s267, %s268
      %s270 = smul.addr %s269, 8
      %s271 = scalar_lea.vmem %s4, %s270
      %s272 = smul.u32 5, %s20
      %v274 = vld [vmem:[%s251] sm:$0xff]
      %v275 = vld [vmem:[%s251 + $0x8] sm:$0xff]
      %v276 = vld [vmem:[%s251 + $0x10] sm:$0xff]
      %v277 = vld [vmem:[%s251 + $0x18] sm:$0xff]
      %v278 = vld [vmem:[%s251 + $0x20] sm:$0xff]
      %v279 = vld [vmem:[%s251 + $0x28] sm:$0xff]
      %v280 = vld [vmem:[%s251 + $0x30] sm:$0xff]
      %v281 = vld [vmem:[%s251 + $0x38] sm:$0xff]
      %v282 = vld [vmem:[%s251 + $0x40] sm:$0xff]
      %v283 = vld [vmem:[%s251 + $0x48] sm:$0xff]
      %v284 = vpack.c.bf16 %v279, %v274
      %v285 = vpack.c.bf16 %v280, %v275
      %v286 = vpack.c.bf16 %v281, %v276
      %v287 = vpack.c.bf16 %v282, %v277
      %v288 = vpack.c.bf16 %v283, %v278
      %v289 = vld [vmem:[%s1] sm:$0xff]
      %v290 = vld [vmem:[%s1 + $0x8] sm:$0xff]
      %v291 = vpack.c.bf16 %v290, %v289
      %v292 = vld [vmem:[%s2] sm:$0xff]
      %v293 = vld [vmem:[%s2 + $0x8] sm:$0xff]
      %295 = vset.pattern.permute.xlu0 0
      %296 = vperm.xlu0 %295, %v292
      %v297 = vpop.permute.xlu0 %296
      %300 = vset.pattern.permute.xlu0 0
      %301 = vperm.xlu0 %300, %v293
      %v302 = vpop.permute.xlu0 %301
      %vm304 = vcmask 130048
      %v306 = vsel %vm304, %v291, 0
      %308 = vmatprep.subr.bf16.mxu0 %v285
      %309 = vmatpush1.bf16.msra.mxu0 %v284
      %310 = vmatprep.subr.bf16.mxu0 0
      %311 = vmatpush1.bf16.msra.mxu0 0
      %312 = vmatprep.subr.bf16.mxu0 0
      %313 = vmatpush1.bf16.msra.mxu0 0
      %314 = vmatprep.subr.bf16.mxu0 0
      %315 = vmatpush1.bf16.msra.mxu0 0
      %316 = vmatprep.subr.bf16.mxu0 0
      %317 = vmatpush1.bf16.msra.mxu0 0
      %318 = vmatprep.subr.bf16.mxu0 0
      %319 = vmatpush1.bf16.msra.mxu0 0
      %320 = vmatprep.subr.bf16.mxu0 0
      %321 = vmatpush1.bf16.msra.mxu0 0
      %322 = vmatprep.subr.bf16.mxu0 0
      %323 = vmatpush1.bf16.msra.mxu0 0
      %324 = vmatprep.subr.bf16.mxu0 0
      %325 = vmatpush1.bf16.msra.mxu0 0
      %326 = vmatprep.subr.bf16.mxu0 0
      %327 = vmatpush1.bf16.msra.mxu0 0
      %328 = vmatprep.subr.bf16.mxu0 0
      %329 = vmatpush1.bf16.msra.mxu0 0
      %330 = vmatprep.subr.bf16.mxu0 0
      %331 = vmatpush1.bf16.msra.mxu0 0
      %332 = vmatprep.subr.bf16.mxu0 0
      %333 = vmatpush1.bf16.msra.mxu0 0
      %334 = vmatprep.subr.bf16.mxu0 0
      %335 = vmatpush1.bf16.msra.mxu0 0
      %336 = vmatprep.subr.bf16.mxu0 0
      %337 = vmatpush1.bf16.msra.mxu0 0
      %338 = vmatprep.subr.bf16.mxu0 0
      %339 = vmatpush1.bf16.msra.mxu0 0
      %340 = vmatprep.mubr.bf16.mxu0 0
      %341 = vmatmul.mubr.bf16.gmra.mrb[0].mxu0 %v306
      %v342 = vpop.f32.mrb[0].mxu0
      %v343 = vadd.f32 %v297, %v342
      %v344 = vpop.f32.mrb[0].mxu0
      %v345 = vadd.f32 %v297, %v344
      %v346 = vpop.f32.mrb[0].mxu0
      %v347 = vadd.f32 %v302, %v346
      %v348 = vpop.f32.mrb[0].mxu0
      %v349 = vadd.f32 %v302, %v348
      %350 = vdwg.mxu0
      %351 = vmatprep.subr.bf16.mxu0 %v287
      %352 = vmatpush1.bf16.msra.mxu0 %v286
      %353 = vmatprep.subr.bf16.mxu0 0
      %354 = vmatpush1.bf16.msra.mxu0 0
      %355 = vmatprep.subr.bf16.mxu0 0
      %356 = vmatpush1.bf16.msra.mxu0 0
      %357 = vmatprep.subr.bf16.mxu0 0
      %358 = vmatpush1.bf16.msra.mxu0 0
      %359 = vmatprep.subr.bf16.mxu0 0
      %360 = vmatpush1.bf16.msra.mxu0 0
      %361 = vmatprep.subr.bf16.mxu0 0
      %362 = vmatpush1.bf16.msra.mxu0 0
      %363 = vmatprep.subr.bf16.mxu0 0
      %364 = vmatpush1.bf16.msra.mxu0 0
      %365 = vmatprep.subr.bf16.mxu0 0
      %366 = vmatpush1.bf16.msra.mxu0 0
      %367 = vmatprep.subr.bf16.mxu0 0
      %368 = vmatpush1.bf16.msra.mxu0 0
      %369 = vmatprep.subr.bf16.mxu0 0
      %370 = vmatpush1.bf16.msra.mxu0 0
      %371 = vmatprep.subr.bf16.mxu0 0
      %372 = vmatpush1.bf16.msra.mxu0 0
      %373 = vmatprep.subr.bf16.mxu0 0
      %374 = vmatpush1.bf16.msra.mxu0 0
      %375 = vmatprep.subr.bf16.mxu0 0
      %376 = vmatpush1.bf16.msra.mxu0 0
      %377 = vmatprep.subr.bf16.mxu0 0
      %378 = vmatpush1.bf16.msra.mxu0 0
      %379 = vmatprep.subr.bf16.mxu0 0
      %380 = vmatpush1.bf16.msra.mxu0 0
      %381 = vmatprep.subr.bf16.mxu0 0
      %382 = vmatpush1.bf16.msra.mxu0 0
      %383 = vmatprep.mubr.bf16.mxu0 0
      %384 = vmatmul.mubr.bf16.gmra.mrb[0].mxu0 %v306
      %v385 = vpop.f32.mrb[0].mxu0
      %v386 = vadd.f32 %v297, %v385
      %v387 = vpop.f32.mrb[0].mxu0
      %v388 = vadd.f32 %v297, %v387
      %v389 = vpop.f32.mrb[0].mxu0
      %v390 = vadd.f32 %v302, %v389
      %v391 = vpop.f32.mrb[0].mxu0
      %v392 = vadd.f32 %v302, %v391
      %393 = vdwg.mxu0
      %394 = vmatprep.subr.bf16.mxu0 0
      %395 = vmatpush1.bf16.msra.mxu0 %v288
      %396 = vmatprep.subr.bf16.mxu0 0
      %397 = vmatpush1.bf16.msra.mxu0 0
      %398 = vmatprep.subr.bf16.mxu0 0
      %399 = vmatpush1.bf16.msra.mxu0 0
      %400 = vmatprep.subr.bf16.mxu0 0
      %401 = vmatpush1.bf16.msra.mxu0 0
      %402 = vmatprep.subr.bf16.mxu0 0
      %403 = vmatpush1.bf16.msra.mxu0 0
      %404 = vmatprep.subr.bf16.mxu0 0
      %405 = vmatpush1.bf16.msra.mxu0 0
      %406 = vmatprep.subr.bf16.mxu0 0
      %407 = vmatpush1.bf16.msra.mxu0 0
      %408 = vmatprep.subr.bf16.mxu0 0
      %409 = vmatpush1.bf16.msra.mxu0 0
      %410 = vmatprep.subr.bf16.mxu0 0
      %411 = vmatpush1.bf16.msra.mxu0 0
      %412 = vmatprep.subr.bf16.mxu0 0
      %413 = vmatpush1.bf16.msra.mxu0 0
      %414 = vmatprep.subr.bf16.mxu0 0
      %415 = vmatpush1.bf16.msra.mxu0 0
      %416 = vmatprep.subr.bf16.mxu0 0
      %417 = vmatpush1.bf16.msra.mxu0 0
      %418 = vmatprep.subr.bf16.mxu0 0
      %419 = vmatpush1.bf16.msra.mxu0 0
      %420 = vmatprep.subr.bf16.mxu0 0
      %421 = vmatpush1.bf16.msra.mxu0 0
      %422 = vmatprep.subr.bf16.mxu0 0
      %423 = vmatpush1.bf16.msra.mxu0 0
      %424 = vmatprep.subr.bf16.mxu0 0
      %425 = vmatpush1.bf16.msra.mxu0 0
      %426 = vmatprep.mubr.bf16.mxu0 0
      %427 = vmatmul.mubr.bf16.gmra.mrb[0].mxu0 %v306
      %v428 = vpop.f32.mrb[0].mxu0
      %v429 = vadd.f32 %v297, %v428
      %v430 = vpop.f32.mrb[0].mxu0
      %v431 = vpop.f32.mrb[0].mxu0
      %v432 = vadd.f32 %v302, %v431
      %v433 = vpop.f32.mrb[0].mxu0
      %434 = vdwg.mxu0
      %v435 = vld [vmem:[%s261] sm:$0xff]
      %v436 = vld [vmem:[%s261 + $0x8] sm:$0xff]
      %v437 = vld [vmem:[%s261 + $0x10] sm:$0xff]
      %v438 = vld [vmem:[%s261 + $0x18] sm:$0xff]
      %v439 = vld [vmem:[%s261 + $0x20] sm:$0xff]
      %v440 = vld [vmem:[%s261 + $0x28] sm:$0xff]
      %v441 = vld [vmem:[%s261 + $0x30] sm:$0xff]
      %v442 = vld [vmem:[%s261 + $0x38] sm:$0xff]
      %v443 = vld [vmem:[%s261 + $0x40] sm:$0xff]
      %v444 = vld [vmem:[%s261 + $0x48] sm:$0xff]
      %v445 = vadd.f32 %v343, %v435
      %v446 = vadd.f32 %v345, %v436
      %v447 = vadd.f32 %v386, %v437
      %v448 = vadd.f32 %v388, %v438
      %v449 = vadd.f32 %v429, %v439
      %v450 = vadd.f32 %v347, %v440
      %v451 = vadd.f32 %v349, %v441
      %v452 = vadd.f32 %v390, %v442
      %v453 = vadd.f32 %v392, %v443
      %v454 = vadd.f32 %v432, %v444
      %455 = vst [vmem:[%s271] sm:$0xff] %v445
      %456 = vst [vmem:[%s271 + $0x8] sm:$0xff] %v446
      %457 = vst [vmem:[%s271 + $0x10] sm:$0xff] %v447
      %458 = vst [vmem:[%s271 + $0x18] sm:$0xff] %v448
      %459 = vst [vmem:[%s271 + $0x20] sm:$0xff] %v449
      %460 = vst [vmem:[%s271 + $0x28] sm:$0xff] %v450
      %461 = vst [vmem:[%s271 + $0x30] sm:$0xff] %v451
      %462 = vst [vmem:[%s271 + $0x38] sm:$0xff] %v452
      %463 = vst [vmem:[%s271 + $0x40] sm:$0xff] %v453
      %464 = vst [vmem:[%s271 + $0x48] sm:$0xff] %v454
      %s465 = smul.u32 5, %s20
      %p466 = scmp.lt.s32.totalorder %s19, 1
      %s467 = scalar_select %p466, %s19, 1
      %p468 = scmp.lt.s32.totalorder %s465, 4
      %s469 = scalar_select %p468, %s465, 4
      %s470 = smul.addr %s467, 10
      %s471 = sadd.s32 %s469, %s470
      %s472 = smul.addr %s471, 8
      %s473 = scalar_lea.vmem %s4, %s472
      // Predicated region
      $region37: #{fno2d_forward.18} parent=35 // pred_check
        %p474 = pneg %p145
      $region38: #{fno2d_forward.18} parent=35 // pred_check_branch
        %476 = sbr.rel (%p474) target = $region40
      $region39: #{fno2d_forward.18} parent=35 // pred_region
        %s477 = smul.u32 5, %s20
      $region40: #{fno2d_forward.18} parent=35 // pred_fallthru
        _
    $region36: #{fno2d_forward.18} parent=5 // pred_fallthru
      _
    %p478 = scmp.le.s32.totalorder 2, %s10
    // Predicated region
    $region41: #{fno2d_forward.18} parent=5 // pred_check
      %p479 = pneg %p478
    $region42: #{fno2d_forward.18} parent=5 // pred_check_branch
      %481 = sbr.rel (%p479) target = $region44
    $region43: #{fno2d_forward.18} parent=5 // pred_region
      %s482 = ssub.s32 %s10, 2
      // Predicated region
      $region45: #{fno2d_forward.18} parent=43 // pred_check
        %p483 = pneg %p151
      $region46: #{fno2d_forward.18} parent=43 // pred_check_branch
        %485 = sbr.rel (%p483) target = $region48
      $region47: #{fno2d_forward.18} parent=43 // pred_region
        %s486 = smul.u32 5, %s22
        %p487 = scmp.lt.s32.totalorder %s21, 1
        %s488 = scalar_select %p487, %s21, 1
        %p489 = scmp.lt.s32.totalorder %s486, 4
        %s490 = scalar_select %p489, %s486, 4
        %s491 = smul.addr %s488, 10
        %s492 = sadd.s32 %s490, %s491
        %s493 = smul.addr %s492, 8
        %s494 = scalar_lea.vmem %s4, %s493
      $region48: #{fno2d_forward.18} parent=43 // pred_fallthru
        _
    $region44: #{fno2d_forward.18} parent=5 // pred_fallthru
      _
  $region6: #{fno2d_forward.18} parent=0 // loop_footer
    %s14 = sadd.s32 1, %s10
  $region7: #{fno2d_forward.18} parent=0 // loop_footer_branch
    %9 = sbr.rel target = $region3
  $region8: #{fno2d_forward.18} parent=0 // loop_exit
    _

// kernel: fno2d_forward.19
$region0: #{fno2d_forward.19}
  #allocation0 [shape = 'u32[]', space=smem, size = 0x4, offset = 0x4, fixed_abs, tag = 'smem constant byte address 0x4 - core index']
  #allocation1 [shape = 'u32[144,128]{1,0:T(1,128)}', space=vmem, size = 0x12000, scoped, tag = 'internal scratch']
  #allocation2 [shape = 'f32[1,1]{1,0:T(1,128)S(1)}', space=vmem, size = 0x200, scoped, tag = 'scoped memory for fno2d_forward.19']
  %s0 = inlined_call_operand.vmem [shape: f32[2,16,256], index: 0, kind: input, shape index: {}]
  %s1 = inlined_call_operand.vmem [shape: f32[128,16], index: 1, kind: input, shape index: {}]
  %s2 = inlined_call_operand.vmem [shape: f32[128,1], index: 2, kind: input, shape index: {}]
  %s3 = inlined_call_operand.vmem [shape: f32[1,128], index: 3, kind: input, shape index: {}]
  %s4 = inlined_call_operand.<no memory space> [shape: f32[1,1], index: 4, kind: input, shape index: {}]
  %s5 = inlined_call_operand.vmem [shape: f32[2,1,256], index: 5, kind: output, shape index: {}]
  %s6 = sld [smem:[#allocation0]]
  $region53: #{fno2d_forward.19} parent=0
    _
  %s8 = ssub.s32 1, %s6
  %s9 = scalar_select 0, %s8, %s6
  %v10 = vstv %s4
  %11 = vst [vmem:[#allocation2] sm:$0x1] %v10
  loop: start=0, step=1, limit=4
  $region2: #{fno2d_forward.19} parent=0 // loop_pre_header
    _
  $region3: #{fno2d_forward.19} parent=0 // loop_header
    %s13 = sphi 0, %s17
    %p14 = scmp.ge.s32.totalorder %s13, 4
    %s20 = sphi 0, %s32
    %s21 = sphi 0, %s28
    %s22 = sphi 0, %s20
    %s23 = sphi 0, %s21
    %s24 = sphi 0, %s22
    %s25 = sphi 0, %s23
    %s37 = sphi 0, %s39
    %s40 = sphi 0, %s37
    %s41 = sphi 0, %s40
    %s57 = sphi 0, %s41
    %s61 = sphi 0, %s61
    %s63 = sphi 0, %s61
    %s64 = sphi 0, %s63
    %s78 = sphi 0, %s64
    %s82 = sphi 0, %s82
    %s84 = sphi 0, %s82
    %s85 = sphi 0, %s84
    %s99 = sphi 0, %s85
    %s103 = sphi 0, %s103
    %s105 = sphi 0, %s103
    %s106 = sphi 0, %s105
    %s120 = sphi 0, %s106
    %s124 = sphi 0, %s124
    %s126 = sphi 0, %s124
    %s127 = sphi 0, %s126
    %s141 = sphi 0, %s127
    %s149 = sphi 0, %s151
    %s152 = sphi 0, %s149
    %s153 = sphi 0, %s152
    %s169 = sphi 0, %s153
  $region4: #{fno2d_forward.19} parent=0 // loop_header_branch
    %16 = sbr.rel (%p14) target = $region8
  $region5: #{fno2d_forward.19} parent=0 // loop_body
    %s18 = ssub.s32 %s13, 1
    %s19 = ssub.s32 %s13, 2
    %s26 = sadd.s32 1, %s21
    %p27 = scmp.ge.s32.totalorder %s26, 1
    %s28 = scalar_select %p27, 0, %s26
    %s29 = sadd.s32 1, %s20
    %s30 = scalar_select %p27, %s29, %s20
    %p31 = scmp.ge.s32.totalorder %s30, 2
    %s32 = scalar_select %p31, 0, %s30
    %s33 = ssub.s32 %s20, %s32
    %s34 = ssub.s32 %s21, %s28
    %s35 = sor.u32 %s33, %s34
    %p36 = scmp.eq.s32.totalorder %s35, 0
    %s38 = sadd.s32 %s37, 1
    %s39 = scalar_select %p36, %s37, %s38
    %p42 = pneg %p36
    %p43 = scmp.eq.s32.totalorder %s13, 1
    %p44 = por %p42, %p43
    %p45 = scmp.ne.s32.totalorder %s37, %s40
    %p46 = scmp.eq.s32.totalorder %s13, 0
    %p47 = por %p45, %p46
    %p48 = scmp.ne.s32.totalorder %s37, %s40
    %p49 = scmp.eq.s32.totalorder %s18, 1
    %p50 = por %p48, %p49
    %p51 = scmp.ne.s32.totalorder %s40, %s41
    %p52 = scmp.eq.s32.totalorder %s18, 0
    %p53 = por %p51, %p52
    %p54 = scmp.ne.s32.totalorder %s40, %s41
    %p55 = scmp.eq.s32.totalorder %s19, 1
    %p56 = por %p54, %p55
    %p58 = scmp.ne.s32.totalorder %s41, %s57
    %p59 = scmp.eq.s32.totalorder %s19, 0
    %p60 = por %p58, %p59
    %s62 = sadd.s32 %s61, 1
    %p65 = scmp.eq.s32.totalorder %s13, 1
    %p66 = scmp.ne.s32.totalorder %s61, %s63
    %p67 = scmp.eq.s32.totalorder %s13, 0
    %p68 = por %p66, %p67
    %p69 = scmp.ne.s32.totalorder %s61, %s63
    %p70 = scmp.eq.s32.totalorder %s18, 1
    %p71 = por %p69, %p70
    %p72 = scmp.ne.s32.totalorder %s63, %s64
    %p73 = scmp.eq.s32.totalorder %s18, 0
    %p74 = por %p72, %p73
    %p75 = scmp.ne.s32.totalorder %s63, %s64
    %p76 = scmp.eq.s32.totalorder %s19, 1
    %p77 = por %p75, %p76
    %p79 = scmp.ne.s32.totalorder %s64, %s78
    %p80 = scmp.eq.s32.totalorder %s19, 0
    %p81 = por %p79, %p80
    %s83 = sadd.s32 %s82, 1
    %p86 = scmp.eq.s32.totalorder %s13, 1
    %p87 = scmp.ne.s32.totalorder %s82, %s84
    %p88 = scmp.eq.s32.totalorder %s13, 0
    %p89 = por %p87, %p88
    %p90 = scmp.ne.s32.totalorder %s82, %s84
    %p91 = scmp.eq.s32.totalorder %s18, 1
    %p92 = por %p90, %p91
    %p93 = scmp.ne.s32.totalorder %s84, %s85
    %p94 = scmp.eq.s32.totalorder %s18, 0
    %p95 = por %p93, %p94
    %p96 = scmp.ne.s32.totalorder %s84, %s85
    %p97 = scmp.eq.s32.totalorder %s19, 1
    %p98 = por %p96, %p97
    %p100 = scmp.ne.s32.totalorder %s85, %s99
    %p101 = scmp.eq.s32.totalorder %s19, 0
    %p102 = por %p100, %p101
    %s104 = sadd.s32 %s103, 1
    %p107 = scmp.eq.s32.totalorder %s13, 1
    %p108 = scmp.ne.s32.totalorder %s103, %s105
    %p109 = scmp.eq.s32.totalorder %s13, 0
    %p110 = por %p108, %p109
    %p111 = scmp.ne.s32.totalorder %s103, %s105
    %p112 = scmp.eq.s32.totalorder %s18, 1
    %p113 = por %p111, %p112
    %p114 = scmp.ne.s32.totalorder %s105, %s106
    %p115 = scmp.eq.s32.totalorder %s18, 0
    %p116 = por %p114, %p115
    %p117 = scmp.ne.s32.totalorder %s105, %s106
    %p118 = scmp.eq.s32.totalorder %s19, 1
    %p119 = por %p117, %p118
    %p121 = scmp.ne.s32.totalorder %s106, %s120
    %p122 = scmp.eq.s32.totalorder %s19, 0
    %p123 = por %p121, %p122
    %s125 = sadd.s32 %s124, 1
    %p128 = scmp.eq.s32.totalorder %s13, 1
    %p129 = scmp.ne.s32.totalorder %s124, %s126
    %p130 = scmp.eq.s32.totalorder %s13, 0
    %p131 = por %p129, %p130
    %p132 = scmp.ne.s32.totalorder %s124, %s126
    %p133 = scmp.eq.s32.totalorder %s18, 1
    %p134 = por %p132, %p133
    %p135 = scmp.ne.s32.totalorder %s126, %s127
    %p136 = scmp.eq.s32.totalorder %s18, 0
    %p137 = por %p135, %p136
    %p138 = scmp.ne.s32.totalorder %s126, %s127
    %p139 = scmp.eq.s32.totalorder %s19, 1
    %p140 = por %p138, %p139
    %p142 = scmp.ne.s32.totalorder %s127, %s141
    %p143 = scmp.eq.s32.totalorder %s19, 0
    %p144 = por %p142, %p143
    %s145 = ssub.s32 %s20, %s32
    %s146 = ssub.s32 %s21, %s28
    %s147 = sor.u32 %s145, %s146
    %p148 = scmp.eq.s32.totalorder %s147, 0
    %s150 = sadd.s32 %s149, 1
    %s151 = scalar_select %p148, %s149, %s150
    %p154 = pneg %p148
    %p155 = scmp.eq.s32.totalorder %s13, 1
    %p156 = por %p154, %p155
    %p157 = scmp.ne.s32.totalorder %s149, %s152
    %p158 = scmp.eq.s32.totalorder %s13, 0
    %p159 = por %p157, %p158
    %p160 = scmp.ne.s32.totalorder %s149, %s152
    %p161 = scmp.eq.s32.totalorder %s18, 1
    %p162 = por %p160, %p161
    %p163 = scmp.ne.s32.totalorder %s152, %s153
    %p164 = scmp.eq.s32.totalorder %s18, 0
    %p165 = por %p163, %p164
    %p166 = scmp.ne.s32.totalorder %s152, %s153
    %p167 = scmp.eq.s32.totalorder %s19, 1
    %p168 = por %p166, %p167
    %p170 = scmp.ne.s32.totalorder %s153, %s169
    %p171 = scmp.eq.s32.totalorder %s19, 0
    %p172 = por %p170, %p171
    %p173 = scmp.le.s32.totalorder 1, %s13
    %p174 = scmp.lt.s32.totalorder %s13, 3
    %p175 = pnand %p173, %p174
    %p176 = pneg %p175
    // Predicated region
    $region9: #{fno2d_forward.19} parent=5 // pred_check
      _
    $region10: #{fno2d_forward.19} parent=5 // pred_check_branch
      %178 = sbr.rel (%p175) target = $region12
    $region11: #{fno2d_forward.19} parent=5 // pred_region
      %s179 = ssub.s32 %s13, 1
      // Predicated region
      $region13: #{fno2d_forward.19} parent=11 // pred_check
        %p180 = pneg %p74
      $region14: #{fno2d_forward.19} parent=11 // pred_check_branch
        %182 = sbr.rel (%p180) target = $region16
      $region15: #{fno2d_forward.19} parent=11 // pred_region
        _
      $region16: #{fno2d_forward.19} parent=11 // pred_fallthru
        _
      // Predicated region
      $region17: #{fno2d_forward.19} parent=11 // pred_check
        %p183 = pneg %p95
      $region18: #{fno2d_forward.19} parent=11 // pred_check_branch
        %185 = sbr.rel (%p183) target = $region20
      $region19: #{fno2d_forward.19} parent=11 // pred_region
        _
      $region20: #{fno2d_forward.19} parent=11 // pred_fallthru
        _
      // Predicated region
      $region21: #{fno2d_forward.19} parent=11 // pred_check
        %p186 = pneg %p116
      $region22: #{fno2d_forward.19} parent=11 // pred_check_branch
        %188 = sbr.rel (%p186) target = $region24
      $region23: #{fno2d_forward.19} parent=11 // pred_region
        _
      $region24: #{fno2d_forward.19} parent=11 // pred_fallthru
        _
      // Predicated region
      $region25: #{fno2d_forward.19} parent=11 // pred_check
        %p189 = pneg %p137
      $region26: #{fno2d_forward.19} parent=11 // pred_check_branch
        %191 = sbr.rel (%p189) target = $region28
      $region27: #{fno2d_forward.19} parent=11 // pred_region
        _
      $region28: #{fno2d_forward.19} parent=11 // pred_fallthru
        _
    $region12: #{fno2d_forward.19} parent=5 // pred_fallthru
      _
    %p192 = scmp.lt.s32.totalorder %s13, 2
    // Predicated region
    $region29: #{fno2d_forward.19} parent=5 // pred_check
      %p193 = pneg %p192
    $region30: #{fno2d_forward.19} parent=5 // pred_check_branch
      %195 = sbr.rel (%p193) target = $region32
    $region31: #{fno2d_forward.19} parent=5 // pred_region
      // Predicated region
      $region33: #{fno2d_forward.19} parent=31 // pred_check
        %p196 = pneg %p47
      $region34: #{fno2d_forward.19} parent=31 // pred_check_branch
        %198 = sbr.rel (%p196) target = $region36
      $region35: #{fno2d_forward.19} parent=31 // pred_region
        %s199 = smul.u32 2, %s21
        %p200 = scmp.lt.s32.totalorder %s20, 1
        %s201 = scalar_select %p200, %s20, 1
        %p202 = scmp.lt.s32.totalorder %s199, 1
        %s203 = scalar_select %p202, %s199, 1
        %s204 = smul.addr %s201, 4
        %s205 = sadd.s32 %s203, %s204
        %s206 = smul.addr %s205, 8
        %s207 = scalar_lea.vmem %s0, %s206
        %s208 = smul.u32 2, %s21
      $region36: #{fno2d_forward.19} parent=31 // pred_fallthru
        _
    $region32: #{fno2d_forward.19} parent=5 // pred_fallthru
      _
    %p209 = scmp.le.s32.totalorder 1, %s13
    %p210 = scmp.lt.s32.totalorder %s13, 3
    %p211 = pnand %p209, %p210
    %p212 = pneg %p211
    // Predicated region
    $region37: #{fno2d_forward.19} parent=5 // pred_check
      _
    $region38: #{fno2d_forward.19} parent=5 // pred_check_branch
      %214 = sbr.rel (%p211) target = $region40
    $region39: #{fno2d_forward.19} parent=5 // pred_region
      %s215 = ssub.s32 %s13, 1
      %s216 = smul.u32 2, %s23
      %p217 = scmp.lt.s32.totalorder %s22, 1
      %s218 = scalar_select %p217, %s22, 1
      %p219 = scmp.lt.s32.totalorder %s216, 1
      %s220 = scalar_select %p219, %s216, 1
      %s221 = smul.addr %s218, 4
      %s222 = sadd.s32 %s220, %s221
      %s223 = smul.addr %s222, 8
      %s224 = scalar_lea.vmem %s0, %s223
      %p225 = pneg %p53
      %p226 = pneg %p50
      %p227 = pneg %p74
      %p228 = pneg %p71
      %p229 = pneg %p95
      %p230 = pneg %p92
      %p231 = pneg %p116
      %p232 = pneg %p113
      %p233 = pneg %p137
      %p234 = pneg %p134
      %p235 = pneg %p165
      %p236 = pneg %p162
      %s237 = smul.u32 2, %s23
      %p238 = scmp.lt.s32.totalorder %s22, 1
      %s239 = scalar_select %p238, %s22, 1
      %p240 = scmp.lt.s32.totalorder %s237, 1
      %s241 = scalar_select %p240, %s237, 1
      %s242 = smul.addr %s239, 2
      %s243 = sadd.s32 %s241, %s242
      %s244 = scalar_lea.vmem %s5, %s243
      %s245 = smul.u32 2, %s23
      %p246 = scmp.lt.s32.totalorder %s22, 1
      %s247 = scalar_select %p246, %s22, 1
      %p248 = scmp.lt.s32.totalorder %s245, 1
      %s249 = scalar_select %p248, %s245, 1
      %s250 = smul.addr %s247, 4
      %s251 = sadd.s32 %s249, %s250
      %s252 = smul.addr %s251, 8
      %s253 = scalar_lea.vmem %s0, %s252
      %s254 = smul.u32 2, %s23
      %s255 = smul.u32 2, %s23
      %p256 = scmp.lt.s32.totalorder %s22, 1
      %s257 = scalar_select %p256, %s22, 1
      %p258 = scmp.lt.s32.totalorder %s255, 1
      %s259 = scalar_select %p258, %s255, 1
      %s260 = smul.addr %s257, 2
      %s261 = sadd.s32 %s259, %s260
      %s262 = scalar_lea.vmem %s5, %s261
      %s263 = smul.u32 2, %s23
      %v265 = vld [vmem:[%s253] sm:$0xff]
      %v266 = vld [vmem:[%s253 + $0x8] sm:$0xff]
      %v267 = vld [vmem:[%s253 + $0x10] sm:$0xff]
      %v268 = vld [vmem:[%s253 + $0x18] sm:$0xff]
      %v269 = vpack.c.bf16 %v267, %v265
      %v270 = vpack.c.bf16 %v268, %v266
      %v271 = vld [vmem:[%s1] sm:$0xff]
      %v272 = vld [vmem:[%s1 + $0x8] sm:$0xff]
      %v273 = vld [vmem:[%s1 + $0x10] sm:$0xff]
      %v274 = vld [vmem:[%s1 + $0x18] sm:$0xff]
      %v275 = vld [vmem:[%s1 + $0x20] sm:$0xff]
      %v276 = vld [vmem:[%s1 + $0x28] sm:$0xff]
      %v277 = vld [vmem:[%s1 + $0x30] sm:$0xff]
      %v278 = vld [vmem:[%s1 + $0x38] sm:$0xff]
      %v279 = vld [vmem:[%s1 + $0x40] sm:$0xff]
      %v280 = vld [vmem:[%s1 + $0x48] sm:$0xff]
      %v281 = vld [vmem:[%s1 + $0x50] sm:$0xff]
      %v282 = vld [vmem:[%s1 + $0x58] sm:$0xff]
      %v283 = vld [vmem:[%s1 + $0x60] sm:$0xff]
      %v284 = vld [vmem:[%s1 + $0x68] sm:$0xff]
      %v285 = vld [vmem:[%s1 + $0x70] sm:$0xff]
      %v286 = vld [vmem:[%s1 + $0x78] sm:$0xff]
      %v287 = vpack.c.bf16 %v272, %v271
      %v288 = vpack.c.bf16 %v274, %v273
      %v289 = vpack.c.bf16 %v276, %v275
      %v290 = vpack.c.bf16 %v278, %v277
      %v291 = vpack.c.bf16 %v280, %v279
      %v292 = vpack.c.bf16 %v282, %v281
      %v293 = vpack.c.bf16 %v284, %v283
      %v294 = vpack.c.bf16 %v286, %v285
      %v295 = vld [vmem:[%s2] sm:$0xff]
      %v296 = vld [vmem:[%s2 + $0x8] sm:$0xff]
      %v297 = vld [vmem:[%s2 + $0x10] sm:$0xff]
      %v298 = vld [vmem:[%s2 + $0x18] sm:$0xff]
      %v299 = vld [vmem:[%s2 + $0x20] sm:$0xff]
      %v300 = vld [vmem:[%s2 + $0x28] sm:$0xff]
      %v301 = vld [vmem:[%s2 + $0x30] sm:$0xff]
      %v302 = vld [vmem:[%s2 + $0x38] sm:$0xff]
      %v303 = vld [vmem:[%s2 + $0x40] sm:$0xff]
      %v304 = vld [vmem:[%s2 + $0x48] sm:$0xff]
      %v305 = vld [vmem:[%s2 + $0x50] sm:$0xff]
      %v306 = vld [vmem:[%s2 + $0x58] sm:$0xff]
      %v307 = vld [vmem:[%s2 + $0x60] sm:$0xff]
      %v308 = vld [vmem:[%s2 + $0x68] sm:$0xff]
      %v309 = vld [vmem:[%s2 + $0x70] sm:$0xff]
      %v310 = vld [vmem:[%s2 + $0x78] sm:$0xff]
      %312 = vset.pattern.permute.xlu0 0
      %313 = vperm.xlu0 %312, %v295
      %v314 = vpop.permute.xlu0 %313
      %317 = vset.pattern.permute.xlu0 0
      %318 = vperm.xlu0 %317, %v296
      %v319 = vpop.permute.xlu0 %318
      %322 = vset.pattern.permute.xlu0 0
      %323 = vperm.xlu0 %322, %v297
      %v324 = vpop.permute.xlu0 %323
      %327 = vset.pattern.permute.xlu0 0
      %328 = vperm.xlu0 %327, %v298
      %v329 = vpop.permute.xlu0 %328
      %332 = vset.pattern.permute.xlu0 0
      %333 = vperm.xlu0 %332, %v299
      %v334 = vpop.permute.xlu0 %333
      %337 = vset.pattern.permute.xlu0 0
      %338 = vperm.xlu0 %337, %v300
      %v339 = vpop.permute.xlu0 %338
      %342 = vset.pattern.permute.xlu0 0
      %343 = vperm.xlu0 %342, %v301
      %v344 = vpop.permute.xlu0 %343
      %347 = vset.pattern.permute.xlu0 0
      %348 = vperm.xlu0 %347, %v302
      %v349 = vpop.permute.xlu0 %348
      %352 = vset.pattern.permute.xlu0 0
      %353 = vperm.xlu0 %352, %v303
      %v354 = vpop.permute.xlu0 %353
      %357 = vset.pattern.permute.xlu0 0
      %358 = vperm.xlu0 %357, %v304
      %v359 = vpop.permute.xlu0 %358
      %362 = vset.pattern.permute.xlu0 0
      %363 = vperm.xlu0 %362, %v305
      %v364 = vpop.permute.xlu0 %363
      %367 = vset.pattern.permute.xlu0 0
      %368 = vperm.xlu0 %367, %v306
      %v369 = vpop.permute.xlu0 %368
      %372 = vset.pattern.permute.xlu0 0
      %373 = vperm.xlu0 %372, %v307
      %v374 = vpop.permute.xlu0 %373
      %377 = vset.pattern.permute.xlu0 0
      %378 = vperm.xlu0 %377, %v308
      %v379 = vpop.permute.xlu0 %378
      %382 = vset.pattern.permute.xlu0 0
      %383 = vperm.xlu0 %382, %v309
      %v384 = vpop.permute.xlu0 %383
      %387 = vset.pattern.permute.xlu0 0
      %388 = vperm.xlu0 %387, %v310
      %v389 = vpop.permute.xlu0 %388
      %vm391 = vcmask 130048
      %v393 = vsel %vm391, %v287, 0
      %v396 = vsel %vm391, %v288, 0
      %v399 = vsel %vm391, %v289, 0
      %v402 = vsel %vm391, %v290, 0
      %v405 = vsel %vm391, %v291, 0
      %v408 = vsel %vm391, %v292, 0
      %v411 = vsel %vm391, %v293, 0
      %v414 = vsel %vm391, %v294, 0
      %416 = vmatprep.subr.bf16.mxu0 %v270
      %417 = vmatpush1.bf16.msra.mxu0 %v269
      %418 = vmatprep.subr.bf16.mxu0 0
      %419 = vmatpush1.bf16.msra.mxu0 0
      %420 = vmatprep.subr.bf16.mxu0 0
      %421 = vmatpush1.bf16.msra.mxu0 0
      %422 = vmatprep.subr.bf16.mxu0 0
      %423 = vmatpush1.bf16.msra.mxu0 0
      %424 = vmatprep.subr.bf16.mxu0 0
      %425 = vmatpush1.bf16.msra.mxu0 0
      %426 = vmatprep.subr.bf16.mxu0 0
      %427 = vmatpush1.bf16.msra.mxu0 0
      %428 = vmatprep.subr.bf16.mxu0 0
      %429 = vmatpush1.bf16.msra.mxu0 0
      %430 = vmatprep.subr.bf16.mxu0 0
      %431 = vmatpush1.bf16.msra.mxu0 0
      %432 = vmatprep.subr.bf16.mxu0 0
      %433 = vmatpush1.bf16.msra.mxu0 0
      %434 = vmatprep.subr.bf16.mxu0 0
      %435 = vmatpush1.bf16.msra.mxu0 0
      %436 = vmatprep.subr.bf16.mxu0 0
      %437 = vmatpush1.bf16.msra.mxu0 0
      %438 = vmatprep.subr.bf16.mxu0 0
      %439 = vmatpush1.bf16.msra.mxu0 0
      %440 = vmatprep.subr.bf16.mxu0 0
      %441 = vmatpush1.bf16.msra.mxu0 0
      %442 = vmatprep.subr.bf16.mxu0 0
      %443 = vmatpush1.bf16.msra.mxu0 0
      %444 = vmatprep.subr.bf16.mxu0 0
      %445 = vmatpush1.bf16.msra.mxu0 0
      %446 = vmatprep.subr.bf16.mxu0 0
      %447 = vmatpush1.bf16.msra.mxu0 0
      %448 = vmatprep.mubr.bf16.mxu0 0
      %449 = vmatmul.mubr.bf16.gmra.mrb[0].mxu0 %v393
      %v450 = vpop.f32.mrb[0].mxu0
      %v451 = vadd.f32 %v314, %v450
      %v452 = vpop.f32.mrb[0].mxu0
      %v453 = vadd.f32 %v314, %v452
      %v454 = vpop.f32.mrb[0].mxu0
      %v455 = vadd.f32 %v319, %v454
      %v456 = vpop.f32.mrb[0].mxu0
      %v457 = vadd.f32 %v319, %v456
      %458 = vmatprep.mubr.bf16.mxu0 0
      %459 = vmatmul.mubr.bf16.gmra.mrb[0].mxu0 %v396
      %v460 = vpop.f32.mrb[0].mxu0
      %v461 = vadd.f32 %v324, %v460
      %v462 = vpop.f32.mrb[0].mxu0
      %v463 = vadd.f32 %v324, %v462
      %v464 = vpop.f32.mrb[0].mxu0
      %v465 = vadd.f32 %v329, %v464
      %v466 = vpop.f32.mrb[0].mxu0
      %v467 = vadd.f32 %v329, %v466
      %468 = vmatprep.mubr.bf16.mxu0 0
      %469 = vmatmul.mubr.bf16.gmra.mrb[0].mxu0 %v399
      %v470 = vpop.f32.mrb[0].mxu0
      %v471 = vadd.f32 %v334, %v470
      %v472 = vpop.f32.mrb[0].mxu0
      %v473 = vadd.f32 %v334, %v472
      %v474 = vpop.f32.mrb[0].mxu0
      %v475 = vadd.f32 %v339, %v474
      %v476 = vpop.f32.mrb[0].mxu0
      %v477 = vadd.f32 %v339, %v476
      %478 = vmatprep.mubr.bf16.mxu0 0
      %479 = vmatmul.mubr.bf16.gmra.mrb[0].mxu0 %v402
      %v480 = vpop.f32.mrb[0].mxu0
      %v481 = vadd.f32 %v344, %v480
      %v482 = vpop.f32.mrb[0].mxu0
      %v483 = vadd.f32 %v344, %v482
      %v484 = vpop.f32.mrb[0].mxu0
      %v485 = vadd.f32 %v349, %v484
      %v486 = vpop.f32.mrb[0].mxu0
      %v487 = vadd.f32 %v349, %v486
      %488 = vmatprep.mubr.bf16.mxu0 0
      %489 = vmatmul.mubr.bf16.gmra.mrb[0].mxu0 %v405
      %v490 = vpop.f32.mrb[0].mxu0
      %v491 = vadd.f32 %v354, %v490
      %v492 = vpop.f32.mrb[0].mxu0
      %v493 = vadd.f32 %v354, %v492
      %v494 = vpop.f32.mrb[0].mxu0
      %v495 = vadd.f32 %v359, %v494
      %v496 = vpop.f32.mrb[0].mxu0
      %v497 = vadd.f32 %v359, %v496
      %498 = vmatprep.mubr.bf16.mxu0 0
      %499 = vmatmul.mubr.bf16.gmra.mrb[0].mxu0 %v408
      %v500 = vpop.f32.mrb[0].mxu0
      %v501 = vadd.f32 %v364, %v500
      %v502 = vpop.f32.mrb[0].mxu0
      %v503 = vadd.f32 %v364, %v502
      %v504 = vpop.f32.mrb[0].mxu0
      %v505 = vadd.f32 %v369, %v504
      %v506 = vpop.f32.mrb[0].mxu0
      %v507 = vadd.f32 %v369, %v506
      %508 = vmatprep.mubr.bf16.mxu0 0
      %509 = vmatmul.mubr.bf16.gmra.mrb[0].mxu0 %v411
      %v510 = vpop.f32.mrb[0].mxu0
      %v511 = vadd.f32 %v374, %v510
      %v512 = vpop.f32.mrb[0].mxu0
      %v513 = vadd.f32 %v374, %v512
      %v514 = vpop.f32.mrb[0].mxu0
      %v515 = vadd.f32 %v379, %v514
      %v516 = vpop.f32.mrb[0].mxu0
      %v517 = vadd.f32 %v379, %v516
      %518 = vmatprep.mubr.bf16.mxu0 0
      %519 = vmatmul.mubr.bf16.gmra.mrb[0].mxu0 %v414
      %v520 = vpop.f32.mrb[0].mxu0
      %v521 = vadd.f32 %v384, %v520
      %v522 = vpop.f32.mrb[0].mxu0
      %v523 = vadd.f32 %v384, %v522
      %v524 = vpop.f32.mrb[0].mxu0
      %v525 = vadd.f32 %v389, %v524
      %v526 = vpop.f32.mrb[0].mxu0
      %v527 = vadd.f32 %v389, %v526
      %528 = vdwg.mxu0
      %v529 = vmul.f32 %v451, 0.5
      %v530 = vmul.f32 %v453, 0.5
      %v531 = vmul.f32 %v455, 0.5
      %v532 = vmul.f32 %v457, 0.5
      %v533 = vmul.f32 %v461, 0.5
      %v534 = vmul.f32 %v463, 0.5
      %v535 = vmul.f32 %v465, 0.5
      %v536 = vmul.f32 %v467, 0.5
      %v537 = vmul.f32 %v471, 0.5
      %v538 = vmul.f32 %v473, 0.5
      %v539 = vmul.f32 %v475, 0.5
      %v540 = vmul.f32 %v477, 0.5
      %v541 = vmul.f32 %v481, 0.5
      %v542 = vmul.f32 %v483, 0.5
      %v543 = vmul.f32 %v485, 0.5
      %v544 = vmul.f32 %v487, 0.5
      %v545 = vmul.f32 %v491, 0.5
      %v546 = vmul.f32 %v493, 0.5
      %v547 = vmul.f32 %v495, 0.5
      %v548 = vmul.f32 %v497, 0.5
      %v549 = vmul.f32 %v501, 0.5
      %v550 = vmul.f32 %v503, 0.5
      %v551 = vmul.f32 %v505, 0.5
      %v552 = vmul.f32 %v507, 0.5
      %v553 = vmul.f32 %v511, 0.5
      %v554 = vmul.f32 %v513, 0.5
      %v555 = vmul.f32 %v515, 0.5
      %v556 = vmul.f32 %v517, 0.5
      %v557 = vmul.f32 %v521, 0.5
      %v558 = vmul.f32 %v523, 0.5
      %v559 = vmul.f32 %v525, 0.5
      %v560 = vmul.f32 %v527, 0.5
      %v561 = vmul.f32 %v451, 0.70710677
      %v562 = vmul.f32 %v453, 0.70710677
      %v563 = vmul.f32 %v455, 0.70710677
      %v564 = vmul.f32 %v457, 0.70710677
      %v565 = vmul.f32 %v461, 0.70710677
      %v566 = vmul.f32 %v463, 0.70710677
      %v567 = vmul.f32 %v465, 0.70710677
      %v568 = vmul.f32 %v467, 0.70710677
      %v569 = vmul.f32 %v471, 0.70710677
      %v570 = vmul.f32 %v473, 0.70710677
      %v571 = vmul.f32 %v475, 0.70710677
      %v572 = vmul.f32 %v477, 0.70710677
      %v573 = vmul.f32 %v481, 0.70710677
      %v574 = vmul.f32 %v483, 0.70710677
      %v575 = vmul.f32 %v485, 0.70710677
      %v576 = vmul.f32 %v487, 0.70710677
      %v577 = vmul.f32 %v491, 0.70710677
      %v578 = vmul.f32 %v493, 0.70710677
      %v579 = vmul.f32 %v495, 0.70710677
      %v580 = vmul.f32 %v497, 0.70710677
      %v581 = vmul.f32 %v501, 0.70710677
      %v582 = vmul.f32 %v503, 0.70710677
      %v583 = vmul.f32 %v505, 0.70710677
      %v584 = vmul.f32 %v507, 0.70710677
      %v585 = vmul.f32 %v511, 0.70710677
      %v586 = vmul.f32 %v513, 0.70710677
      %v587 = vmul.f32 %v515, 0.70710677
      %v588 = vmul.f32 %v517, 0.70710677
      %v589 = vmul.f32 %v521, 0.70710677
      %v590 = vmul.f32 %v523, 0.70710677
      %v591 = vmul.f32 %v525, 0.70710677
      %v592 = vmul.f32 %v527, 0.70710677
      %v593 = vand.u32 2147483647, %v561
      %v594 = vand.u32 2147483647, %v562
      %v595 = vand.u32 2147483647, %v563
      %v596 = vand.u32 2147483647, %v564
      %v597 = vand.u32 2147483647, %v565
      %v598 = vand.u32 2147483647, %v566
      %v599 = vand.u32 2147483647, %v567
      %v600 = vand.u32 2147483647, %v568
      %v601 = vand.u32 2147483647, %v569
      %v602 = vand.u32 2147483647, %v570
      %v603 = vand.u32 2147483647, %v571
      %v604 = vand.u32 2147483647, %v572
      %v605 = vand.u32 2147483647, %v573
      %v606 = vand.u32 2147483647, %v574
      %v607 = vand.u32 2147483647, %v575
      %v608 = vand.u32 2147483647, %v576
      %v609 = vand.u32 2147483647, %v577
      %v610 = vand.u32 2147483647, %v578
      %v611 = vand.u32 2147483647, %v579
      %v612 = vand.u32 2147483647, %v580
      %v613 = vand.u32 2147483647, %v581
      %v614 = vand.u32 2147483647, %v582
      %v615 = vand.u32 2147483647, %v583
      %v616 = vand.u32 2147483647, %v584
      %v617 = vand.u32 2147483647, %v585
      %v618 = vand.u32 2147483647, %v586
      %v619 = vand.u32 2147483647, %v587
      %v620 = vand.u32 2147483647, %v588
      %v621 = vand.u32 2147483647, %v589
      %v622 = vand.u32 2147483647, %v590
      %v623 = vand.u32 2147483647, %v591
      %v624 = vand.u32 2147483647, %v592
      %v625 = vmul.f32 %v593, 0.5
      %v626 = vmul.f32 %v594, 0.5
      %v627 = vmul.f32 %v595, 0.5
      %v628 = vmul.f32 %v596, 0.5
      %v629 = vmul.f32 %v597, 0.5
      %v630 = vmul.f32 %v598, 0.5
      %v631 = vmul.f32 %v599, 0.5
      %v632 = vmul.f32 %v600, 0.5
      %v633 = vmul.f32 %v601, 0.5
      %v634 = vmul.f32 %v602, 0.5
      %v635 = vmul.f32 %v603, 0.5
      %v636 = vmul.f32 %v604, 0.5
      %v637 = vmul.f32 %v605, 0.5
      %v638 = vmul.f32 %v606, 0.5
      %v639 = vmul.f32 %v607, 0.5
      %v640 = vmul.f32 %v608, 0.5
      %v641 = vmul.f32 %v609, 0.5
      %v642 = vmul.f32 %v610, 0.5
      %v643 = vmul.f32 %v611, 0.5
      %v644 = vmul.f32 %v612, 0.5
      %v645 = vmul.f32 %v613, 0.5
      %v646 = vmul.f32 %v614, 0.5
      %v647 = vmul.f32 %v615, 0.5
      %v648 = vmul.f32 %v616, 0.5
      %v649 = vmul.f32 %v617, 0.5
      %v650 = vmul.f32 %v618, 0.5
      %v651 = vmul.f32 %v619, 0.5
      %v652 = vmul.f32 %v620, 0.5
      %v653 = vmul.f32 %v621, 0.5
      %v654 = vmul.f32 %v622, 0.5
      %v655 = vmul.f32 %v623, 0.5
      %v656 = vmul.f32 %v624, 0.5
      %v657 = vadd.f32 %v625, 1.0
      %v658 = vadd.f32 %v626, 1.0
      %v659 = vadd.f32 %v627, 1.0
      %v660 = vadd.f32 %v628, 1.0
      %v661 = vadd.f32 %v629, 1.0
      %v662 = vadd.f32 %v630, 1.0
      %v663 = vadd.f32 %v631, 1.0
      %v664 = vadd.f32 %v632, 1.0
      %v665 = vadd.f32 %v633, 1.0
      %v666 = vadd.f32 %v634, 1.0
      %v667 = vadd.f32 %v635, 1.0
      %v668 = vadd.f32 %v636, 1.0
      %v669 = vadd.f32 %v637, 1.0
      %v670 = vadd.f32 %v638, 1.0
      %v671 = vadd.f32 %v639, 1.0
      %v672 = vadd.f32 %v640, 1.0
      %v673 = vadd.f32 %v641, 1.0
      %v674 = vadd.f32 %v642, 1.0
      %v675 = vadd.f32 %v643, 1.0
      %v676 = vadd.f32 %v644, 1.0
      %v677 = vadd.f32 %v645, 1.0
      %v678 = vadd.f32 %v646, 1.0
      %v679 = vadd.f32 %v647, 1.0
      %v680 = vadd.f32 %v648, 1.0
      %v681 = vadd.f32 %v649, 1.0
      %v682 = vadd.f32 %v650, 1.0
      %v683 = vadd.f32 %v651, 1.0
      %v684 = vadd.f32 %v652, 1.0
      %v685 = vadd.f32 %v653, 1.0
      %v686 = vadd.f32 %v654, 1.0
      %v687 = vadd.f32 %v655, 1.0
      %v688 = vadd.f32 %v656, 1.0
      %v689 = vrcp.pop %v657
      %v690 = vrcp.pop %v658
      %v691 = vrcp.pop %v659
      %v692 = vrcp.pop %v660
      %v693 = vrcp.pop %v661
      %v694 = vrcp.pop %v662
      %v695 = vrcp.pop %v663
      %v696 = vrcp.pop %v664
      %v697 = vrcp.pop %v665
      %v698 = vrcp.pop %v666
      %v699 = vrcp.pop %v667
      %v700 = vrcp.pop %v668
      %v701 = vrcp.pop %v669
      %v702 = vrcp.pop %v670
      %v703 = vrcp.pop %v671
      %v704 = vrcp.pop %v672
      %v705 = vrcp.pop %v673
      %v706 = vrcp.pop %v674
      %v707 = vrcp.pop %v675
      %v708 = vrcp.pop %v676
      %v709 = vrcp.pop %v677
      %v710 = vrcp.pop %v678
      %v711 = vrcp.pop %v679
      %v712 = vrcp.pop %v680
      %v713 = vrcp.pop %v681
      %v714 = vrcp.pop %v682
      %v715 = vrcp.pop %v683
      %v716 = vrcp.pop %v684
      %v717 = vrcp.pop %v685
      %v718 = vrcp.pop %v686
      %v719 = vrcp.pop %v687
      %v720 = vrcp.pop %v688
      %v721 = vmul.f32 %v657, %v689
      %v722 = vmul.f32 %v658, %v690
      %v723 = vmul.f32 %v659, %v691
      %v724 = vmul.f32 %v660, %v692
      %v725 = vmul.f32 %v661, %v693
      %v726 = vmul.f32 %v662, %v694
      %v727 = vmul.f32 %v663, %v695
      %v728 = vmul.f32 %v664, %v696
      %v729 = vmul.f32 %v665, %v697
      %v730 = vmul.f32 %v666, %v698
      %v731 = vmul.f32 %v667, %v699
      %v732 = vmul.f32 %v668, %v700
      %v733 = vmul.f32 %v669, %v701
      %v734 = vmul.f32 %v670, %v702
      %v735 = vmul.f32 %v671, %v703
      %v736 = vmul.f32 %v672, %v704
      %v737 = vmul.f32 %v673, %v705
      %v738 = vmul.f32 %v674, %v706
      %v739 = vmul.f32 %v675, %v707
      %v740 = vmul.f32 %v676, %v708
      %v741 = vmul.f32 %v677, %v709
      %v742 = vmul.f32 %v678, %v710
      %v743 = vmul.f32 %v679, %v711
      %v744 = vmul.f32 %v680, %v712
      %v745 = vmul.f32 %v681, %v713
      %v746 = vmul.f32 %v682, %v714
      %v747 = vmul.f32 %v683, %v715
      %v748 = vmul.f32 %v684, %v716
      %v749 = vmul.f32 %v685, %v717
      %v750 = vmul.f32 %v686, %v718
      %v751 = vmul.f32 %v687, %v719
      %v752 = vmul.f32 %v688, %v720
      %v753 = vsub.f32 2.0, %v721
      %v754 = vsub.f32 2.0, %v722
      %v755 = vsub.f32 2.0, %v723
      %v756 = vsub.f32 2.0, %v724
      %v757 = vsub.f32 2.0, %v725
      %v758 = vsub.f32 2.0, %v726
      %v759 = vsub.f32 2.0, %v727
      %v760 = vsub.f32 2.0, %v728
      %v761 = vsub.f32 2.0, %v729
      %v762 = vsub.f32 2.0, %v730
      %v763 = vsub.f32 2.0, %v731
      %v764 = vsub.f32 2.0, %v732
      %v765 = vsub.f32 2.0, %v733
      %v766 = vsub.f32 2.0, %v734
      %v767 = vsub.f32 2.0, %v735
      %v768 = vsub.f32 2.0, %v736
      %v769 = vsub.f32 2.0, %v737
      %v770 = vsub.f32 2.0, %v738
      %v771 = vsub.f32 2.0, %v739
      %v772 = vsub.f32 2.0, %v740
      %v773 = vsub.f32 2.0, %v741
      %v774 = vsub.f32 2.0, %v742
      %v775 = vsub.f32 2.0, %v743
      %v776 = vsub.f32 2.0, %v744
      %v777 = vsub.f32 2.0, %v745
      %v778 = vsub.f32 2.0, %v746
      %v779 = vsub.f32 2.0, %v747
      %v780 = vsub.f32 2.0, %v748
      %v781 = vsub.f32 2.0, %v749
      %v782 = vsub.f32 2.0, %v750
      %v783 = vsub.f32 2.0, %v751
      %v784 = vsub.f32 2.0, %v752
      %v785 = vmul.f32 %v689, %v753
      %v786 = vmul.f32 %v690, %v754
      %v787 = vmul.f32 %v691, %v755
      %v788 = vmul.f32 %v692, %v756
      %v789 = vmul.f32 %v693, %v757
      %v790 = vmul.f32 %v694, %v758
      %v791 = vmul.f32 %v695, %v759
      %v792 = vmul.f32 %v696, %v760
      %v793 = vmul.f32 %v697, %v761
      %v794 = vmul.f32 %v698, %v762
      %v795 = vmul.f32 %v699, %v763
      %v796 = vmul.f32 %v700, %v764
      %v797 = vmul.f32 %v701, %v765
      %v798 = vmul.f32 %v702, %v766
      %v799 = vmul.f32 %v703, %v767
      %v800 = vmul.f32 %v704, %v768
      %v801 = vmul.f32 %v705, %v769
      %v802 = vmul.f32 %v706, %v770
      %v803 = vmul.f32 %v707, %v771
      %v804 = vmul.f32 %v708, %v772
      %v805 = vmul.f32 %v709, %v773
      %v806 = vmul.f32 %v710, %v774
      %v807 = vmul.f32 %v711, %v775
      %v808 = vmul.f32 %v712, %v776
      %v809 = vmul.f32 %v713, %v777
      %v810 = vmul.f32 %v714, %v778
      %v811 = vmul.f32 %v715, %v779
      %v812 = vmul.f32 %v716, %v780
      %v813 = vmul.f32 %v717, %v781
      %v814 = vmul.f32 %v718, %v782
      %v815 = vmul.f32 %v719, %v783
      %v816 = vmul.f32 %v720, %v784
      %v817 = vmul.f32 %v785, %v785
      %v818 = vmul.f32 %v786, %v786
      %v819 = vmul.f32 %v787, %v787
      %v820 = vmul.f32 %v788, %v788
      %v821 = vmul.f32 %v789, %v789
      %v822 = vmul.f32 %v790, %v790
      %v823 = vmul.f32 %v791, %v791
      %v824 = vmul.f32 %v792, %v792
      %v825 = vmul.f32 %v793, %v793
      %v826 = vmul.f32 %v794, %v794
      %v827 = vmul.f32 %v795, %v795
      %v828 = vmul.f32 %v796, %v796
      %v829 = vmul.f32 %v797, %v797
      %v830 = vmul.f32 %v798, %v798
      %v831 = vmul.f32 %v799, %v799
      %v832 = vmul.f32 %v800, %v800
      %v833 = vmul.f32 %v801, %v801
      %v834 = vmul.f32 %v802, %v802
      %v835 = vmul.f32 %v803, %v803
      %v836 = vmul.f32 %v804, %v804
      %v837 = vmul.f32 %v805, %v805
      %v838 = vmul.f32 %v806, %v806
      %v839 = vmul.f32 %v807, %v807
      %v840 = vmul.f32 %v808, %v808
      %v841 = vmul.f32 %v809, %v809
      %v842 = vmul.f32 %v810, %v810
      %v843 = vmul.f32 %v811, %v811
      %v844 = vmul.f32 %v812, %v812
      %v845 = vmul.f32 %v813, %v813
      %v846 = vmul.f32 %v814, %v814
      %v847 = vmul.f32 %v815, %v815
      %v848 = vmul.f32 %v816, %v816
      %v849 = vmul.f32 %v817, %v817
      %v850 = vmul.f32 %v818, %v818
      %v851 = vmul.f32 %v819, %v819
      %v852 = vmul.f32 %v820, %v820
      %v853 = vmul.f32 %v821, %v821
      %v854 = vmul.f32 %v822, %v822
      %v855 = vmul.f32 %v823, %v823
      %v856 = vmul.f32 %v824, %v824
      %v857 = vmul.f32 %v825, %v825
      %v858 = vmul.f32 %v826, %v826
      %v859 = vmul.f32 %v827, %v827
      %v860 = vmul.f32 %v828, %v828
      %v861 = vmul.f32 %v829, %v829
      %v862 = vmul.f32 %v830, %v830
      %v863 = vmul.f32 %v831, %v831
      %v864 = vmul.f32 %v832, %v832
      %v865 = vmul.f32 %v833, %v833
      %v866 = vmul.f32 %v834, %v834
      %v867 = vmul.f32 %v835, %v835
      %v868 = vmul.f32 %v836, %v836
      %v869 = vmul.f32 %v837, %v837
      %v870 = vmul.f32 %v838, %v838
      %v871 = vmul.f32 %v839, %v839
      %v872 = vmul.f32 %v840, %v840
      %v873 = vmul.f32 %v841, %v841
      %v874 = vmul.f32 %v842, %v842
      %v875 = vmul.f32 %v843, %v843
      %v876 = vmul.f32 %v844, %v844
      %v877 = vmul.f32 %v845, %v845
      %v878 = vmul.f32 %v846, %v846
      %v879 = vmul.f32 %v847, %v847
      %v880 = vmul.f32 %v848, %v848
      %v881 = vmul.f32 %v849, %v849
      %v882 = vmul.f32 %v850, %v850
      %v883 = vmul.f32 %v851, %v851
      %v884 = vmul.f32 %v852, %v852
      %v885 = vmul.f32 %v853, %v853
      %v886 = vmul.f32 %v854, %v854
      %v887 = vmul.f32 %v855, %v855
      %v888 = vmul.f32 %v856, %v856
      %v889 = vmul.f32 %v857, %v857
      %v890 = vmul.f32 %v858, %v858
      %v891 = vmul.f32 %v859, %v859
      %v892 = vmul.f32 %v860, %v860
      %v893 = vmul.f32 %v861, %v861
      %v894 = vmul.f32 %v862, %v862
      %v895 = vmul.f32 %v863, %v863
      %v896 = vmul.f32 %v864, %v864
      %v897 = vmul.f32 %v865, %v865
      %v898 = vmul.f32 %v866, %v866
      %v899 = vmul.f32 %v867, %v867
      %v900 = vmul.f32 %v868, %v868
      %v901 = vmul.f32 %v869, %v869
      %v902 = vmul.f32 %v870, %v870
      %v903 = vmul.f32 %v871, %v871
      %v904 = vmul.f32 %v872, %v872
      %v905 = vmul.f32 %v873, %v873
      %v906 = vmul.f32 %v874, %v874
      %v907 = vmul.f32 %v875, %v875
      %v908 = vmul.f32 %v876, %v876
      %v909 = vmul.f32 %v877, %v877
      %v910 = vmul.f32 %v878, %v878
      %v911 = vmul.f32 %v879, %v879
      %v912 = vmul.f32 %v880, %v880
      %v913 = vmul.f32 %v785, 1.0000237
      %v914 = vmul.f32 %v786, 1.0000237
      %v915 = vmul.f32 %v787, 1.0000237
      %v916 = vmul.f32 %v788, 1.0000237
      %v917 = vmul.f32 %v789, 1.0000237
      %v918 = vmul.f32 %v790, 1.0000237
      %v919 = vmul.f32 %v791, 1.0000237
      %v920 = vmul.f32 %v792, 1.0000237
      %v921 = vmul.f32 %v793, 1.0000237
      %v922 = vmul.f32 %v794, 1.0000237
      %v923 = vmul.f32 %v795, 1.0000237
      %v924 = vmul.f32 %v796, 1.0000237
      %v925 = vmul.f32 %v797, 1.0000237
      %v926 = vmul.f32 %v798, 1.0000237
      %v927 = vmul.f32 %v799, 1.0000237
      %v928 = vmul.f32 %v800, 1.0000237
      %v929 = vmul.f32 %v801, 1.0000237
      %v930 = vmul.f32 %v802, 1.0000237
      %v931 = vmul.f32 %v803, 1.0000237
      %v932 = vmul.f32 %v804, 1.0000237
      %v933 = vmul.f32 %v805, 1.0000237
      %v934 = vmul.f32 %v806, 1.0000237
      %v935 = vmul.f32 %v807, 1.0000237
      %v936 = vmul.f32 %v808, 1.0000237
      %v937 = vmul.f32 %v809, 1.0000237
      %v938 = vmul.f32 %v810, 1.0000237
      %v939 = vmul.f32 %v811, 1.0000237
      %v940 = vmul.f32 %v812, 1.0000237
      %v941 = vmul.f32 %v813, 1.0000237
      %v942 = vmul.f32 %v814, 1.0000237
      %v943 = vmul.f32 %v815, 1.0000237
      %v944 = vmul.f32 %v816, 1.0000237
      %v945 = vadd.f32 %v913, -1.2655122
      %v946 = vadd.f32 %v914, -1.2655122
      %v947 = vadd.f32 %v915, -1.2655122
      %v948 = vadd.f32 %v916, -1.2655122
      %v949 = vadd.f32 %v917, -1.2655122
      %v950 = vadd.f32 %v918, -1.2655122
      %v951 = vadd.f32 %v919, -1.2655122
      %v952 = vadd.f32 %v920, -1.2655122
      %v953 = vadd.f32 %v921, -1.2655122
      %v954 = vadd.f32 %v922, -1.2655122
      %v955 = vadd.f32 %v923, -1.2655122
      %v956 = vadd.f32 %v924, -1.2655122
      %v957 = vadd.f32 %v925, -1.2655122
      %v958 = vadd.f32 %v926, -1.2655122
      %v959 = vadd.f32 %v927, -1.2655122
      %v960 = vadd.f32 %v928, -1.2655122
      %v961 = vadd.f32 %v929, -1.2655122
      %v962 = vadd.f32 %v930, -1.2655122
      %v963 = vadd.f32 %v931, -1.2655122
      %v964 = vadd.f32 %v932, -1.2655122
      %v965 = vadd.f32 %v933, -1.2655122
      %v966 = vadd.f32 %v934, -1.2655122
      %v967 = vadd.f32 %v935, -1.2655122
      %v968 = vadd.f32 %v936, -1.2655122
      %v969 = vadd.f32 %v937, -1.2655122
      %v970 = vadd.f32 %v938, -1.2655122
      %v971 = vadd.f32 %v939, -1.2655122
      %v972 = vadd.f32 %v940, -1.2655122
      %v973 = vadd.f32 %v941, -1.2655122
      %v974 = vadd.f32 %v942, -1.2655122
      %v975 = vadd.f32 %v943, -1.2655122
      %v976 = vadd.f32 %v944, -1.2655122
      %v977 = vmul.f32 %v785, 0.09678418
      %v978 = vmul.f32 %v786, 0.09678418
      %v979 = vmul.f32 %v787, 0.09678418
      %v980 = vmul.f32 %v788, 0.09678418
      %v981 = vmul.f32 %v789, 0.09678418
      %v982 = vmul.f32 %v790, 0.09678418
      %v983 = vmul.f32 %v791, 0.09678418
      %v984 = vmul.f32 %v792, 0.09678418
      %v985 = vmul.f32 %v793, 0.09678418
      %v986 = vmul.f32 %v794, 0.09678418
      %v987 = vmul.f32 %v795, 0.09678418
      %v988 = vmul.f32 %v796, 0.09678418
      %v989 = vmul.f32 %v797, 0.09678418
      %v990 = vmul.f32 %v798, 0.09678418
      %v991 = vmul.f32 %v799, 0.09678418
      %v992 = vmul.f32 %v800, 0.09678418
      %v993 = vmul.f32 %v801, 0.09678418
      %v994 = vmul.f32 %v802, 0.09678418
      %v995 = vmul.f32 %v803, 0.09678418
      %v996 = vmul.f32 %v804, 0.09678418
      %v997 = vmul.f32 %v805, 0.09678418
      %v998 = vmul.f32 %v806, 0.09678418
      %v999 = vmul.f32 %v807, 0.09678418
      %v1000 = vmul.f32 %v808, 0.09678418
      %v1001 = vmul.f32 %v809, 0.09678418
      %v1002 = vmul.f32 %v810, 0.09678418
      %v1003 = vmul.f32 %v811, 0.09678418
      %v1004 = vmul.f32 %v812, 0.09678418
      %v1005 = vmul.f32 %v813, 0.09678418
      %v1006 = vmul.f32 %v814, 0.09678418
      %v1007 = vmul.f32 %v815, 0.09678418
      %v1008 = vmul.f32 %v816, 0.09678418
      %v1009 = vadd.f32 %v977, 0.37409195
      %v1010 = vadd.f32 %v978, 0.37409195
      %v1011 = vadd.f32 %v979, 0.37409195
      %v1012 = vadd.f32 %v980, 0.37409195
      %v1013 = vadd.f32 %v981, 0.37409195
      %v1014 = vadd.f32 %v982, 0.37409195
      %v1015 = vadd.f32 %v983, 0.37409195
      %v1016 = vadd.f32 %v984, 0.37409195
      %v1017 = vadd.f32 %v985, 0.37409195
      %v1018 = vadd.f32 %v986, 0.37409195
      %v1019 = vadd.f32 %v987, 0.37409195
      %v1020 = vadd.f32 %v988, 0.37409195
      %v1021 = vadd.f32 %v989, 0.37409195
      %v1022 = vadd.f32 %v990, 0.37409195
      %v1023 = vadd.f32 %v991, 0.37409195
      %v1024 = vadd.f32 %v992, 0.37409195
      %v1025 = vadd.f32 %v993, 0.37409195
      %v1026 = vadd.f32 %v994, 0.37409195
      %v1027 = vadd.f32 %v995, 0.37409195
      %v1028 = vadd.f32 %v996, 0.37409195
      %v1029 = vadd.f32 %v997, 0.37409195
      %v1030 = vadd.f32 %v998, 0.37409195
      %v1031 = vadd.f32 %v999, 0.37409195
      %v1032 = vadd.f32 %v1000, 0.37409195
      %v1033 = vadd.f32 %v1001, 0.37409195
      %v1034 = vadd.f32 %v1002, 0.37409195
      %v1035 = vadd.f32 %v1003, 0.37409195
      %v1036 = vadd.f32 %v1004, 0.37409195
      %v1037 = vadd.f32 %v1005, 0.37409195
      %v1038 = vadd.f32 %v1006, 0.37409195
      %v1039 = vadd.f32 %v1007, 0.37409195
      %v1040 = vadd.f32 %v1008, 0.37409195
      %v1041 = vmul.f32 %v785, 0.27886808
      %v1042 = vmul.f32 %v786, 0.27886808
      %v1043 = vmul.f32 %v787, 0.27886808
      %v1044 = vmul.f32 %v788, 0.27886808
      %v1045 = vmul.f32 %v789, 0.27886808
      %v1046 = vmul.f32 %v790, 0.27886808
      %v1047 = vmul.f32 %v791, 0.27886808
      %v1048 = vmul.f32 %v792, 0.27886808
      %v1049 = vmul.f32 %v793, 0.27886808
      %v1050 = vmul.f32 %v794, 0.27886808
      %v1051 = vmul.f32 %v795, 0.27886808
      %v1052 = vmul.f32 %v796, 0.27886808
      %v1053 = vmul.f32 %v797, 0.27886808
      %v1054 = vmul.f32 %v798, 0.27886808
      %v1055 = vmul.f32 %v799, 0.27886808
      %v1056 = vmul.f32 %v800, 0.27886808
      %v1057 = vmul.f32 %v801, 0.27886808
      %v1058 = vmul.f32 %v802, 0.27886808
      %v1059 = vmul.f32 %v803, 0.27886808
      %v1060 = vmul.f32 %v804, 0.27886808
      %v1061 = vmul.f32 %v805, 0.27886808
      %v1062 = vmul.f32 %v806, 0.27886808
      %v1063 = vmul.f32 %v807, 0.27886808
      %v1064 = vmul.f32 %v808, 0.27886808
      %v1065 = vmul.f32 %v809, 0.27886808
      %v1066 = vmul.f32 %v810, 0.27886808
      %v1067 = vmul.f32 %v811, 0.27886808
      %v1068 = vmul.f32 %v812, 0.27886808
      %v1069 = vmul.f32 %v813, 0.27886808
      %v1070 = vmul.f32 %v814, 0.27886808
      %v1071 = vmul.f32 %v815, 0.27886808
      %v1072 = vmul.f32 %v816, 0.27886808
      %v1073 = vadd.f32 %v1041, -0.18628806
      %v1074 = vadd.f32 %v1042, -0.18628806
      %v1075 = vadd.f32 %v1043, -0.18628806
      %v1076 = vadd.f32 %v1044, -0.18628806
      %v1077 = vadd.f32 %v1045, -0.18628806
      %v1078 = vadd.f32 %v1046, -0.18628806
      %v1079 = vadd.f32 %v1047, -0.18628806
      %v1080 = vadd.f32 %v1048, -0.18628806
      %v1081 = vadd.f32 %v1049, -0.18628806
      %v1082 = vadd.f32 %v1050, -0.18628806
      %v1083 = vadd.f32 %v1051, -0.18628806
      %v1084 = vadd.f32 %v1052, -0.18628806
      %v1085 = vadd.f32 %v1053, -0.18628806
      %v1086 = vadd.f32 %v1054, -0.18628806
      %v1087 = vadd.f32 %v1055, -0.18628806
      %v1088 = vadd.f32 %v1056, -0.18628806
      %v1089 = vadd.f32 %v1057, -0.18628806
      %v1090 = vadd.f32 %v1058, -0.18628806
      %v1091 = vadd.f32 %v1059, -0.18628806
      %v1092 = vadd.f32 %v1060, -0.18628806
      %v1093 = vadd.f32 %v1061, -0.18628806
      %v1094 = vadd.f32 %v1062, -0.18628806
      %v1095 = vadd.f32 %v1063, -0.18628806
      %v1096 = vadd.f32 %v1064, -0.18628806
      %v1097 = vadd.f32 %v1065, -0.18628806
      %v1098 = vadd.f32 %v1066, -0.18628806
      %v1099 = vadd.f32 %v1067, -0.18628806
      %v1100 = vadd.f32 %v1068, -0.18628806
      %v1101 = vadd.f32 %v1069, -0.18628806
      %v1102 = vadd.f32 %v1070, -0.18628806
      %v1103 = vadd.f32 %v1071, -0.18628806
      %v1104 = vadd.f32 %v1072, -0.18628806
      %v1105 = vmul.f32 %v785, 1.4885159
      %v1106 = vmul.f32 %v786, 1.4885159
      %v1107 = vmul.f32 %v787, 1.4885159
      %v1108 = vmul.f32 %v788, 1.4885159
      %v1109 = vmul.f32 %v789, 1.4885159
      %v1110 = vmul.f32 %v790, 1.4885159
      %v1111 = vmul.f32 %v791, 1.4885159
      %v1112 = vmul.f32 %v792, 1.4885159
      %v1113 = vmul.f32 %v793, 1.4885159
      %v1114 = vmul.f32 %v794, 1.4885159
      %v1115 = vmul.f32 %v795, 1.4885159
      %v1116 = vmul.f32 %v796, 1.4885159
      %v1117 = vmul.f32 %v797, 1.4885159
      %v1118 = vmul.f32 %v798, 1.4885159
      %v1119 = vmul.f32 %v799, 1.4885159
      %v1120 = vmul.f32 %v800, 1.4885159
      %v1121 = vmul.f32 %v801, 1.4885159
      %v1122 = vmul.f32 %v802, 1.4885159
      %v1123 = vmul.f32 %v803, 1.4885159
      %v1124 = vmul.f32 %v804, 1.4885159
      %v1125 = vmul.f32 %v805, 1.4885159
      %v1126 = vmul.f32 %v806, 1.4885159
      %v1127 = vmul.f32 %v807, 1.4885159
      %v1128 = vmul.f32 %v808, 1.4885159
      %v1129 = vmul.f32 %v809, 1.4885159
      %v1130 = vmul.f32 %v810, 1.4885159
      %v1131 = vmul.f32 %v811, 1.4885159
      %v1132 = vmul.f32 %v812, 1.4885159
      %v1133 = vmul.f32 %v813, 1.4885159
      %v1134 = vmul.f32 %v814, 1.4885159
      %v1135 = vmul.f32 %v815, 1.4885159
      %v1136 = vmul.f32 %v816, 1.4885159
      %v1137 = vadd.f32 %v1105, -1.135204
      %v1138 = vadd.f32 %v1106, -1.135204
      %v1139 = vadd.f32 %v1107, -1.135204
      %v1140 = vadd.f32 %v1108, -1.135204
      %v1141 = vadd.f32 %v1109, -1.135204
      %v1142 = vadd.f32 %v1110, -1.135204
      %v1143 = vadd.f32 %v1111, -1.135204
      %v1144 = vadd.f32 %v1112, -1.135204
      %v1145 = vadd.f32 %v1113, -1.135204
      %v1146 = vadd.f32 %v1114, -1.135204
      %v1147 = vadd.f32 %v1115, -1.135204
      %v1148 = vadd.f32 %v1116, -1.135204
      %v1149 = vadd.f32 %v1117, -1.135204
      %v1150 = vadd.f32 %v1118, -1.135204
      %v1151 = vadd.f32 %v1119, -1.135204
      %v1152 = vadd.f32 %v1120, -1.135204
      %v1153 = vadd.f32 %v1121, -1.135204
      %v1154 = vadd.f32 %v1122, -1.135204
      %v1155 = vadd.f32 %v1123, -1.135204
      %v1156 = vadd.f32 %v1124, -1.135204
      %v1157 = vadd.f32 %v1125, -1.135204
      %v1158 = vadd.f32 %v1126, -1.135204
      %v1159 = vadd.f32 %v1127, -1.135204
      %v1160 = vadd.f32 %v1128, -1.135204
      %v1161 = vadd.f32 %v1129, -1.135204
      %v1162 = vadd.f32 %v1130, -1.135204
      %v1163 = vadd.f32 %v1131, -1.135204
      %v1164 = vadd.f32 %v1132, -1.135204
      %v1165 = vadd.f32 %v1133, -1.135204
      %v1166 = vadd.f32 %v1134, -1.135204
      %v1167 = vadd.f32 %v1135, -1.135204
      %v1168 = vadd.f32 %v1136, -1.135204
      %v1169 = vmul.f32 %v785, 0.17087276
      %v1170 = vmul.f32 %v786, 0.17087276
      %v1171 = vmul.f32 %v787, 0.17087276
      %v1172 = vmul.f32 %v788, 0.17087276
      %v1173 = vmul.f32 %v789, 0.17087276
      %v1174 = vmul.f32 %v790, 0.17087276
      %v1175 = vmul.f32 %v791, 0.17087276
      %v1176 = vmul.f32 %v792, 0.17087276
      %v1177 = vmul.f32 %v793, 0.17087276
      %v1178 = vmul.f32 %v794, 0.17087276
      %v1179 = vmul.f32 %v795, 0.17087276
      %v1180 = vmul.f32 %v796, 0.17087276
      %v1181 = vmul.f32 %v797, 0.17087276
      %v1182 = vmul.f32 %v798, 0.17087276
      %v1183 = vmul.f32 %v799, 0.17087276
      %v1184 = vmul.f32 %v800, 0.17087276
      %v1185 = vmul.f32 %v801, 0.17087276
      %v1186 = vmul.f32 %v802, 0.17087276
      %v1187 = vmul.f32 %v803, 0.17087276
      %v1188 = vmul.f32 %v804, 0.17087276
      %v1189 = vmul.f32 %v805, 0.17087276
      %v1190 = vmul.f32 %v806, 0.17087276
      %v1191 = vmul.f32 %v807, 0.17087276
      %v1192 = vmul.f32 %v808, 0.17087276
      %v1193 = vmul.f32 %v809, 0.17087276
      %v1194 = vmul.f32 %v810, 0.17087276
      %v1195 = vmul.f32 %v811, 0.17087276
      %v1196 = vmul.f32 %v812, 0.17087276
      %v1197 = vmul.f32 %v813, 0.17087276
      %v1198 = vmul.f32 %v814, 0.17087276
      %v1199 = vmul.f32 %v815, 0.17087276
      %v1200 = vmul.f32 %v816, 0.17087276
      %v1201 = vadd.f32 %v1169, -0.82215226
      %v1202 = vadd.f32 %v1170, -0.82215226
      %v1203 = vadd.f32 %v1171, -0.82215226
      %v1204 = vadd.f32 %v1172, -0.82215226
      %v1205 = vadd.f32 %v1173, -0.82215226
      %v1206 = vadd.f32 %v1174, -0.82215226
      %v1207 = vadd.f32 %v1175, -0.82215226
      %v1208 = vadd.f32 %v1176, -0.82215226
      %v1209 = vadd.f32 %v1177, -0.82215226
      %v1210 = vadd.f32 %v1178, -0.82215226
      %v1211 = vadd.f32 %v1179, -0.82215226
      %v1212 = vadd.f32 %v1180, -0.82215226
      %v1213 = vadd.f32 %v1181, -0.82215226
      %v1214 = vadd.f32 %v1182, -0.82215226
      %v1215 = vadd.f32 %v1183, -0.82215226
      %v1216 = vadd.f32 %v1184, -0.82215226
      %v1217 = vadd.f32 %v1185, -0.82215226
      %v1218 = vadd.f32 %v1186, -0.82215226
      %v1219 = vadd.f32 %v1187, -0.82215226
      %v1220 = vadd.f32 %v1188, -0.82215226
      %v1221 = vadd.f32 %v1189, -0.82215226
      %v1222 = vadd.f32 %v1190, -0.82215226
      %v1223 = vadd.f32 %v1191, -0.82215226
      %v1224 = vadd.f32 %v1192, -0.82215226
      %v1225 = vadd.f32 %v1193, -0.82215226
      %v1226 = vadd.f32 %v1194, -0.82215226
      %v1227 = vadd.f32 %v1195, -0.82215226
      %v1228 = vadd.f32 %v1196, -0.82215226
      %v1229 = vadd.f32 %v1197, -0.82215226
      %v1230 = vadd.f32 %v1198, -0.82215226
      %v1231 = vadd.f32 %v1199, -0.82215226
      %v1232 = vadd.f32 %v1200, -0.82215226
      %v1233 = vmul.f32 %v1009, %v817
      %v1234 = vmul.f32 %v1010, %v818
      %v1235 = vmul.f32 %v1011, %v819
      %v1236 = vmul.f32 %v1012, %v820
      %v1237 = vmul.f32 %v1013, %v821
      %v1238 = vmul.f32 %v1014, %v822
      %v1239 = vmul.f32 %v1015, %v823
      %v1240 = vmul.f32 %v1016, %v824
      %v1241 = vmul.f32 %v1017, %v825
      %v1242 = vmul.f32 %v1018, %v826
      %v1243 = vmul.f32 %v1019, %v827
      %v1244 = vmul.f32 %v1020, %v828
      %v1245 = vmul.f32 %v1021, %v829
      %v1246 = vmul.f32 %v1022, %v830
      %v1247 = vmul.f32 %v1023, %v831
      %v1248 = vmul.f32 %v1024, %v832
      %v1249 = vmul.f32 %v1025, %v833
      %v1250 = vmul.f32 %v1026, %v834
      %v1251 = vmul.f32 %v1027, %v835
      %v1252 = vmul.f32 %v1028, %v836
      %v1253 = vmul.f32 %v1029, %v837
      %v1254 = vmul.f32 %v1030, %v838
      %v1255 = vmul.f32 %v1031, %v839
      %v1256 = vmul.f32 %v1032, %v840
      %v1257 = vmul.f32 %v1033, %v841
      %v1258 = vmul.f32 %v1034, %v842
      %v1259 = vmul.f32 %v1035, %v843
      %v1260 = vmul.f32 %v1036, %v844
      %v1261 = vmul.f32 %v1037, %v845
      %v1262 = vmul.f32 %v1038, %v846
      %v1263 = vmul.f32 %v1039, %v847
      %v1264 = vmul.f32 %v1040, %v848
      %v1265 = vadd.f32 %v945, %v1233
      %v1266 = vadd.f32 %v946, %v1234
      %v1267 = vadd.f32 %v947, %v1235
      %v1268 = vadd.f32 %v948, %v1236
      %v1269 = vadd.f32 %v949, %v1237
      %v1270 = vadd.f32 %v950, %v1238
      %v1271 = vadd.f32 %v951, %v1239
      %v1272 = vadd.f32 %v952, %v1240
      %v1273 = vadd.f32 %v953, %v1241
      %v1274 = vadd.f32 %v954, %v1242
      %v1275 = vadd.f32 %v955, %v1243
      %v1276 = vadd.f32 %v956, %v1244
      %v1277 = vadd.f32 %v957, %v1245
      %v1278 = vadd.f32 %v958, %v1246
      %v1279 = vadd.f32 %v959, %v1247
      %v1280 = vadd.f32 %v960, %v1248
      %v1281 = vadd.f32 %v961, %v1249
      %v1282 = vadd.f32 %v962, %v1250
      %v1283 = vadd.f32 %v963, %v1251
      %v1284 = vadd.f32 %v964, %v1252
      %v1285 = vadd.f32 %v965, %v1253
      %v1286 = vadd.f32 %v966, %v1254
      %v1287 = vadd.f32 %v967, %v1255
      %v1288 = vadd.f32 %v968, %v1256
      %v1289 = vadd.f32 %v969, %v1257
      %v1290 = vadd.f32 %v970, %v1258
      %v1291 = vadd.f32 %v971, %v1259
      %v1292 = vadd.f32 %v972, %v1260
      %v1293 = vadd.f32 %v973, %v1261
      %v1294 = vadd.f32 %v974, %v1262
      %v1295 = vadd.f32 %v975, %v1263
      %v1296 = vadd.f32 %v976, %v1264
      %v1297 = vmul.f32 %v1137, %v817
      %v1298 = vmul.f32 %v1138, %v818
      %v1299 = vmul.f32 %v1139, %v819
      %v1300 = vmul.f32 %v1140, %v820
      %v1301 = vmul.f32 %v1141, %v821
      %v1302 = vmul.f32 %v1142, %v822
      %v1303 = vmul.f32 %v1143, %v823
      %v1304 = vmul.f32 %v1144, %v824
      %v1305 = vmul.f32 %v1145, %v825
      %v1306 = vmul.f32 %v1146, %v826
      %v1307 = vmul.f32 %v1147, %v827
      %v1308 = vmul.f32 %v1148, %v828
      %v1309 = vmul.f32 %v1149, %v829
      %v1310 = vmul.f32 %v1150, %v830
      %v1311 = vmul.f32 %v1151, %v831
      %v1312 = vmul.f32 %v1152, %v832
      %v1313 = vmul.f32 %v1153, %v833
      %v1314 = vmul.f32 %v1154, %v834
      %v1315 = vmul.f32 %v1155, %v835
      %v1316 = vmul.f32 %v1156, %v836
      %v1317 = vmul.f32 %v1157, %v837
      %v1318 = vmul.f32 %v1158, %v838
      %v1319 = vmul.f32 %v1159, %v839
      %v1320 = vmul.f32 %v1160, %v840
      %v1321 = vmul.f32 %v1161, %v841
      %v1322 = vmul.f32 %v1162, %v842
      %v1323 = vmul.f32 %v1163, %v843
      %v1324 = vmul.f32 %v1164, %v844
      %v1325 = vmul.f32 %v1165, %v845
      %v1326 = vmul.f32 %v1166, %v846
      %v1327 = vmul.f32 %v1167, %v847
      %v1328 = vmul.f32 %v1168, %v848
      %v1329 = vadd.f32 %v1073, %v1297
      %v1330 = vadd.f32 %v1074, %v1298
      %v1331 = vadd.f32 %v1075, %v1299
      %v1332 = vadd.f32 %v1076, %v1300
      %v1333 = vadd.f32 %v1077, %v1301
      %v1334 = vadd.f32 %v1078, %v1302
      %v1335 = vadd.f32 %v1079, %v1303
      %v1336 = vadd.f32 %v1080, %v1304
      %v1337 = vadd.f32 %v1081, %v1305
      %v1338 = vadd.f32 %v1082, %v1306
      %v1339 = vadd.f32 %v1083, %v1307
      %v1340 = vadd.f32 %v1084, %v1308
      %v1341 = vadd.f32 %v1085, %v1309
      %v1342 = vadd.f32 %v1086, %v1310
      %v1343 = vadd.f32 %v1087, %v1311
      %v1344 = vadd.f32 %v1088, %v1312
      %v1345 = vadd.f32 %v1089, %v1313
      %v1346 = vadd.f32 %v1090, %v1314
      %v1347 = vadd.f32 %v1091, %v1315
      %v1348 = vadd.f32 %v1092, %v1316
      %v1349 = vadd.f32 %v1093, %v1317
      %v1350 = vadd.f32 %v1094, %v1318
      %v1351 = vadd.f32 %v1095, %v1319
      %v1352 = vadd.f32 %v1096, %v1320
      %v1353 = vadd.f32 %v1097, %v1321
      %v1354 = vadd.f32 %v1098, %v1322
      %v1355 = vadd.f32 %v1099, %v1323
      %v1356 = vadd.f32 %v1100, %v1324
      %v1357 = vadd.f32 %v1101, %v1325
      %v1358 = vadd.f32 %v1102, %v1326
      %v1359 = vadd.f32 %v1103, %v1327
      %v1360 = vadd.f32 %v1104, %v1328
      %v1361 = vmul.f32 %v1329, %v849
      %v1362 = vmul.f32 %v1330, %v850
      %v1363 = vmul.f32 %v1331, %v851
      %v1364 = vmul.f32 %v1332, %v852
      %v1365 = vmul.f32 %v1333, %v853
      %v1366 = vmul.f32 %v1334, %v854
      %v1367 = vmul.f32 %v1335, %v855
      %v1368 = vmul.f32 %v1336, %v856
      %v1369 = vmul.f32 %v1337, %v857
      %v1370 = vmul.f32 %v1338, %v858
      %v1371 = vmul.f32 %v1339, %v859
      %v1372 = vmul.f32 %v1340, %v860
      %v1373 = vmul.f32 %v1341, %v861
      %v1374 = vmul.f32 %v1342, %v862
      %v1375 = vmul.f32 %v1343, %v863
      %v1376 = vmul.f32 %v1344, %v864
      %v1377 = vmul.f32 %v1345, %v865
      %v1378 = vmul.f32 %v1346, %v866
      %v1379 = vmul.f32 %v1347, %v867
      %v1380 = vmul.f32 %v1348, %v868
      %v1381 = vmul.f32 %v1349, %v869
      %v1382 = vmul.f32 %v1350, %v870
      %v1383 = vmul.f32 %v1351, %v871
      %v1384 = vmul.f32 %v1352, %v872
      %v1385 = vmul.f32 %v1353, %v873
      %v1386 = vmul.f32 %v1354, %v874
      %v1387 = vmul.f32 %v1355, %v875
      %v1388 = vmul.f32 %v1356, %v876
      %v1389 = vmul.f32 %v1357, %v877
      %v1390 = vmul.f32 %v1358, %v878
      %v1391 = vmul.f32 %v1359, %v879
      %v1392 = vmul.f32 %v1360, %v880
      %v1393 = vadd.f32 %v1265, %v1361
      %v1394 = vadd.f32 %v1266, %v1362
      %v1395 = vadd.f32 %v1267, %v1363
      %v1396 = vadd.f32 %v1268, %v1364
      %v1397 = vadd.f32 %v1269, %v1365
      %v1398 = vadd.f32 %v1270, %v1366
      %v1399 = vadd.f32 %v1271, %v1367
      %v1400 = vadd.f32 %v1272, %v1368
      %v1401 = vadd.f32 %v1273, %v1369
      %v1402 = vadd.f32 %v1274, %v1370
      %v1403 = vadd.f32 %v1275, %v1371
      %v1404 = vadd.f32 %v1276, %v1372
      %v1405 = vadd.f32 %v1277, %v1373
      %v1406 = vadd.f32 %v1278, %v1374
      %v1407 = vadd.f32 %v1279, %v1375
      %v1408 = vadd.f32 %v1280, %v1376
      %v1409 = vadd.f32 %v1281, %v1377
      %v1410 = vadd.f32 %v1282, %v1378
      %v1411 = vadd.f32 %v1283, %v1379
      %v1412 = vadd.f32 %v1284, %v1380
      %v1413 = vadd.f32 %v1285, %v1381
      %v1414 = vadd.f32 %v1286, %v1382
      %v1415 = vadd.f32 %v1287, %v1383
      %v1416 = vadd.f32 %v1288, %v1384
      %v1417 = vadd.f32 %v1289, %v1385
      %v1418 = vadd.f32 %v1290, %v1386
      %v1419 = vadd.f32 %v1291, %v1387
      %v1420 = vadd.f32 %v1292, %v1388
      %v1421 = vadd.f32 %v1293, %v1389
      %v1422 = vadd.f32 %v1294, %v1390
      %v1423 = vadd.f32 %v1295, %v1391
      %v1424 = vadd.f32 %v1296, %v1392
      %v1425 = vmul.f32 %v1201, %v881
      %v1426 = vmul.f32 %v1202, %v882
      %v1427 = vmul.f32 %v1203, %v883
      %v1428 = vmul.f32 %v1204, %v884
      %v1429 = vmul.f32 %v1205, %v885
      %v1430 = vmul.f32 %v1206, %v886
      %v1431 = vmul.f32 %v1207, %v887
      %v1432 = vmul.f32 %v1208, %v888
      %v1433 = vmul.f32 %v1209, %v889
      %v1434 = vmul.f32 %v1210, %v890
      %v1435 = vmul.f32 %v1211, %v891
      %v1436 = vmul.f32 %v1212, %v892
      %v1437 = vmul.f32 %v1213, %v893
      %v1438 = vmul.f32 %v1214, %v894
      %v1439 = vmul.f32 %v1215, %v895
      %v1440 = vmul.f32 %v1216, %v896
      %v1441 = vmul.f32 %v1217, %v897
      %v1442 = vmul.f32 %v1218, %v898
      %v1443 = vmul.f32 %v1219, %v899
      %v1444 = vmul.f32 %v1220, %v900
      %v1445 = vmul.f32 %v1221, %v901
      %v1446 = vmul.f32 %v1222, %v902
      %v1447 = vmul.f32 %v1223, %v903
      %v1448 = vmul.f32 %v1224, %v904
      %v1449 = vmul.f32 %v1225, %v905
      %v1450 = vmul.f32 %v1226, %v906
      %v1451 = vmul.f32 %v1227, %v907
      %v1452 = vmul.f32 %v1228, %v908
      %v1453 = vmul.f32 %v1229, %v909
      %v1454 = vmul.f32 %v1230, %v910
      %v1455 = vmul.f32 %v1231, %v911
      %v1456 = vmul.f32 %v1232, %v912
      %v1457 = vadd.f32 %v1393, %v1425
      %v1458 = vadd.f32 %v1394, %v1426
      %v1459 = vadd.f32 %v1395, %v1427
      %v1460 = vadd.f32 %v1396, %v1428
      %v1461 = vadd.f32 %v1397, %v1429
      %v1462 = vadd.f32 %v1398, %v1430
      %v1463 = vadd.f32 %v1399, %v1431
      %v1464 = vadd.f32 %v1400, %v1432
      %v1465 = vadd.f32 %v1401, %v1433
      %v1466 = vadd.f32 %v1402, %v1434
      %v1467 = vadd.f32 %v1403, %v1435
      %v1468 = vadd.f32 %v1404, %v1436
      %v1469 = vadd.f32 %v1405, %v1437
      %v1470 = vadd.f32 %v1406, %v1438
      %v1471 = vadd.f32 %v1407, %v1439
      %v1472 = vadd.f32 %v1408, %v1440
      %v1473 = vadd.f32 %v1409, %v1441
      %v1474 = vadd.f32 %v1410, %v1442
      %v1475 = vadd.f32 %v1411, %v1443
      %v1476 = vadd.f32 %v1412, %v1444
      %v1477 = vadd.f32 %v1413, %v1445
      %v1478 = vadd.f32 %v1414, %v1446
      %v1479 = vadd.f32 %v1415, %v1447
      %v1480 = vadd.f32 %v1416, %v1448
      %v1481 = vadd.f32 %v1417, %v1449
      %v1482 = vadd.f32 %v1418, %v1450
      %v1483 = vadd.f32 %v1419, %v1451
      %v1484 = vadd.f32 %v1420, %v1452
      %v1485 = vadd.f32 %v1421, %v1453
      %v1486 = vadd.f32 %v1422, %v1454
      %v1487 = vadd.f32 %v1423, %v1455
      %v1488 = vadd.f32 %v1424, %v1456
      %v1489 = vsub.f32 0.0, %v593
      %v1490 = vsub.f32 0.0, %v594
      %v1491 = vsub.f32 0.0, %v595
      %v1492 = vsub.f32 0.0, %v596
      %v1493 = vsub.f32 0.0, %v597
      %v1494 = vsub.f32 0.0, %v598
      %v1495 = vsub.f32 0.0, %v599
      %v1496 = vsub.f32 0.0, %v600
      %v1497 = vsub.f32 0.0, %v601
      %v1498 = vsub.f32 0.0, %v602
      %v1499 = vsub.f32 0.0, %v603
      %v1500 = vsub.f32 0.0, %v604
      %v1501 = vsub.f32 0.0, %v605
      %v1502 = vsub.f32 0.0, %v606
      %v1503 = vsub.f32 0.0, %v607
      %v1504 = vsub.f32 0.0, %v608
      %v1505 = vsub.f32 0.0, %v609
      %v1506 = vsub.f32 0.0, %v610
      %v1507 = vsub.f32 0.0, %v611
      %v1508 = vsub.f32 0.0, %v612
      %v1509 = vsub.f32 0.0, %v613
      %v1510 = vsub.f32 0.0, %v614
      %v1511 = vsub.f32 0.0, %v615
      %v1512 = vsub.f32 0.0, %v616
      %v1513 = vsub.f32 0.0, %v617
      %v1514 = vsub.f32 0.0, %v618
      %v1515 = vsub.f32 0.0, %v619
      %v1516 = vsub.f32 0.0, %v620
      %v1517 = vsub.f32 0.0, %v621
      %v1518 = vsub.f32 0.0, %v622
      %v1519 = vsub.f32 0.0, %v623
      %v1520 = vsub.f32 0.0, %v624
      %v1521 = vmul.f32 %v1489, %v593
      %v1522 = vmul.f32 %v1490, %v594
      %v1523 = vmul.f32 %v1491, %v595
      %v1524 = vmul.f32 %v1492, %v596
      %v1525 = vmul.f32 %v1493, %v597
      %v1526 = vmul.f32 %v1494, %v598
      %v1527 = vmul.f32 %v1495, %v599
      %v1528 = vmul.f32 %v1496, %v600
      %v1529 = vmul.f32 %v1497, %v601
      %v1530 = vmul.f32 %v1498, %v602
      %v1531 = vmul.f32 %v1499, %v603
      %v1532 = vmul.f32 %v1500, %v604
      %v1533 = vmul.f32 %v1501, %v605
      %v1534 = vmul.f32 %v1502, %v606
      %v1535 = vmul.f32 %v1503, %v607
      %v1536 = vmul.f32 %v1504, %v608
      %v1537 = vmul.f32 %v1505, %v609
      %v1538 = vmul.f32 %v1506, %v610
      %v1539 = vmul.f32 %v1507, %v611
      %v1540 = vmul.f32 %v1508, %v612
      %v1541 = vmul.f32 %v1509, %v613
      %v1542 = vmul.f32 %v1510, %v614
      %v1543 = vmul.f32 %v1511, %v615
      %v1544 = vmul.f32 %v1512, %v616
      %v1545 = vmul.f32 %v1513, %v617
      %v1546 = vmul.f32 %v1514, %v618
      %v1547 = vmul.f32 %v1515, %v619
      %v1548 = vmul.f32 %v1516, %v620
      %v1549 = vmul.f32 %v1517, %v621
      %v1550 = vmul.f32 %v1518, %v622
      %v1551 = vmul.f32 %v1519, %v623
      %v1552 = vmul.f32 %v1520, %v624
      %v1553 = vadd.f32 %v1521, %v1457
      %v1554 = vadd.f32 %v1522, %v1458
      %v1555 = vadd.f32 %v1523, %v1459
      %v1556 = vadd.f32 %v1524, %v1460
      %v1557 = vadd.f32 %v1525, %v1461
      %v1558 = vadd.f32 %v1526, %v1462
      %v1559 = vadd.f32 %v1527, %v1463
      %v1560 = vadd.f32 %v1528, %v1464
      %v1561 = vadd.f32 %v1529, %v1465
      %v1562 = vadd.f32 %v1530, %v1466
      %v1563 = vadd.f32 %v1531, %v1467
      %v1564 = vadd.f32 %v1532, %v1468
      %v1565 = vadd.f32 %v1533, %v1469
      %v1566 = vadd.f32 %v1534, %v1470
      %v1567 = vadd.f32 %v1535, %v1471
      %v1568 = vadd.f32 %v1536, %v1472
      %v1569 = vadd.f32 %v1537, %v1473
      %v1570 = vadd.f32 %v1538, %v1474
      %v1571 = vadd.f32 %v1539, %v1475
      %v1572 = vadd.f32 %v1540, %v1476
      %v1573 = vadd.f32 %v1541, %v1477
      %v1574 = vadd.f32 %v1542, %v1478
      %v1575 = vadd.f32 %v1543, %v1479
      %v1576 = vadd.f32 %v1544, %v1480
      %v1577 = vadd.f32 %v1545, %v1481
      %v1578 = vadd.f32 %v1546, %v1482
      %v1579 = vadd.f32 %v1547, %v1483
      %v1580 = vadd.f32 %v1548, %v1484
      %v1581 = vadd.f32 %v1549, %v1485
      %v1582 = vadd.f32 %v1550, %v1486
      %v1583 = vadd.f32 %v1551, %v1487
      %v1584 = vadd.f32 %v1552, %v1488
      %v1585 = vmul.f32 %v1553, 1.442695
      %v1586 = vpow.pop %v1585
      %v1587 = vmul.f32 %v1554, 1.442695
      %v1588 = vpow.pop %v1587
      %v1589 = vmul.f32 %v1555, 1.442695
      %v1590 = vpow.pop %v1589
      %v1591 = vmul.f32 %v1556, 1.442695
      %v1592 = vpow.pop %v1591
      %v1593 = vmul.f32 %v1557, 1.442695
      %v1594 = vpow.pop %v1593
      %v1595 = vmul.f32 %v1558, 1.442695
      %v1596 = vpow.pop %v1595
      %v1597 = vmul.f32 %v1559, 1.442695
      %v1598 = vpow.pop %v1597
      %v1599 = vmul.f32 %v1560, 1.442695
      %v1600 = vpow.pop %v1599
      %v1601 = vmul.f32 %v1561, 1.442695
      %v1602 = vpow.pop %v1601
      %v1603 = vmul.f32 %v1562, 1.442695
      %v1604 = vpow.pop %v1603
      %v1605 = vmul.f32 %v1563, 1.442695
      %v1606 = vpow.pop %v1605
      %v1607 = vmul.f32 %v1564, 1.442695
      %v1608 = vpow.pop %v1607
      %v1609 = vmul.f32 %v1565, 1.442695
      %v1610 = vpow.pop %v1609
      %v1611 = vmul.f32 %v1566, 1.442695
      %v1612 = vpow.pop %v1611
      %v1613 = vmul.f32 %v1567, 1.442695
      %v1614 = vpow.pop %v1613
      %v1615 = vmul.f32 %v1568, 1.442695
      %v1616 = vpow.pop %v1615
      %v1617 = vmul.f32 %v1569, 1.442695
      %v1618 = vpow.pop %v1617
      %v1619 = vmul.f32 %v1570, 1.442695
      %v1620 = vpow.pop %v1619
      %v1621 = vmul.f32 %v1571, 1.442695
      %v1622 = vpow.pop %v1621
      %v1623 = vmul.f32 %v1572, 1.442695
      %v1624 = vpow.pop %v1623
      %v1625 = vmul.f32 %v1573, 1.442695
      %v1626 = vpow.pop %v1625
      %v1627 = vmul.f32 %v1574, 1.442695
      %v1628 = vpow.pop %v1627
      %v1629 = vmul.f32 %v1575, 1.442695
      %v1630 = vpow.pop %v1629
      %v1631 = vmul.f32 %v1576, 1.442695
      %v1632 = vpow.pop %v1631
      %v1633 = vmul.f32 %v1577, 1.442695
      %v1634 = vpow.pop %v1633
      %v1635 = vmul.f32 %v1578, 1.442695
      %v1636 = vpow.pop %v1635
      %v1637 = vmul.f32 %v1579, 1.442695
      %v1638 = vpow.pop %v1637
      %v1639 = vmul.f32 %v1580, 1.442695
      %v1640 = vpow.pop %v1639
      %v1641 = vmul.f32 %v1581, 1.442695
      %v1642 = vpow.pop %v1641
      %v1643 = vmul.f32 %v1582, 1.442695
      %v1644 = vpow.pop %v1643
      %v1645 = vmul.f32 %v1583, 1.442695
      %v1646 = vpow.pop %v1645
      %v1647 = vmul.f32 %v1584, 1.442695
      %v1648 = vpow.pop %v1647
      %v1649 = vmul.f32 %v785, %v1586
      %v1650 = vmul.f32 %v786, %v1588
      %v1651 = vmul.f32 %v787, %v1590
      %v1652 = vmul.f32 %v788, %v1592
      %v1653 = vmul.f32 %v789, %v1594
      %v1654 = vmul.f32 %v790, %v1596
      %v1655 = vmul.f32 %v791, %v1598
      %v1656 = vmul.f32 %v792, %v1600
      %v1657 = vmul.f32 %v793, %v1602
      %v1658 = vmul.f32 %v794, %v1604
      %v1659 = vmul.f32 %v795, %v1606
      %v1660 = vmul.f32 %v796, %v1608
      %v1661 = vmul.f32 %v797, %v1610
      %v1662 = vmul.f32 %v798, %v1612
      %v1663 = vmul.f32 %v799, %v1614
      %v1664 = vmul.f32 %v800, %v1616
      %v1665 = vmul.f32 %v801, %v1618
      %v1666 = vmul.f32 %v802, %v1620
      %v1667 = vmul.f32 %v803, %v1622
      %v1668 = vmul.f32 %v804, %v1624
      %v1669 = vmul.f32 %v805, %v1626
      %v1670 = vmul.f32 %v806, %v1628
      %v1671 = vmul.f32 %v807, %v1630
      %v1672 = vmul.f32 %v808, %v1632
      %v1673 = vmul.f32 %v809, %v1634
      %v1674 = vmul.f32 %v810, %v1636
      %v1675 = vmul.f32 %v811, %v1638
      %v1676 = vmul.f32 %v812, %v1640
      %v1677 = vmul.f32 %v813, %v1642
      %v1678 = vmul.f32 %v814, %v1644
      %v1679 = vmul.f32 %v815, %v1646
      %v1680 = vmul.f32 %v816, %v1648
      %vm1681 = vcmp.ge.f32.partialorder %v561, 0.0
      %vm1682 = vcmp.ge.f32.partialorder %v562, 0.0
      %vm1683 = vcmp.ge.f32.partialorder %v563, 0.0
      %vm1684 = vcmp.ge.f32.partialorder %v564, 0.0
      %vm1685 = vcmp.ge.f32.partialorder %v565, 0.0
      %vm1686 = vcmp.ge.f32.partialorder %v566, 0.0
      %vm1687 = vcmp.ge.f32.partialorder %v567, 0.0
      %vm1688 = vcmp.ge.f32.partialorder %v568, 0.0
      %vm1689 = vcmp.ge.f32.partialorder %v569, 0.0
      %vm1690 = vcmp.ge.f32.partialorder %v570, 0.0
      %vm1691 = vcmp.ge.f32.partialorder %v571, 0.0
      %vm1692 = vcmp.ge.f32.partialorder %v572, 0.0
      %vm1693 = vcmp.ge.f32.partialorder %v573, 0.0
      %vm1694 = vcmp.ge.f32.partialorder %v574, 0.0
      %vm1695 = vcmp.ge.f32.partialorder %v575, 0.0
      %vm1696 = vcmp.ge.f32.partialorder %v576, 0.0
      %vm1697 = vcmp.ge.f32.partialorder %v577, 0.0
      %vm1698 = vcmp.ge.f32.partialorder %v578, 0.0
      %vm1699 = vcmp.ge.f32.partialorder %v579, 0.0
      %vm1700 = vcmp.ge.f32.partialorder %v580, 0.0
      %vm1701 = vcmp.ge.f32.partialorder %v581, 0.0
      %vm1702 = vcmp.ge.f32.partialorder %v582, 0.0
      %vm1703 = vcmp.ge.f32.partialorder %v583, 0.0
      %vm1704 = vcmp.ge.f32.partialorder %v584, 0.0
      %vm1705 = vcmp.ge.f32.partialorder %v585, 0.0
      %vm1706 = vcmp.ge.f32.partialorder %v586, 0.0
      %vm1707 = vcmp.ge.f32.partialorder %v587, 0.0
      %vm1708 = vcmp.ge.f32.partialorder %v588, 0.0
      %vm1709 = vcmp.ge.f32.partialorder %v589, 0.0
      %vm1710 = vcmp.ge.f32.partialorder %v590, 0.0
      %vm1711 = vcmp.ge.f32.partialorder %v591, 0.0
      %vm1712 = vcmp.ge.f32.partialorder %v592, 0.0
      %v1713 = vsub.f32 1.0, %v1649
      %v1714 = vsub.f32 1.0, %v1650
      %v1715 = vsub.f32 1.0, %v1651
      %v1716 = vsub.f32 1.0, %v1652
      %v1717 = vsub.f32 1.0, %v1653
      %v1718 = vsub.f32 1.0, %v1654
      %v1719 = vsub.f32 1.0, %v1655
      %v1720 = vsub.f32 1.0, %v1656
      %v1721 = vsub.f32 1.0, %v1657
      %v1722 = vsub.f32 1.0, %v1658
      %v1723 = vsub.f32 1.0, %v1659
      %v1724 = vsub.f32 1.0, %v1660
      %v1725 = vsub.f32 1.0, %v1661
      %v1726 = vsub.f32 1.0, %v1662
      %v1727 = vsub.f32 1.0, %v1663
      %v1728 = vsub.f32 1.0, %v1664
      %v1729 = vsub.f32 1.0, %v1665
      %v1730 = vsub.f32 1.0, %v1666
      %v1731 = vsub.f32 1.0, %v1667
      %v1732 = vsub.f32 1.0, %v1668
      %v1733 = vsub.f32 1.0, %v1669
      %v1734 = vsub.f32 1.0, %v1670
      %v1735 = vsub.f32 1.0, %v1671
      %v1736 = vsub.f32 1.0, %v1672
      %v1737 = vsub.f32 1.0, %v1673
      %v1738 = vsub.f32 1.0, %v1674
      %v1739 = vsub.f32 1.0, %v1675
      %v1740 = vsub.f32 1.0, %v1676
      %v1741 = vsub.f32 1.0, %v1677
      %v1742 = vsub.f32 1.0, %v1678
      %v1743 = vsub.f32 1.0, %v1679
      %v1744 = vsub.f32 1.0, %v1680
      %v1745 = vsub.f32 %v1649, 1.0
      %v1746 = vsub.f32 %v1650, 1.0
      %v1747 = vsub.f32 %v1651, 1.0
      %v1748 = vsub.f32 %v1652, 1.0
      %v1749 = vsub.f32 %v1653, 1.0
      %v1750 = vsub.f32 %v1654, 1.0
      %v1751 = vsub.f32 %v1655, 1.0
      %v1752 = vsub.f32 %v1656, 1.0
      %v1753 = vsub.f32 %v1657, 1.0
      %v1754 = vsub.f32 %v1658, 1.0
      %v1755 = vsub.f32 %v1659, 1.0
      %v1756 = vsub.f32 %v1660, 1.0
      %v1757 = vsub.f32 %v1661, 1.0
      %v1758 = vsub.f32 %v1662, 1.0
      %v1759 = vsub.f32 %v1663, 1.0
      %v1760 = vsub.f32 %v1664, 1.0
      %v1761 = vsub.f32 %v1665, 1.0
      %v1762 = vsub.f32 %v1666, 1.0
      %v1763 = vsub.f32 %v1667, 1.0
      %v1764 = vsub.f32 %v1668, 1.0
      %v1765 = vsub.f32 %v1669, 1.0
      %v1766 = vsub.f32 %v1670, 1.0
      %v1767 = vsub.f32 %v1671, 1.0
      %v1768 = vsub.f32 %v1672, 1.0
      %v1769 = vsub.f32 %v1673, 1.0
      %v1770 = vsub.f32 %v1674, 1.0
      %v1771 = vsub.f32 %v1675, 1.0
      %v1772 = vsub.f32 %v1676, 1.0
      %v1773 = vsub.f32 %v1677, 1.0
      %v1774 = vsub.f32 %v1678, 1.0
      %v1775 = vsub.f32 %v1679, 1.0
      %v1776 = vsub.f32 %v1680, 1.0
      %v1777 = vsel %vm1681, %v1713, %v1745
      %v1778 = vsel %vm1682, %v1714, %v1746
      %v1779 = vsel %vm1683, %v1715, %v1747
      %v1780 = vsel %vm1684, %v1716, %v1748
      %v1781 = vsel %vm1685, %v1717, %v1749
      %v1782 = vsel %vm1686, %v1718, %v1750
      %v1783 = vsel %vm1687, %v1719, %v1751
      %v1784 = vsel %vm1688, %v1720, %v1752
      %v1785 = vsel %vm1689, %v1721, %v1753
      %v1786 = vsel %vm1690, %v1722, %v1754
      %v1787 = vsel %vm1691, %v1723, %v1755
      %v1788 = vsel %vm1692, %v1724, %v1756
      %v1789 = vsel %vm1693, %v1725, %v1757
      %v1790 = vsel %vm1694, %v1726, %v1758
      %v1791 = vsel %vm1695, %v1727, %v1759
      %v1792 = vsel %vm1696, %v1728, %v1760
      %v1793 = vsel %vm1697, %v1729, %v1761
      %v1794 = vsel %vm1698, %v1730, %v1762
      %v1795 = vsel %vm1699, %v1731, %v1763
      %v1796 = vsel %vm1700, %v1732, %v1764
      %v1797 = vsel %vm1701, %v1733, %v1765
      %v1798 = vsel %vm1702, %v1734, %v1766
      %v1799 = vsel %vm1703, %v1735, %v1767
      %v1800 = vsel %vm1704, %v1736, %v1768
      %v1801 = vsel %vm1705, %v1737, %v1769
      %v1802 = vsel %vm1706, %v1738, %v1770
      %v1803 = vsel %vm1707, %v1739, %v1771
      %v1804 = vsel %vm1708, %v1740, %v1772
      %v1805 = vsel %vm1709, %v1741, %v1773
      %v1806 = vsel %vm1710, %v1742, %v1774
      %v1807 = vsel %vm1711, %v1743, %v1775
      %v1808 = vsel %vm1712, %v1744, %v1776
      %v1809 = vadd.f32 %v1777, 1.0
      %v1810 = vadd.f32 %v1778, 1.0
      %v1811 = vadd.f32 %v1779, 1.0
      %v1812 = vadd.f32 %v1780, 1.0
      %v1813 = vadd.f32 %v1781, 1.0
      %v1814 = vadd.f32 %v1782, 1.0
      %v1815 = vadd.f32 %v1783, 1.0
      %v1816 = vadd.f32 %v1784, 1.0
      %v1817 = vadd.f32 %v1785, 1.0
      %v1818 = vadd.f32 %v1786, 1.0
      %v1819 = vadd.f32 %v1787, 1.0
      %v1820 = vadd.f32 %v1788, 1.0
      %v1821 = vadd.f32 %v1789, 1.0
      %v1822 = vadd.f32 %v1790, 1.0
      %v1823 = vadd.f32 %v1791, 1.0
      %v1824 = vadd.f32 %v1792, 1.0
      %v1825 = vadd.f32 %v1793, 1.0
      %v1826 = vadd.f32 %v1794, 1.0
      %v1827 = vadd.f32 %v1795, 1.0
      %v1828 = vadd.f32 %v1796, 1.0
      %v1829 = vadd.f32 %v1797, 1.0
      %v1830 = vadd.f32 %v1798, 1.0
      %v1831 = vadd.f32 %v1799, 1.0
      %v1832 = vadd.f32 %v1800, 1.0
      %v1833 = vadd.f32 %v1801, 1.0
      %v1834 = vadd.f32 %v1802, 1.0
      %v1835 = vadd.f32 %v1803, 1.0
      %v1836 = vadd.f32 %v1804, 1.0
      %v1837 = vadd.f32 %v1805, 1.0
      %v1838 = vadd.f32 %v1806, 1.0
      %v1839 = vadd.f32 %v1807, 1.0
      %v1840 = vadd.f32 %v1808, 1.0
      %v1841 = vmul.f32 %v529, %v1809
      %v1842 = vmul.f32 %v530, %v1810
      %v1843 = vmul.f32 %v531, %v1811
      %v1844 = vmul.f32 %v532, %v1812
      %v1845 = vmul.f32 %v533, %v1813
      %v1846 = vmul.f32 %v534, %v1814
      %v1847 = vmul.f32 %v535, %v1815
      %v1848 = vmul.f32 %v536, %v1816
      %v1849 = vmul.f32 %v537, %v1817
      %v1850 = vmul.f32 %v538, %v1818
      %v1851 = vmul.f32 %v539, %v1819
      %v1852 = vmul.f32 %v540, %v1820
      %v1853 = vmul.f32 %v541, %v1821
      %v1854 = vmul.f32 %v542, %v1822
      %v1855 = vmul.f32 %v543, %v1823
      %v1856 = vmul.f32 %v544, %v1824
      %v1857 = vmul.f32 %v545, %v1825
      %v1858 = vmul.f32 %v546, %v1826
      %v1859 = vmul.f32 %v547, %v1827
      %v1860 = vmul.f32 %v548, %v1828
      %v1861 = vmul.f32 %v549, %v1829
      %v1862 = vmul.f32 %v550, %v1830
      %v1863 = vmul.f32 %v551, %v1831
      %v1864 = vmul.f32 %v552, %v1832
      %v1865 = vmul.f32 %v553, %v1833
      %v1866 = vmul.f32 %v554, %v1834
      %v1867 = vmul.f32 %v555, %v1835
      %v1868 = vmul.f32 %v556, %v1836
      %v1869 = vmul.f32 %v557, %v1837
      %v1870 = vmul.f32 %v558, %v1838
      %v1871 = vmul.f32 %v559, %v1839
      %v1872 = vmul.f32 %v560, %v1840
      %v1873 = vld [vmem:[%s3] sm:$0x1]
      %v1874 = vpack.c.bf16 %v1873, %v1873
      %v1875 = vpack.c.bf16 %v1843, %v1841
      %v1876 = vpack.c.bf16 %v1844, %v1842
      %v1877 = vpack.c.bf16 %v1847, %v1845
      %v1878 = vpack.c.bf16 %v1848, %v1846
      %v1879 = vpack.c.bf16 %v1851, %v1849
      %v1880 = vpack.c.bf16 %v1852, %v1850
      %v1881 = vpack.c.bf16 %v1855, %v1853
      %v1882 = vpack.c.bf16 %v1856, %v1854
      %v1883 = vpack.c.bf16 %v1859, %v1857
      %v1884 = vpack.c.bf16 %v1860, %v1858
      %v1885 = vpack.c.bf16 %v1863, %v1861
      %v1886 = vpack.c.bf16 %v1864, %v1862
      %v1887 = vpack.c.bf16 %v1867, %v1865
      %v1888 = vpack.c.bf16 %v1868, %v1866
      %v1889 = vpack.c.bf16 %v1871, %v1869
      %v1890 = vpack.c.bf16 %v1872, %v1870
      %v1891 = vld [vmem:[#allocation2] sm:$0x1]
      %1893 = vset.pattern.permute.xlu0 0
      %1894 = vperm.xlu0 %1893, %v1891
      %v1895 = vpop.permute.xlu0 %1894
      %v1897 = vlaneseq
      %v1898 = vshrl.u32 %v1897, 7
      %v1899 = vsub.s32 0, %v1898
      %v1900 = vrot.slane %v1895, %v1899
      %1901 = vmatprep.subr.bf16.mxu0 %v1876
      %1902 = vmatpush1.bf16.msra.mxu0 %v1875
      %1903 = vmatprep.subr.bf16.mxu0 %v1878
      %1904 = vmatpush1.bf16.msra.mxu0 %v1877
      %1905 = vmatprep.subr.bf16.mxu0 %v1880
      %1906 = vmatpush1.bf16.msra.mxu0 %v1879
      %1907 = vmatprep.subr.bf16.mxu0 %v1882
      %1908 = vmatpush1.bf16.msra.mxu0 %v1881
      %1909 = vmatprep.subr.bf16.mxu0 %v1884
      %1910 = vmatpush1.bf16.msra.mxu0 %v1883
      %1911 = vmatprep.subr.bf16.mxu0 %v1886
      %1912 = vmatpush1.bf16.msra.mxu0 %v1885
      %1913 = vmatprep.subr.bf16.mxu0 %v1888
      %1914 = vmatpush1.bf16.msra.mxu0 %v1887
      %1915 = vmatprep.subr.bf16.mxu0 %v1890
      %1916 = vmatpush1.bf16.msra.mxu0 %v1889
      %1917 = vmatprep.subr.bf16.mxu0 0
      %1918 = vmatpush1.bf16.msra.mxu0 0
      %1919 = vmatprep.subr.bf16.mxu0 0
      %1920 = vmatpush1.bf16.msra.mxu0 0
      %1921 = vmatprep.subr.bf16.mxu0 0
      %1922 = vmatpush1.bf16.msra.mxu0 0
      %1923 = vmatprep.subr.bf16.mxu0 0
      %1924 = vmatpush1.bf16.msra.mxu0 0
      %1925 = vmatprep.subr.bf16.mxu0 0
      %1926 = vmatpush1.bf16.msra.mxu0 0
      %1927 = vmatprep.subr.bf16.mxu0 0
      %1928 = vmatpush1.bf16.msra.mxu0 0
      %1929 = vmatprep.subr.bf16.mxu0 0
      %1930 = vmatpush1.bf16.msra.mxu0 0
      %1931 = vmatprep.subr.bf16.mxu0 0
      %1932 = vmatpush1.bf16.msra.mxu0 0
      %1933 = vmatprep.mubr.bf16.mxu0 0
      %1934 = vmatmul.mubr.bf16.gmra.mrb[0].mxu0 %v1874
      %v1935 = vpop.f32.mrb[0].mxu0
      %v1936 = vadd.f32 %v1900, %v1935
      %v1937 = vpop.f32.mrb[0].mxu0
      %v1938 = vadd.f32 %v1900, %v1937
      %v1939 = vpop.f32.mrb[0].mxu0
      %v1940 = vpop.f32.mrb[0].mxu0
      %1941 = vdwg.mxu0
      %v1944 = vcombine.low %v1936, %v1938
      %v1946 = vunpack.c.l.s4 1966171168
      %v1947 = vunpack.c.0.s8 %v1946
      %v1948 = vlaneseq
      %v1949 = vshrl.u32 %v1948, 7
      %v1950 = vsub.s32 %v1947, %v1949
      %v1951 = vrot.slane %v1944, %v1950
      %v1953 = vunpack.c.l.s4 1966171168
      %v1954 = vunpack.c.0.s8 %v1953
      %v1955 = vlaneseq
      %v1956 = vshrl.u32 %v1955, 7
      %v1957 = vsub.s32 %v1954, %v1956
      %v1958 = vrot.slane %v1951, %v1957
      %v1960 = vlaneseq
      %vm1961 = vcmp.ge.s32.totalorder %v1960, 0
      %vm1962 = vcmp.lt.s32.totalorder %v1960, 256
      %vm1963 = vmand %vm1961, %vm1962
      %1964 = vst.msk [vmem:[%s262] sm:$0x3] %vm1963, %v1958
      %s1965 = smul.u32 2, %s23
      %p1966 = scmp.lt.s32.totalorder %s22, 1
      %s1967 = scalar_select %p1966, %s22, 1
      %p1968 = scmp.lt.s32.totalorder %s1965, 1
      %s1969 = scalar_select %p1968, %s1965, 1
      %s1970 = smul.addr %s1967, 2
      %s1971 = sadd.s32 %s1969, %s1970
      %s1972 = scalar_lea.vmem %s5, %s1971
      // Predicated region
      $region41: #{fno2d_forward.19} parent=39 // pred_check
        %p1973 = pneg %p162
      $region42: #{fno2d_forward.19} parent=39 // pred_check_branch
        %1975 = sbr.rel (%p1973) target = $region44
      $region43: #{fno2d_forward.19} parent=39 // pred_region
        %s1976 = smul.u32 2, %s23
      $region44: #{fno2d_forward.19} parent=39 // pred_fallthru
        _
    $region40: #{fno2d_forward.19} parent=5 // pred_fallthru
      _
    %p1977 = scmp.le.s32.totalorder 2, %s13
    // Predicated region
    $region45: #{fno2d_forward.19} parent=5 // pred_check
      %p1978 = pneg %p1977
    $region46: #{fno2d_forward.19} parent=5 // pred_check_branch
      %1980 = sbr.rel (%p1978) target = $region48
    $region47: #{fno2d_forward.19} parent=5 // pred_region
      %s1981 = ssub.s32 %s13, 2
      // Predicated region
      $region49: #{fno2d_forward.19} parent=47 // pred_check
        %p1982 = pneg %p168
      $region50: #{fno2d_forward.19} parent=47 // pred_check_branch
        %1984 = sbr.rel (%p1982) target = $region52
      $region51: #{fno2d_forward.19} parent=47 // pred_region
        %s1985 = smul.u32 2, %s25
        %p1986 = scmp.lt.s32.totalorder %s24, 1
        %s1987 = scalar_select %p1986, %s24, 1
        %p1988 = scmp.lt.s32.totalorder %s1985, 1
        %s1989 = scalar_select %p1988, %s1985, 1
        %s1990 = smul.addr %s1987, 2
        %s1991 = sadd.s32 %s1989, %s1990
        %s1992 = scalar_lea.vmem %s5, %s1991
      $region52: #{fno2d_forward.19} parent=47 // pred_fallthru
        _
    $region48: #{fno2d_forward.19} parent=5 // pred_fallthru
      _
  $region6: #{fno2d_forward.19} parent=0 // loop_footer
    %s17 = sadd.s32 1, %s13
  $region7: #{fno2d_forward.19} parent=0 // loop_footer_branch
    %12 = sbr.rel target = $region3
  $region8: #{fno2d_forward.19} parent=0 // loop_exit
    _

</llo_original>
